<compile_context>
chip_gen: v6e
topology: v6e:2x2x1
jax: 0.10.0
libtpu: 0.0.40
codegen_flags: <defaults>
</compile_context>

<pallas_src>
import math
import functools

import numpy as np
import jax
import jax.numpy as jnp
from jax import lax
from jax.experimental import pallas as pl
from jax.experimental.pallas import tpu as pltpu


# ----------------------------- small helpers -----------------------------

def _silu(x):
    return x * (1.0 / (1.0 + jnp.exp(-x)))


def _softplus(x):
    # numerically stable softplus (matches F.softplus semantics)
    return jnp.maximum(x, 0.0) + jnp.log1p(jnp.exp(-jnp.abs(x)))


def _gaussian_mask(length):
    """Replicates MambaBlock.gaussian_mask (value-independent)."""
    center = (length + 1) // 2
    idx = np.arange(length, dtype=np.float32)
    sigma = np.abs(idx - center).mean()
    w = np.exp(-0.5 * (idx - center) ** 2 / sigma ** 2)
    w = w / w.sum()
    return w.astype(np.float32)


def _adapool_matrix(in_len, out_len):
    """AdaptiveAvgPool1d(out_len) folded into a (out_len, in_len) matrix."""
    P = np.zeros((out_len, in_len), dtype=np.float32)
    for i in range(out_len):
        s = (i * in_len) // out_len
        e = int(math.ceil((i + 1) * in_len / out_len))
        P[i, s:e] = 1.0 / (e - s)
    return P


# ----------------------------- Pallas kernel -----------------------------

def _mamba_kernel(
    xp_ref,                 # (B_blk, Lm, 2*d_model)  [front | reversed back]
    xz_ref,                 # (B_blk, L, d_model)     full sequence for z branch
    w_in_fb_ref,            # (2*d_model, 2*d_inner)  block-diag in_proj_x
    w_in_z_ref,             # (d_model, d_inner)
    w_delta_ref,            # (2*d_inner, 2*d_inner)  block-diag, dt proj folded in
    b_delta_ref,            # (1, 2*d_inner)
    w_bf_ref, w_bb_ref,     # (2*d_inner, S) each (zero rows on the other direction)
    w_cf_ref, w_cb_ref,     # (2*d_inner, S)
    b_bf_ref, b_bb_ref,     # (1, S)
    b_cf_ref, b_cb_ref,     # (1, S)
    a_fb_ref,               # (S, 2*d_inner)  = [-exp(A_log_f).T | -exp(A_log_b).T]
    d_fb_ref,               # (1, 2*d_inner)
    dir_mask_ref,           # (1, 2*d_inner)  1.0 on forward lanes, 0.0 on backward
    mask_cat_ref,           # (Lm, 2*d_inner) gaussian mask | flipped gaussian mask
    mask_col_ref,           # (Lm, 1)         gaussian mask (applied after pro_to)
    w_pro_ref, b_pro_ref,   # (2*d_inner, d_inner), (1, d_inner)
    w_tok_a_ref,            # (d_inner, seq)
    w_tok_v_ref,            # (d_inner, d_inner)
    w_out_ref,              # (d_inner, d_model)
    pool_ref,               # (seq, L)  adaptive average pool as matmul
    out_ref,                # (B_blk, seq, d_model)
    hs_ref,                 # VMEM scratch (B_blk, Lm, S, 2*d_inner)
    *, block_b, n_steps, d_state, d_inner,
):
    f32 = jnp.float32

    # weights read once per grid step (constant block index -> no re-DMA)
    w_in_fb = w_in_fb_ref[...]
    w_in_z = w_in_z_ref[...]
    w_delta = w_delta_ref[...]
    b_delta = b_delta_ref[...]
    w_bf = w_bf_ref[...]
    w_bb = w_bb_ref[...]
    w_cf = w_cf_ref[...]
    w_cb = w_cb_ref[...]
    b_bf = b_bf_ref[...]
    b_bb = b_bb_ref[...]
    b_cf = b_cf_ref[...]
    b_cb = b_cb_ref[...]
    a_fb = a_fb_ref[...]
    d_fb = d_fb_ref[...]
    dir_f = dir_mask_ref[...]          # (1, 2*d_inner)
    dir_b = 1.0 - dir_f
    mask_cat = mask_cat_ref[...]
    mask_col = mask_col_ref[...]
    w_pro = w_pro_ref[...]
    b_pro = b_pro_ref[...]
    w_tok_a = w_tok_a_ref[...]
    w_tok_v = w_tok_v_ref[...]
    w_out = w_out_ref[...]
    pool = pool_ref[...]

    for b in range(block_b):
        # ---- fused forward/backward input projection + SiLU (128 lanes) ----
        xp = xp_ref[b]                                                     # (Lm, 2*dm)
        x_fb = _silu(jnp.dot(xp, w_in_fb, preferred_element_type=f32))     # (Lm, 2*di)

        # ---- delta (dt projection folded offline), B/C from lane-0 matmuls ----
        delta = _softplus(jnp.dot(x_fb, w_delta, preferred_element_type=f32) + b_delta)
        dx = delta * x_fb                                                  # (Lm, 2*di)
        B_f = jnp.dot(x_fb, w_bf, preferred_element_type=f32) + b_bf       # (Lm, S)
        B_b = jnp.dot(x_fb, w_bb, preferred_element_type=f32) + b_bb
        C_f = jnp.dot(x_fb, w_cf, preferred_element_type=f32) + b_cf
        C_b = jnp.dot(x_fb, w_cb, preferred_element_type=f32) + b_cb

        # ---- hoist transcendentals / broadcasts out of the serial scan ----
        dA = jnp.exp(delta[:, None, :] * a_fb[None, :, :])                 # (Lm, S, 2*di)
        B3 = B_f[:, :, None] * dir_f + B_b[:, :, None] * dir_b             # (Lm, S, 2*di)
        BX = dx[:, None, :] * B3                                           # (Lm, S, 2*di)
        C3 = C_f[:, :, None] * dir_f + C_b[:, :, None] * dir_b             # (Lm, S, 2*di)

        # ---- serial recurrence: one FMA per step on the critical path ----
        h = jnp.zeros((d_state, 2 * d_inner), f32)
        for t in range(n_steps):                                           # static unroll (Lm small)
            h = dA[t] * h + BX[t]
            hs_ref[b, t] = h

        hs = hs_ref[b]                                                     # (Lm, S, 2*di)
        y_fb = jnp.sum(hs * C3, axis=1) + d_fb * x_fb                      # (Lm, 2*di)

        # ---- gaussian gating + pro_to ----
        y = jnp.dot(y_fb * mask_cat, w_pro, preferred_element_type=f32) + b_pro   # (Lm, di)
        y = y * mask_col

        # ---- tokenizer ('f' direction), no explicit transposes ----
        al = jnp.dot(y, w_tok_a, preferred_element_type=f32)               # (Lm, seq)
        vv = jnp.dot(y, w_tok_v, preferred_element_type=f32)               # (Lm, di)
        al = al - jnp.max(al, axis=0, keepdims=True)
        ae = jnp.exp(al)
        a_sm = ae * pl.reciprocal(jnp.sum(ae, axis=0, keepdims=True), approx=True)
        tok = lax.dot_general(a_sm, vv, (((0,), (0,)), ((), ())),
                              preferred_element_type=f32)                  # (seq, di)
        # TODO(synk): tokenizer_dropout omitted (eval-mode identity)

        # ---- z branch: adaptive average pool (as matmul) then SiLU ----
        z = jnp.dot(xz_ref[b], w_in_z, preferred_element_type=f32)         # (L, di)
        zp = _silu(jnp.dot(pool, z, preferred_element_type=f32))           # (seq, di)

        out_ref[b] = jnp.dot(tok * zp, w_out, preferred_element_type=f32)  # (seq, d_model)


# ----------------------------- wrapper -----------------------------

def mamba_block_forward(x, params, *, d_model, d_inner, dt_rank, d_state,
                        seq_length, block_batch=None):
    N, L, _ = x.shape
    mid = L // 2 + 1
    Lm = mid
    assert L - mid + 1 == Lm, "sequence length must be odd (as the torch code requires)"

    if block_batch is None:
        # Prefer >= 2 grid steps (v7x megacore sharding + input pipelining) with
        # the largest batch block that still permits it; fall back to 1.
        block_batch = 1
        for cand in (8, 4, 2, 1):
            if N % cand == 0 and N // cand >= 2:
                block_batch = cand
                break
    assert N % block_batch == 0

    f32 = jnp.float32
    r, S, di = dt_rank, d_state, d_inner

    # ---- fold / fuse parameters offline (forward | backward along the lane axis) ----
    zdm = jnp.zeros((d_model, di), f32)
    w_in_fb = jnp.concatenate([
        jnp.concatenate([params["w_in_x"], zdm], axis=1),
        jnp.concatenate([zdm, params["w_in_x"]], axis=1)], axis=0)          # (2dm, 2di)

    wdf = params["w_xp_f"][:, :r] @ params["w_dt_f"]                        # (di, di)
    wdb = params["w_xp_b"][:, :r] @ params["w_dt_b"]
    zdi = jnp.zeros((di, di), f32)
    w_delta = jnp.concatenate([
        jnp.concatenate([wdf, zdi], axis=1),
        jnp.concatenate([zdi, wdb], axis=1)], axis=0)                       # (2di, 2di)
    b_delta = jnp.concatenate([
        params["b_xp_f"][:, :r] @ params["w_dt_f"] + params["b_dt_f"],
        params["b_xp_b"][:, :r] @ params["w_dt_b"] + params["b_dt_b"]], axis=1)

    zds = jnp.zeros((di, S), f32)
    w_bf = jnp.concatenate([params["w_xp_f"][:, r:r + S], zds], axis=0)     # (2di, S)
    w_bb = jnp.concatenate([zds, params["w_xp_b"][:, r:r + S]], axis=0)
    w_cf = jnp.concatenate([params["w_xp_f"][:, r + S:r + 2 * S], zds], axis=0)
    w_cb = jnp.concatenate([zds, params["w_xp_b"][:, r + S:r + 2 * S]], axis=0)
    b_bf = params["b_xp_f"][:, r:r + S]
    b_bb = params["b_xp_b"][:, r:r + S]
    b_cf = params["b_xp_f"][:, r + S:r + 2 * S]
    b_cb = params["b_xp_b"][:, r + S:r + 2 * S]

    a_fb = jnp.concatenate([params["a_f"], params["a_b"]], axis=1)          # (S, 2di)
    d_fb = jnp.concatenate([params["d_f"], params["d_b"]], axis=1)          # (1, 2di)
    dir_mask = jnp.concatenate([jnp.ones((1, di), f32), jnp.zeros((1, di), f32)], axis=1)

    mask_np = _gaussian_mask(Lm)
    mask_flip_np = np.ascontiguousarray(mask_np[::-1])
    mask_cat = jnp.asarray(np.concatenate(
        [np.tile(mask_np[:, None], (1, di)), np.tile(mask_flip_np[:, None], (1, di))],
        axis=1).astype(np.float32))                                         # (Lm, 2di)
    mask_col = jnp.asarray(mask_np[:, None])                                # (Lm, 1)
    pool = jnp.asarray(_adapool_matrix(L, seq_length))                      # (seq, L)

    # ---- pair the forward half with the pre-reversed backward half (wrapper side) ----
    x_front = x[:, :mid, :]
    x_back = jnp.flip(x[:, mid - 1:, :], axis=1)
    xp = jnp.concatenate([x_front, x_back], axis=-1)                        # (N, Lm, 2dm)

    kernel = functools.partial(_mamba_kernel, block_b=block_batch, n_steps=Lm,
                               d_state=d_state, d_inner=d_inner)

    def const_spec(a):
        nd = a.ndim
        return pl.BlockSpec(a.shape, lambda i, _nd=nd: (0,) * _nd)

    consts = [w_in_fb, params["w_in_z"], w_delta, b_delta,
              w_bf, w_bb, w_cf, w_cb, b_bf, b_bb, b_cf, b_cb,
              a_fb, d_fb, dir_mask, mask_cat, mask_col,
              params["w_pro"], params["b_pro"],
              params["w_tok_a"], params["w_tok_v"], params["w_out"], pool]

    in_specs = [pl.BlockSpec((block_batch, Lm, 2 * d_model), lambda i: (i, 0, 0)),
                pl.BlockSpec((block_batch, L, d_model), lambda i: (i, 0, 0))]
    in_specs += [const_spec(a) for a in consts]

    out_spec = pl.BlockSpec((block_batch, seq_length, d_model), lambda i: (i, 0, 0))

    return pl.pallas_call(
        kernel,
        out_shape=jax.ShapeDtypeStruct((N, seq_length, d_model), f32),
        grid_spec=pltpu.PrefetchScalarGridSpec(
            num_scalar_prefetch=0,
            grid=(N // block_batch,),
            in_specs=in_specs,
            out_specs=out_spec,
            scratch_shapes=[pltpu.VMEM((block_batch, Lm, d_state, 2 * d_inner), f32)]),
        compiler_params=pltpu.CompilerParams(
            dimension_semantics=("parallel",)),
    )(xp, x, *consts)


# ----------------------------- param init (deterministic, synthetic) -----------------------------

def init_params(key, d_model, d_inner, dt_rank, d_state, seq_length,
                dt_min=0.001, dt_max=0.1, dt_init_floor=1e-4):
    ks = jax.random.split(key, 12)

    def nrm(k, shape, scale):
        return jax.random.normal(k, shape, jnp.float32) * scale

    nbc = dt_rank + 2 * d_state
    p = {}
    p["w_in_x"] = nrm(ks[0], (d_model, d_inner), 1.0 / math.sqrt(d_model))
    p["w_in_z"] = nrm(ks[1], (d_model, d_inner), 1.0 / math.sqrt(d_model))
    p["w_xp_f"] = nrm(ks[2], (d_inner, nbc), 1.0 / math.sqrt(d_inner))
    p["b_xp_f"] = jnp.zeros((1, nbc), jnp.float32)
    p["w_xp_b"] = nrm(ks[3], (d_inner, nbc), 1.0 / math.sqrt(d_inner))
    p["b_xp_b"] = jnp.zeros((1, nbc), jnp.float32)

    dt_init_std = dt_rank ** (-0.5)
    p["w_dt_f"] = jax.random.uniform(ks[4], (dt_rank, d_inner), jnp.float32,
                                     -dt_init_std, dt_init_std)
    p["w_dt_b"] = jax.random.uniform(ks[5], (dt_rank, d_inner), jnp.float32,
                                     -dt_init_std, dt_init_std)

    def dt_bias(k):
        dt = jnp.exp(jax.random.uniform(k, (d_inner,), jnp.float32)
                     * (math.log(dt_max) - math.log(dt_min)) + math.log(dt_min))
        dt = jnp.maximum(dt, dt_init_floor)
        inv_dt = dt + jnp.log(-jnp.expm1(-dt))
        return inv_dt.reshape(1, d_inner)

    p["b_dt_f"] = dt_bias(ks[6])
    p["b_dt_b"] = dt_bias(ks[7])

    # A_log = log(arange(1, S+1)) per channel -> A = -exp(A_log); stored transposed (S, d_inner)
    a_col = -jnp.arange(1, d_state + 1, dtype=jnp.float32)[:, None]
    p["a_f"] = jnp.broadcast_to(a_col, (d_state, d_inner)).astype(jnp.float32)
    p["a_b"] = jnp.broadcast_to(a_col, (d_state, d_inner)).astype(jnp.float32)
    p["d_f"] = jnp.ones((1, d_inner), jnp.float32)
    p["d_b"] = jnp.ones((1, d_inner), jnp.float32)

    p["w_pro"] = nrm(ks[8], (2 * d_inner, d_inner), 1.0 / math.sqrt(2 * d_inner))
    p["b_pro"] = jnp.zeros((1, d_inner), jnp.float32)
    # token_wA_f (1, seq, d_inner) is only ever used transposed -> store as (d_inner, seq)
    p["w_tok_a"] = nrm(ks[9], (d_inner, seq_length), math.sqrt(2.0 / d_inner))
    p["w_tok_v"] = nrm(ks[10], (d_inner, d_inner), math.sqrt(2.0 / d_inner))
    p["w_out"] = nrm(ks[11], (d_inner, d_model), 1.0 / math.sqrt(d_inner))
    return p


# ----------------------------- pure-JAX reference (for verification) -----------------------------

def ref_forward(x, p, *, dt_rank, d_state, seq_length):
    N, L, _ = x.shape
    mid = L // 2 + 1
    Lm = mid
    mask_np = _gaussian_mask(Lm)
    mask = jnp.asarray(mask_np)[:, None]                       # (Lm, 1)
    mask_flip = jnp.asarray(np.ascontiguousarray(mask_np[::-1]))[:, None]
    P = jnp.asarray(_adapool_matrix(L, seq_length))

    xin = jnp.einsum("nld,de->nle", x, p["w_in_x"])
    z = jnp.einsum("nld,de->nle", x, p["w_in_z"])
    x_f = jax.nn.silu(xin[:, :mid])
    x_b = jax.nn.silu(xin[:, mid - 1:][:, ::-1])

    def ssm(xs, w_xp, b_xp, w_dt, b_dt, a_t, d_row):
        dbc = jnp.einsum("nle,ek->nlk", xs, w_xp) + b_xp[0]
        delta = jax.nn.softplus(
            jnp.einsum("nlr,re->nle", dbc[..., :dt_rank], w_dt) + b_dt[0])
        B = dbc[..., dt_rank:dt_rank + d_state]
        C = dbc[..., dt_rank + d_state:dt_rank + 2 * d_state]
        A = a_t.T                                              # (d_inner, S)
        deltaA = jnp.exp(delta[..., None] * A)                 # (n, l, e, s)
        BX = delta[..., None] * B[:, :, None, :] * xs[..., None]

        def step(h, inp):
            dA, bx = inp
            h = dA * h + bx
            return h, h

        def per_batch(dA_b, bx_b):
            h0 = jnp.zeros(dA_b.shape[1:], jnp.float32)
            _, hs = jax.lax.scan(step, h0, (dA_b, bx_b))
            return hs

        hs = jax.vmap(per_batch)(deltaA, BX)
        return jnp.einsum("nles,nls->nle", hs, C) + d_row[0] * xs

    y_f = ssm(x_f, p["w_xp_f"], p["b_xp_f"], p["w_dt_f"], p["b_dt_f"], p["a_f"], p["d_f"])
    y_b = ssm(x_b, p["w_xp_b"], p["b_xp_b"], p["w_dt_b"], p["b_dt_b"], p["a_b"], p["d_b"])

    y_cat = jnp.concatenate([y_f * mask[None], y_b * mask_flip[None]], axis=-1)
    y = jnp.einsum("nlk,ke->nle", y_cat, p["w_pro"]) + p["b_pro"][0]
    y = y * mask[None]

    a_l = jnp.einsum("nle,es->nls", y, p["w_tok_a"]).transpose(0, 2, 1)
    a_sm = jax.nn.softmax(a_l, axis=-1)
    vv = jnp.einsum("nle,ef->nlf", y, p["w_tok_v"])
    tok = jnp.einsum("nsl,nlf->nsf", a_sm, vv)

    zp = jax.nn.silu(jnp.einsum("sl,nle->nse", P, z))
    return jnp.einsum("nse,ed->nsd", tok * zp, p["w_out"])


# ----------------------------- main -----------------------------

if __name__ == "__main__":
    # config: d_model=32 -> d_inner=64, dt_rank=ceil(32/16)=2, d_state=16, seq_length=9
    d_model = 32
    d_state = 16
    seq_length = 9
    d_inner = 2 * d_model
    dt_rank = math.ceil(d_model / 16)

    N, L = 2, 9   # L must be odd for split_sequence_auto to produce equal halves

    key = jax.random.PRNGKey(0)
    kx, kp = jax.random.split(key)
    x = jax.random.normal(kx, (N, L, d_model), jnp.float32)
    params = init_params(kp, d_model, d_inner, dt_rank, d_state, seq_length)

    out = mamba_block_forward(x, params, d_model=d_model, d_inner=d_inner,
                              dt_rank=dt_rank, d_state=d_state, seq_length=seq_length)
    out = jax.block_until_ready(out)
    assert out.shape == (N, seq_length, d_model)

    ref = jax.block_until_ready(
        ref_forward(x, params, dt_rank=dt_rank, d_state=d_state, seq_length=seq_length))
    err = float(jnp.max(jnp.abs(out - ref)))
    # tolerance slightly loosened vs exact f32 because the softmax denominator
    # uses the EUP approximate reciprocal (pl.reciprocal(approx=True))
    assert err < 2e-3, f"kernel/reference mismatch, max abs err = {err}"

    print("KERNEL_OK")
</pallas_src>

<mosaic_0001>
module attributes {stable_mosaic.version = 11 : i64} {
  func.func @_mamba_kernel(%arg0: i32, %arg1: memref<1x5x64xf32, #tpu.memory_space<vmem>>, %arg2: memref<1x9x32xf32, #tpu.memory_space<vmem>>, %arg3: memref<64x128xf32, #tpu.memory_space<vmem>>, %arg4: memref<32x64xf32, #tpu.memory_space<vmem>>, %arg5: memref<128x128xf32, #tpu.memory_space<vmem>>, %arg6: memref<1x128xf32, #tpu.memory_space<vmem>>, %arg7: memref<128x16xf32, #tpu.memory_space<vmem>>, %arg8: memref<128x16xf32, #tpu.memory_space<vmem>>, %arg9: memref<128x16xf32, #tpu.memory_space<vmem>>, %arg10: memref<128x16xf32, #tpu.memory_space<vmem>>, %arg11: memref<1x16xf32, #tpu.memory_space<vmem>>, %arg12: memref<1x16xf32, #tpu.memory_space<vmem>>, %arg13: memref<1x16xf32, #tpu.memory_space<vmem>>, %arg14: memref<1x16xf32, #tpu.memory_space<vmem>>, %arg15: memref<16x128xf32, #tpu.memory_space<vmem>>, %arg16: memref<1x128xf32, #tpu.memory_space<vmem>>, %arg17: memref<1x128xf32, #tpu.memory_space<vmem>>, %arg18: memref<5x128xf32, #tpu.memory_space<vmem>>, %arg19: memref<5x1xf32, #tpu.memory_space<vmem>>, %arg20: memref<128x64xf32, #tpu.memory_space<vmem>>, %arg21: memref<1x64xf32, #tpu.memory_space<vmem>>, %arg22: memref<64x9xf32, #tpu.memory_space<vmem>>, %arg23: memref<64x64xf32, #tpu.memory_space<vmem>>, %arg24: memref<64x32xf32, #tpu.memory_space<vmem>>, %arg25: memref<9x9xf32, #tpu.memory_space<vmem>>, %arg26: memref<1x9x32xf32, #tpu.memory_space<vmem>>, %arg27: memref<1x5x16x128xf32, #tpu.memory_space<vmem>>) attributes {dimension_semantics = [#tpu.dimension_semantics<parallel>], iteration_bounds = array<i64: 2>, scalar_prefetch = 0 : i64, scratch_operands = 1 : i64, tpu.core_type = #tpu.core_type<tc>, window_params = [{transform_indices = @transform_0, window_bounds = array<i64: 1, 5, 64>}, {transform_indices = @transform_1, window_bounds = array<i64: 1, 9, 32>}, {pipeline_mode = #tpu.pipeline_mode<synchronous>, transform_indices = @transform_2, window_bounds = array<i64: 64, 128>}, {pipeline_mode = #tpu.pipeline_mode<synchronous>, transform_indices = @transform_3, window_bounds = array<i64: 32, 64>}, {pipeline_mode = #tpu.pipeline_mode<synchronous>, transform_indices = @transform_4, window_bounds = array<i64: 128, 128>}, {pipeline_mode = #tpu.pipeline_mode<synchronous>, transform_indices = @transform_5, window_bounds = array<i64: 1, 128>}, {pipeline_mode = #tpu.pipeline_mode<synchronous>, transform_indices = @transform_6, window_bounds = array<i64: 128, 16>}, {pipeline_mode = #tpu.pipeline_mode<synchronous>, transform_indices = @transform_7, window_bounds = array<i64: 128, 16>}, {pipeline_mode = #tpu.pipeline_mode<synchronous>, transform_indices = @transform_8, window_bounds = array<i64: 128, 16>}, {pipeline_mode = #tpu.pipeline_mode<synchronous>, transform_indices = @transform_9, window_bounds = array<i64: 128, 16>}, {pipeline_mode = #tpu.pipeline_mode<synchronous>, transform_indices = @transform_10, window_bounds = array<i64: 1, 16>}, {pipeline_mode = #tpu.pipeline_mode<synchronous>, transform_indices = @transform_11, window_bounds = array<i64: 1, 16>}, {pipeline_mode = #tpu.pipeline_mode<synchronous>, transform_indices = @transform_12, window_bounds = array<i64: 1, 16>}, {pipeline_mode = #tpu.pipeline_mode<synchronous>, transform_indices = @transform_13, window_bounds = array<i64: 1, 16>}, {pipeline_mode = #tpu.pipeline_mode<synchronous>, transform_indices = @transform_14, window_bounds = array<i64: 16, 128>}, {pipeline_mode = #tpu.pipeline_mode<synchronous>, transform_indices = @transform_15, window_bounds = array<i64: 1, 128>}, {pipeline_mode = #tpu.pipeline_mode<synchronous>, transform_indices = @transform_16, window_bounds = array<i64: 1, 128>}, {pipeline_mode = #tpu.pipeline_mode<synchronous>, transform_indices = @transform_17, window_bounds = array<i64: 5, 128>}, {pipeline_mode = #tpu.pipeline_mode<synchronous>, transform_indices = @transform_18, window_bounds = array<i64: 5, 1>}, {pipeline_mode = #tpu.pipeline_mode<synchronous>, transform_indices = @transform_19, window_bounds = array<i64: 128, 64>}, {pipeline_mode = #tpu.pipeline_mode<synchronous>, transform_indices = @transform_20, window_bounds = array<i64: 1, 64>}, {pipeline_mode = #tpu.pipeline_mode<synchronous>, transform_indices = @transform_21, window_bounds = array<i64: 64, 9>}, {pipeline_mode = #tpu.pipeline_mode<synchronous>, transform_indices = @transform_22, window_bounds = array<i64: 64, 64>}, {pipeline_mode = #tpu.pipeline_mode<synchronous>, transform_indices = @transform_23, window_bounds = array<i64: 64, 32>}, {pipeline_mode = #tpu.pipeline_mode<synchronous>, transform_indices = @transform_24, window_bounds = array<i64: 9, 9>}, {transform_indices = @transform_25, window_bounds = array<i64: 1, 9, 32>}]} {
    %c0 = arith.constant 0 : index
    %c0_0 = arith.constant 0 : index
    %0 = vector.load %arg3[%c0, %c0_0] : memref<64x128xf32, #tpu.memory_space<vmem>>, vector<64x128xf32>
    %c0_1 = arith.constant 0 : index
    %c0_2 = arith.constant 0 : index
    %1 = vector.load %arg4[%c0_1, %c0_2] : memref<32x64xf32, #tpu.memory_space<vmem>>, vector<32x64xf32>
    %c0_3 = arith.constant 0 : index
    %c0_4 = arith.constant 0 : index
    %2 = vector.load %arg5[%c0_3, %c0_4] : memref<128x128xf32, #tpu.memory_space<vmem>>, vector<128x128xf32>
    %c0_5 = arith.constant 0 : index
    %c0_6 = arith.constant 0 : index
    %3 = vector.load %arg6[%c0_5, %c0_6] : memref<1x128xf32, #tpu.memory_space<vmem>>, vector<1x128xf32>
    %c0_7 = arith.constant 0 : index
    %c0_8 = arith.constant 0 : index
    %4 = vector.load %arg7[%c0_7, %c0_8] : memref<128x16xf32, #tpu.memory_space<vmem>>, vector<128x16xf32>
    %c0_9 = arith.constant 0 : index
    %c0_10 = arith.constant 0 : index
    %5 = vector.load %arg8[%c0_9, %c0_10] : memref<128x16xf32, #tpu.memory_space<vmem>>, vector<128x16xf32>
    %c0_11 = arith.constant 0 : index
    %c0_12 = arith.constant 0 : index
    %6 = vector.load %arg9[%c0_11, %c0_12] : memref<128x16xf32, #tpu.memory_space<vmem>>, vector<128x16xf32>
    %c0_13 = arith.constant 0 : index
    %c0_14 = arith.constant 0 : index
    %7 = vector.load %arg10[%c0_13, %c0_14] : memref<128x16xf32, #tpu.memory_space<vmem>>, vector<128x16xf32>
    %c0_15 = arith.constant 0 : index
    %c0_16 = arith.constant 0 : index
    %8 = vector.load %arg11[%c0_15, %c0_16] : memref<1x16xf32, #tpu.memory_space<vmem>>, vector<1x16xf32>
    %c0_17 = arith.constant 0 : index
    %c0_18 = arith.constant 0 : index
    %9 = vector.load %arg12[%c0_17, %c0_18] : memref<1x16xf32, #tpu.memory_space<vmem>>, vector<1x16xf32>
    %c0_19 = arith.constant 0 : index
    %c0_20 = arith.constant 0 : index
    %10 = vector.load %arg13[%c0_19, %c0_20] : memref<1x16xf32, #tpu.memory_space<vmem>>, vector<1x16xf32>
    %c0_21 = arith.constant 0 : index
    %c0_22 = arith.constant 0 : index
    %11 = vector.load %arg14[%c0_21, %c0_22] : memref<1x16xf32, #tpu.memory_space<vmem>>, vector<1x16xf32>
    %c0_23 = arith.constant 0 : index
    %c0_24 = arith.constant 0 : index
    %12 = vector.load %arg15[%c0_23, %c0_24] : memref<16x128xf32, #tpu.memory_space<vmem>>, vector<16x128xf32>
    %c0_25 = arith.constant 0 : index
    %c0_26 = arith.constant 0 : index
    %13 = vector.load %arg16[%c0_25, %c0_26] : memref<1x128xf32, #tpu.memory_space<vmem>>, vector<1x128xf32>
    %c0_27 = arith.constant 0 : index
    %c0_28 = arith.constant 0 : index
    %14 = vector.load %arg17[%c0_27, %c0_28] : memref<1x128xf32, #tpu.memory_space<vmem>>, vector<1x128xf32>
    %cst = arith.constant 1.000000e+00 : f32
    %15 = vector.broadcast %cst : f32 to vector<1x128xf32>
    %16 = arith.subf %15, %14 : vector<1x128xf32>
    %c0_29 = arith.constant 0 : index
    %c0_30 = arith.constant 0 : index
    %17 = vector.load %arg18[%c0_29, %c0_30] : memref<5x128xf32, #tpu.memory_space<vmem>>, vector<5x128xf32>
    %c0_31 = arith.constant 0 : index
    %c0_32 = arith.constant 0 : index
    %18 = vector.load %arg19[%c0_31, %c0_32] : memref<5x1xf32, #tpu.memory_space<vmem>>, vector<5x1xf32>
    %c0_33 = arith.constant 0 : index
    %c0_34 = arith.constant 0 : index
    %19 = vector.load %arg20[%c0_33, %c0_34] : memref<128x64xf32, #tpu.memory_space<vmem>>, vector<128x64xf32>
    %c0_35 = arith.constant 0 : index
    %c0_36 = arith.constant 0 : index
    %20 = vector.load %arg21[%c0_35, %c0_36] : memref<1x64xf32, #tpu.memory_space<vmem>>, vector<1x64xf32>
    %c0_37 = arith.constant 0 : index
    %c0_38 = arith.constant 0 : index
    %21 = vector.load %arg22[%c0_37, %c0_38] : memref<64x9xf32, #tpu.memory_space<vmem>>, vector<64x9xf32>
    %c0_39 = arith.constant 0 : index
    %c0_40 = arith.constant 0 : index
    %22 = vector.load %arg23[%c0_39, %c0_40] : memref<64x64xf32, #tpu.memory_space<vmem>>, vector<64x64xf32>
    %c0_41 = arith.constant 0 : index
    %c0_42 = arith.constant 0 : index
    %23 = vector.load %arg24[%c0_41, %c0_42] : memref<64x32xf32, #tpu.memory_space<vmem>>, vector<64x32xf32>
    %c0_43 = arith.constant 0 : index
    %c0_44 = arith.constant 0 : index
    %24 = vector.load %arg25[%c0_43, %c0_44] : memref<9x9xf32, #tpu.memory_space<vmem>>, vector<9x9xf32>
    %c0_45 = arith.constant 0 : index
    %c0_46 = arith.constant 0 : index
    %c0_47 = arith.constant 0 : index
    %25 = vector.load %arg1[%c0_45, %c0_46, %c0_47] : memref<1x5x64xf32, #tpu.memory_space<vmem>>, vector<1x5x64xf32>
    %26 = vector.shape_cast %25 : vector<1x5x64xf32> to vector<5x64xf32>
    %cst_48 = arith.constant dense<0.000000e+00> : vector<5x128xf32>
    %27 = tpu.matmul %26, %0, %cst_48 {dimension_numbers = #tpu.dot_dimension_numbers<[1], [0], [0], [1], [0, 0, 1, 1], [], []>} : vector<5x64xf32>, vector<64x128xf32>, vector<5x128xf32> -> vector<5x128xf32>
    %cst_49 = arith.constant 0.000000e+00 : f32
    %28 = vector.broadcast %cst_49 : f32 to vector<5x128xf32>
    %29 = arith.subf %28, %27 : vector<5x128xf32>
    %30 = math.exp %29 : vector<5x128xf32>
    %cst_50 = arith.constant 1.000000e+00 : f32
    %31 = vector.broadcast %cst_50 : f32 to vector<5x128xf32>
    %32 = arith.addf %31, %30 : vector<5x128xf32>
    %cst_51 = arith.constant 1.000000e+00 : f32
    %33 = vector.broadcast %cst_51 : f32 to vector<5x128xf32>
    %34 = arith.divf %33, %32 : vector<5x128xf32>
    %35 = arith.mulf %27, %34 : vector<5x128xf32>
    %cst_52 = arith.constant dense<0.000000e+00> : vector<5x128xf32>
    %36 = tpu.matmul %35, %2, %cst_52 {dimension_numbers = #tpu.dot_dimension_numbers<[1], [0], [0], [1], [0, 0, 1, 1], [], []>} : vector<5x128xf32>, vector<128x128xf32>, vector<5x128xf32> -> vector<5x128xf32>
    %37 = vector.broadcast %3 : vector<1x128xf32> to vector<5x128xf32>
    %38 = arith.addf %36, %37 : vector<5x128xf32>
    %cst_53 = arith.constant 0.000000e+00 : f32
    %39 = vector.broadcast %cst_53 : f32 to vector<5x128xf32>
    %40 = arith.maximumf %38, %39 : vector<5x128xf32>
    %41 = math.absf %38 : vector<5x128xf32>
    %cst_54 = arith.constant 0.000000e+00 : f32
    %42 = vector.broadcast %cst_54 : f32 to vector<5x128xf32>
    %43 = arith.subf %42, %41 : vector<5x128xf32>
    %44 = math.exp %43 : vector<5x128xf32>
    %45 = math.log1p %44 : vector<5x128xf32>
    %46 = arith.addf %40, %45 : vector<5x128xf32>
    %47 = arith.mulf %46, %35 : vector<5x128xf32>
    %cst_55 = arith.constant dense<0.000000e+00> : vector<5x16xf32>
    %48 = tpu.matmul %35, %4, %cst_55 {dimension_numbers = #tpu.dot_dimension_numbers<[1], [0], [0], [1], [0, 0, 1, 1], [], []>} : vector<5x128xf32>, vector<128x16xf32>, vector<5x16xf32> -> vector<5x16xf32>
    %49 = vector.broadcast %8 : vector<1x16xf32> to vector<5x16xf32>
    %50 = arith.addf %48, %49 : vector<5x16xf32>
    %cst_56 = arith.constant dense<0.000000e+00> : vector<5x16xf32>
    %51 = tpu.matmul %35, %5, %cst_56 {dimension_numbers = #tpu.dot_dimension_numbers<[1], [0], [0], [1], [0, 0, 1, 1], [], []>} : vector<5x128xf32>, vector<128x16xf32>, vector<5x16xf32> -> vector<5x16xf32>
    %52 = vector.broadcast %9 : vector<1x16xf32> to vector<5x16xf32>
    %53 = arith.addf %51, %52 : vector<5x16xf32>
    %cst_57 = arith.constant dense<0.000000e+00> : vector<5x16xf32>
    %54 = tpu.matmul %35, %6, %cst_57 {dimension_numbers = #tpu.dot_dimension_numbers<[1], [0], [0], [1], [0, 0, 1, 1], [], []>} : vector<5x128xf32>, vector<128x16xf32>, vector<5x16xf32> -> vector<5x16xf32>
    %55 = vector.broadcast %10 : vector<1x16xf32> to vector<5x16xf32>
    %56 = arith.addf %54, %55 : vector<5x16xf32>
    %cst_58 = arith.constant dense<0.000000e+00> : vector<5x16xf32>
    %57 = tpu.matmul %35, %7, %cst_58 {dimension_numbers = #tpu.dot_dimension_numbers<[1], [0], [0], [1], [0, 0, 1, 1], [], []>} : vector<5x128xf32>, vector<128x16xf32>, vector<5x16xf32> -> vector<5x16xf32>
    %58 = vector.broadcast %11 : vector<1x16xf32> to vector<5x16xf32>
    %59 = arith.addf %57, %58 : vector<5x16xf32>
    %60 = vector.shape_cast %46 : vector<5x128xf32> to vector<5x1x128xf32>
    %61 = vector.shape_cast %12 : vector<16x128xf32> to vector<1x16x128xf32>
    %62 = vector.broadcast %60 : vector<5x1x128xf32> to vector<5x16x128xf32>
    %63 = vector.broadcast %61 : vector<1x16x128xf32> to vector<5x16x128xf32>
    %64 = arith.mulf %62, %63 : vector<5x16x128xf32>
    %65 = math.exp %64 : vector<5x16x128xf32>
    %66 = vector.shape_cast %50 : vector<5x16xf32> to vector<5x16x1xf32>
    %67 = vector.shape_cast %14 : vector<1x128xf32> to vector<1x1x128xf32>
    %68 = vector.broadcast %66 : vector<5x16x1xf32> to vector<5x16x128xf32>
    %69 = vector.broadcast %67 : vector<1x1x128xf32> to vector<5x16x128xf32>
    %70 = arith.mulf %68, %69 : vector<5x16x128xf32>
    %71 = vector.shape_cast %53 : vector<5x16xf32> to vector<5x16x1xf32>
    %72 = vector.shape_cast %16 : vector<1x128xf32> to vector<1x1x128xf32>
    %73 = vector.broadcast %71 : vector<5x16x1xf32> to vector<5x16x128xf32>
    %74 = vector.broadcast %72 : vector<1x1x128xf32> to vector<5x16x128xf32>
    %75 = arith.mulf %73, %74 : vector<5x16x128xf32>
    %76 = arith.addf %70, %75 : vector<5x16x128xf32>
    %77 = vector.shape_cast %47 : vector<5x128xf32> to vector<5x1x128xf32>
    %78 = vector.broadcast %77 : vector<5x1x128xf32> to vector<5x16x128xf32>
    %79 = arith.mulf %78, %76 : vector<5x16x128xf32>
    %80 = vector.shape_cast %56 : vector<5x16xf32> to vector<5x16x1xf32>
    %81 = vector.shape_cast %14 : vector<1x128xf32> to vector<1x1x128xf32>
    %82 = vector.broadcast %80 : vector<5x16x1xf32> to vector<5x16x128xf32>
    %83 = vector.broadcast %81 : vector<1x1x128xf32> to vector<5x16x128xf32>
    %84 = arith.mulf %82, %83 : vector<5x16x128xf32>
    %85 = vector.shape_cast %59 : vector<5x16xf32> to vector<5x16x1xf32>
    %86 = vector.shape_cast %16 : vector<1x128xf32> to vector<1x1x128xf32>
    %87 = vector.broadcast %85 : vector<5x16x1xf32> to vector<5x16x128xf32>
    %88 = vector.broadcast %86 : vector<1x1x128xf32> to vector<5x16x128xf32>
    %89 = arith.mulf %87, %88 : vector<5x16x128xf32>
    %90 = arith.addf %84, %89 : vector<5x16x128xf32>
    %cst_59 = arith.constant 0.000000e+00 : f32
    %91 = vector.broadcast %cst_59 : f32 to vector<16x128xf32>
    %92 = vector.extract_strided_slice %65 {offsets = [0, 0, 0], sizes = [1, 16, 128], strides = [1, 1, 1]} : vector<5x16x128xf32> to vector<1x16x128xf32>
    %93 = vector.shape_cast %92 : vector<1x16x128xf32> to vector<16x128xf32>
    %94 = arith.mulf %93, %91 : vector<16x128xf32>
    %95 = vector.extract_strided_slice %79 {offsets = [0, 0, 0], sizes = [1, 16, 128], strides = [1, 1, 1]} : vector<5x16x128xf32> to vector<1x16x128xf32>
    %96 = vector.shape_cast %95 : vector<1x16x128xf32> to vector<16x128xf32>
    %97 = arith.addf %94, %96 : vector<16x128xf32>
    %c0_60 = arith.constant 0 : index
    %c0_61 = arith.constant 0 : index
    %c0_62 = arith.constant 0 : index
    %c0_63 = arith.constant 0 : index
    %98 = vector.load %arg27[%c0_60, %c0_61, %c0_62, %c0_63] : memref<1x5x16x128xf32, #tpu.memory_space<vmem>>, vector<1x1x16x128xf32>
    %99 = vector.shape_cast %98 : vector<1x1x16x128xf32> to vector<16x128xf32>
    %100 = vector.shape_cast %97 : vector<16x128xf32> to vector<1x1x16x128xf32>
    tpu.vector_store %arg27[%c0_60, %c0_61, %c0_62, %c0_63], %100 {strides = array<i32>} : memref<1x5x16x128xf32, #tpu.memory_space<vmem>>, vector<1x1x16x128xf32>,
    %101 = vector.extract_strided_slice %65 {offsets = [1, 0, 0], sizes = [1, 16, 128], strides = [1, 1, 1]} : vector<5x16x128xf32> to vector<1x16x128xf32>
    %102 = vector.shape_cast %101 : vector<1x16x128xf32> to vector<16x128xf32>
    %103 = arith.mulf %102, %97 : vector<16x128xf32>
    %104 = vector.extract_strided_slice %79 {offsets = [1, 0, 0], sizes = [1, 16, 128], strides = [1, 1, 1]} : vector<5x16x128xf32> to vector<1x16x128xf32>
    %105 = vector.shape_cast %104 : vector<1x16x128xf32> to vector<16x128xf32>
    %106 = arith.addf %103, %105 : vector<16x128xf32>
    %c0_64 = arith.constant 0 : index
    %c1 = arith.constant 1 : index
    %c0_65 = arith.constant 0 : index
    %c0_66 = arith.constant 0 : index
    %107 = vector.load %arg27[%c0_64, %c1, %c0_65, %c0_66] : memref<1x5x16x128xf32, #tpu.memory_space<vmem>>, vector<1x1x16x128xf32>
    %108 = vector.shape_cast %107 : vector<1x1x16x128xf32> to vector<16x128xf32>
    %109 = vector.shape_cast %106 : vector<16x128xf32> to vector<1x1x16x128xf32>
    tpu.vector_store %arg27[%c0_64, %c1, %c0_65, %c0_66], %109 {strides = array<i32>} : memref<1x5x16x128xf32, #tpu.memory_space<vmem>>, vector<1x1x16x128xf32>,
    %110 = vector.extract_strided_slice %65 {offsets = [2, 0, 0], sizes = [1, 16, 128], strides = [1, 1, 1]} : vector<5x16x128xf32> to vector<1x16x128xf32>
    %111 = vector.shape_cast %110 : vector<1x16x128xf32> to vector<16x128xf32>
    %112 = arith.mulf %111, %106 : vector<16x128xf32>
    %113 = vector.extract_strided_slice %79 {offsets = [2, 0, 0], sizes = [1, 16, 128], strides = [1, 1, 1]} : vector<5x16x128xf32> to vector<1x16x128xf32>
    %114 = vector.shape_cast %113 : vector<1x16x128xf32> to vector<16x128xf32>
    %115 = arith.addf %112, %114 : vector<16x128xf32>
    %c0_67 = arith.constant 0 : index
    %c2 = arith.constant 2 : index
    %c0_68 = arith.constant 0 : index
    %c0_69 = arith.constant 0 : index
    %116 = vector.load %arg27[%c0_67, %c2, %c0_68, %c0_69] : memref<1x5x16x128xf32, #tpu.memory_space<vmem>>, vector<1x1x16x128xf32>
    %117 = vector.shape_cast %116 : vector<1x1x16x128xf32> to vector<16x128xf32>
    %118 = vector.shape_cast %115 : vector<16x128xf32> to vector<1x1x16x128xf32>
    tpu.vector_store %arg27[%c0_67, %c2, %c0_68, %c0_69], %118 {strides = array<i32>} : memref<1x5x16x128xf32, #tpu.memory_space<vmem>>, vector<1x1x16x128xf32>,
    %119 = vector.extract_strided_slice %65 {offsets = [3, 0, 0], sizes = [1, 16, 128], strides = [1, 1, 1]} : vector<5x16x128xf32> to vector<1x16x128xf32>
    %120 = vector.shape_cast %119 : vector<1x16x128xf32> to vector<16x128xf32>
    %121 = arith.mulf %120, %115 : vector<16x128xf32>
    %122 = vector.extract_strided_slice %79 {offsets = [3, 0, 0], sizes = [1, 16, 128], strides = [1, 1, 1]} : vector<5x16x128xf32> to vector<1x16x128xf32>
    %123 = vector.shape_cast %122 : vector<1x16x128xf32> to vector<16x128xf32>
    %124 = arith.addf %121, %123 : vector<16x128xf32>
    %c0_70 = arith.constant 0 : index
    %c3 = arith.constant 3 : index
    %c0_71 = arith.constant 0 : index
    %c0_72 = arith.constant 0 : index
    %125 = vector.load %arg27[%c0_70, %c3, %c0_71, %c0_72] : memref<1x5x16x128xf32, #tpu.memory_space<vmem>>, vector<1x1x16x128xf32>
    %126 = vector.shape_cast %125 : vector<1x1x16x128xf32> to vector<16x128xf32>
    %127 = vector.shape_cast %124 : vector<16x128xf32> to vector<1x1x16x128xf32>
    tpu.vector_store %arg27[%c0_70, %c3, %c0_71, %c0_72], %127 {strides = array<i32>} : memref<1x5x16x128xf32, #tpu.memory_space<vmem>>, vector<1x1x16x128xf32>,
    %128 = vector.extract_strided_slice %65 {offsets = [4, 0, 0], sizes = [1, 16, 128], strides = [1, 1, 1]} : vector<5x16x128xf32> to vector<1x16x128xf32>
    %129 = vector.shape_cast %128 : vector<1x16x128xf32> to vector<16x128xf32>
    %130 = arith.mulf %129, %124 : vector<16x128xf32>
    %131 = vector.extract_strided_slice %79 {offsets = [4, 0, 0], sizes = [1, 16, 128], strides = [1, 1, 1]} : vector<5x16x128xf32> to vector<1x16x128xf32>
    %132 = vector.shape_cast %131 : vector<1x16x128xf32> to vector<16x128xf32>
    %133 = arith.addf %130, %132 : vector<16x128xf32>
    %c0_73 = arith.constant 0 : index
    %c4 = arith.constant 4 : index
    %c0_74 = arith.constant 0 : index
    %c0_75 = arith.constant 0 : index
    %134 = vector.load %arg27[%c0_73, %c4, %c0_74, %c0_75] : memref<1x5x16x128xf32, #tpu.memory_space<vmem>>, vector<1x1x16x128xf32>
    %135 = vector.shape_cast %134 : vector<1x1x16x128xf32> to vector<16x128xf32>
    %136 = vector.shape_cast %133 : vector<16x128xf32> to vector<1x1x16x128xf32>
    tpu.vector_store %arg27[%c0_73, %c4, %c0_74, %c0_75], %136 {strides = array<i32>} : memref<1x5x16x128xf32, #tpu.memory_space<vmem>>, vector<1x1x16x128xf32>,
    %c0_76 = arith.constant 0 : index
    %c0_77 = arith.constant 0 : index
    %c0_78 = arith.constant 0 : index
    %c0_79 = arith.constant 0 : index
    %137 = vector.load %arg27[%c0_76, %c0_77, %c0_78, %c0_79] : memref<1x5x16x128xf32, #tpu.memory_space<vmem>>, vector<1x5x16x128xf32>
    %138 = vector.shape_cast %137 : vector<1x5x16x128xf32> to vector<5x16x128xf32>
    %139 = arith.mulf %138, %90 : vector<5x16x128xf32>
    %cst_80 = arith.constant dense<0.000000e+00> : vector<5x128xf32>
    %140 = vector.multi_reduction <add>, %139, %cst_80 [1] : vector<5x16x128xf32> to vector<5x128xf32>
    %141 = vector.broadcast %13 : vector<1x128xf32> to vector<5x128xf32>
    %142 = arith.mulf %141, %35 : vector<5x128xf32>
    %143 = arith.addf %140, %142 : vector<5x128xf32>
    %144 = arith.mulf %143, %17 : vector<5x128xf32>
    %cst_81 = arith.constant dense<0.000000e+00> : vector<5x64xf32>
    %145 = tpu.matmul %144, %19, %cst_81 {dimension_numbers = #tpu.dot_dimension_numbers<[1], [0], [0], [1], [0, 0, 1, 1], [], []>} : vector<5x128xf32>, vector<128x64xf32>, vector<5x64xf32> -> vector<5x64xf32>
    %146 = vector.broadcast %20 : vector<1x64xf32> to vector<5x64xf32>
    %147 = arith.addf %145, %146 : vector<5x64xf32>
    %148 = vector.broadcast %18 : vector<5x1xf32> to vector<5x64xf32>
    %149 = arith.mulf %147, %148 : vector<5x64xf32>
    %cst_82 = arith.constant dense<0.000000e+00> : vector<5x9xf32>
    %150 = tpu.matmul %149, %21, %cst_82 {dimension_numbers = #tpu.dot_dimension_numbers<[1], [0], [0], [1], [0, 0, 1, 1], [], []>} : vector<5x64xf32>, vector<64x9xf32>, vector<5x9xf32> -> vector<5x9xf32>
    %cst_83 = arith.constant dense<0.000000e+00> : vector<5x64xf32>
    %151 = tpu.matmul %149, %22, %cst_83 {dimension_numbers = #tpu.dot_dimension_numbers<[1], [0], [0], [1], [0, 0, 1, 1], [], []>} : vector<5x64xf32>, vector<64x64xf32>, vector<5x64xf32> -> vector<5x64xf32>
    %cst_84 = arith.constant dense<0xFF800000> : vector<9xf32>
    %152 = vector.multi_reduction <maximumf>, %150, %cst_84 [0] : vector<5x9xf32> to vector<9xf32>
    %153 = vector.shape_cast %152 : vector<9xf32> to vector<1x9xf32>
    %154 = vector.broadcast %153 : vector<1x9xf32> to vector<5x9xf32>
    %155 = arith.subf %150, %154 : vector<5x9xf32>
    %156 = math.exp %155 : vector<5x9xf32>
    %cst_85 = arith.constant dense<0.000000e+00> : vector<9xf32>
    %157 = vector.multi_reduction <add>, %156, %cst_85 [0] : vector<5x9xf32> to vector<9xf32>
    %158 = vector.shape_cast %157 : vector<9xf32> to vector<1x9xf32>
    %159 = tpu.reciprocal %158 {approx = true} : vector<1x9xf32> -> vector<1x9xf32>
    %160 = vector.broadcast %159 : vector<1x9xf32> to vector<5x9xf32>
    %161 = arith.mulf %156, %160 : vector<5x9xf32>
    %cst_86 = arith.constant dense<0.000000e+00> : vector<9x64xf32>
    %162 = tpu.matmul %161, %151, %cst_86 {dimension_numbers = #tpu.dot_dimension_numbers<[0], [0], [1], [1], [0, 1, 1, 1], [], []>} : vector<5x9xf32>, vector<5x64xf32>, vector<9x64xf32> -> vector<9x64xf32>
    %c0_87 = arith.constant 0 : index
    %c0_88 = arith.constant 0 : index
    %c0_89 = arith.constant 0 : index
    %163 = vector.load %arg2[%c0_87, %c0_88, %c0_89] : memref<1x9x32xf32, #tpu.memory_space<vmem>>, vector<1x9x32xf32>
    %164 = vector.shape_cast %163 : vector<1x9x32xf32> to vector<9x32xf32>
    %cst_90 = arith.constant dense<0.000000e+00> : vector<9x64xf32>
    %165 = tpu.matmul %164, %1, %cst_90 {dimension_numbers = #tpu.dot_dimension_numbers<[1], [0], [0], [1], [0, 0, 1, 1], [], []>} : vector<9x32xf32>, vector<32x64xf32>, vector<9x64xf32> -> vector<9x64xf32>
    %cst_91 = arith.constant dense<0.000000e+00> : vector<9x64xf32>
    %166 = tpu.matmul %24, %165, %cst_91 {dimension_numbers = #tpu.dot_dimension_numbers<[1], [0], [0], [1], [0, 0, 1, 1], [], []>} : vector<9x9xf32>, vector<9x64xf32>, vector<9x64xf32> -> vector<9x64xf32>
    %cst_92 = arith.constant 0.000000e+00 : f32
    %167 = vector.broadcast %cst_92 : f32 to vector<9x64xf32>
    %168 = arith.subf %167, %166 : vector<9x64xf32>
    %169 = math.exp %168 : vector<9x64xf32>
    %cst_93 = arith.constant 1.000000e+00 : f32
    %170 = vector.broadcast %cst_93 : f32 to vector<9x64xf32>
    %171 = arith.addf %170, %169 : vector<9x64xf32>
    %cst_94 = arith.constant 1.000000e+00 : f32
    %172 = vector.broadcast %cst_94 : f32 to vector<9x64xf32>
    %173 = arith.divf %172, %171 : vector<9x64xf32>
    %174 = arith.mulf %166, %173 : vector<9x64xf32>
    %175 = arith.mulf %162, %174 : vector<9x64xf32>
    %cst_95 = arith.constant dense<0.000000e+00> : vector<9x32xf32>
    %176 = tpu.matmul %175, %23, %cst_95 {dimension_numbers = #tpu.dot_dimension_numbers<[1], [0], [0], [1], [0, 0, 1, 1], [], []>} : vector<9x64xf32>, vector<64x32xf32>, vector<9x32xf32> -> vector<9x32xf32>
    %c0_96 = arith.constant 0 : index
    %c0_97 = arith.constant 0 : index
    %c0_98 = arith.constant 0 : index
    %177 = vector.load %arg26[%c0_96, %c0_97, %c0_98] : memref<1x9x32xf32, #tpu.memory_space<vmem>>, vector<1x9x32xf32>
    %178 = vector.shape_cast %177 : vector<1x9x32xf32> to vector<9x32xf32>
    %179 = vector.shape_cast %176 : vector<9x32xf32> to vector<1x9x32xf32>
    tpu.vector_store %arg26[%c0_96, %c0_97, %c0_98], %179 {strides = array<i32>} : memref<1x9x32xf32, #tpu.memory_space<vmem>>, vector<1x9x32xf32>,
    return
  }
  func.func @transform_0(%arg0: i32) -> (i32, i32, i32) {
    %c0_i32 = arith.constant 0 : i32
    %c0_i32_0 = arith.constant 0 : i32
    %c0_i32_1 = arith.constant 0 : i32
    return %arg0, %c0_i32, %c0_i32_0 : i32, i32, i32
  }
  func.func @transform_1(%arg0: i32) -> (i32, i32, i32) {
    %c0_i32 = arith.constant 0 : i32
    %c0_i32_0 = arith.constant 0 : i32
    %c0_i32_1 = arith.constant 0 : i32
    return %arg0, %c0_i32, %c0_i32_0 : i32, i32, i32
  }
  func.func @transform_2(%arg0: i32) -> (i32, i32) {
    %c0_i32 = arith.constant 0 : i32
    %c0_i32_0 = arith.constant 0 : i32
    %c0_i32_1 = arith.constant 0 : i32
    return %c0_i32, %c0_i32_0 : i32, i32
  }
  func.func @transform_3(%arg0: i32) -> (i32, i32) {
    %c0_i32 = arith.constant 0 : i32
    %c0_i32_0 = arith.constant 0 : i32
    %c0_i32_1 = arith.constant 0 : i32
    return %c0_i32, %c0_i32_0 : i32, i32
  }
  func.func @transform_4(%arg0: i32) -> (i32, i32) {
    %c0_i32 = arith.constant 0 : i32
    %c0_i32_0 = arith.constant 0 : i32
    %c0_i32_1 = arith.constant 0 : i32
    return %c0_i32, %c0_i32_0 : i32, i32
  }
  func.func @transform_5(%arg0: i32) -> (i32, i32) {
    %c0_i32 = arith.constant 0 : i32
    %c0_i32_0 = arith.constant 0 : i32
    %c0_i32_1 = arith.constant 0 : i32
    return %c0_i32, %c0_i32_0 : i32, i32
  }
  func.func @transform_6(%arg0: i32) -> (i32, i32) {
    %c0_i32 = arith.constant 0 : i32
    %c0_i32_0 = arith.constant 0 : i32
    %c0_i32_1 = arith.constant 0 : i32
    return %c0_i32, %c0_i32_0 : i32, i32
  }
  func.func @transform_7(%arg0: i32) -> (i32, i32) {
    %c0_i32 = arith.constant 0 : i32
    %c0_i32_0 = arith.constant 0 : i32
    %c0_i32_1 = arith.constant 0 : i32
    return %c0_i32, %c0_i32_0 : i32, i32
  }
  func.func @transform_8(%arg0: i32) -> (i32, i32) {
    %c0_i32 = arith.constant 0 : i32
    %c0_i32_0 = arith.constant 0 : i32
    %c0_i32_1 = arith.constant 0 : i32
    return %c0_i32, %c0_i32_0 : i32, i32
  }
  func.func @transform_9(%arg0: i32) -> (i32, i32) {
    %c0_i32 = arith.constant 0 : i32
    %c0_i32_0 = arith.constant 0 : i32
    %c0_i32_1 = arith.constant 0 : i32
    return %c0_i32, %c0_i32_0 : i32, i32
  }
  func.func @transform_10(%arg0: i32) -> (i32, i32) {
    %c0_i32 = arith.constant 0 : i32
    %c0_i32_0 = arith.constant 0 : i32
    %c0_i32_1 = arith.constant 0 : i32
    return %c0_i32, %c0_i32_0 : i32, i32
  }
  func.func @transform_11(%arg0: i32) -> (i32, i32) {
    %c0_i32 = arith.constant 0 : i32
    %c0_i32_0 = arith.constant 0 : i32
    %c0_i32_1 = arith.constant 0 : i32
    return %c0_i32, %c0_i32_0 : i32, i32
  }
  func.func @transform_12(%arg0: i32) -> (i32, i32) {
    %c0_i32 = arith.constant 0 : i32
    %c0_i32_0 = arith.constant 0 : i32
    %c0_i32_1 = arith.constant 0 : i32
    return %c0_i32, %c0_i32_0 : i32, i32
  }
  func.func @transform_13(%arg0: i32) -> (i32, i32) {
    %c0_i32 = arith.constant 0 : i32
    %c0_i32_0 = arith.constant 0 : i32
    %c0_i32_1 = arith.constant 0 : i32
    return %c0_i32, %c0_i32_0 : i32, i32
  }
  func.func @transform_14(%arg0: i32) -> (i32, i32) {
    %c0_i32 = arith.constant 0 : i32
    %c0_i32_0 = arith.constant 0 : i32
    %c0_i32_1 = arith.constant 0 : i32
    return %c0_i32, %c0_i32_0 : i32, i32
  }
  func.func @transform_15(%arg0: i32) -> (i32, i32) {
    %c0_i32 = arith.constant 0 : i32
    %c0_i32_0 = arith.constant 0 : i32
    %c0_i32_1 = arith.constant 0 : i32
    return %c0_i32, %c0_i32_0 : i32, i32
  }
  func.func @transform_16(%arg0: i32) -> (i32, i32) {
    %c0_i32 = arith.constant 0 : i32
    %c0_i32_0 = arith.constant 0 : i32
    %c0_i32_1 = arith.constant 0 : i32
    return %c0_i32, %c0_i32_0 : i32, i32
  }
  func.func @transform_17(%arg0: i32) -> (i32, i32) {
    %c0_i32 = arith.constant 0 : i32
    %c0_i32_0 = arith.constant 0 : i32
    %c0_i32_1 = arith.constant 0 : i32
    return %c0_i32, %c0_i32_0 : i32, i32
  }
  func.func @transform_18(%arg0: i32) -> (i32, i32) {
    %c0_i32 = arith.constant 0 : i32
    %c0_i32_0 = arith.constant 0 : i32
    %c0_i32_1 = arith.constant 0 : i32
    return %c0_i32, %c0_i32_0 : i32, i32
  }
  func.func @transform_19(%arg0: i32) -> (i32, i32) {
    %c0_i32 = arith.constant 0 : i32
    %c0_i32_0 = arith.constant 0 : i32
    %c0_i32_1 = arith.constant 0 : i32
    return %c0_i32, %c0_i32_0 : i32, i32
  }
  func.func @transform_20(%arg0: i32) -> (i32, i32) {
    %c0_i32 = arith.constant 0 : i32
    %c0_i32_0 = arith.constant 0 : i32
    %c0_i32_1 = arith.constant 0 : i32
    return %c0_i32, %c0_i32_0 : i32, i32
  }
  func.func @transform_21(%arg0: i32) -> (i32, i32) {
    %c0_i32 = arith.constant 0 : i32
    %c0_i32_0 = arith.constant 0 : i32
    %c0_i32_1 = arith.constant 0 : i32
    return %c0_i32, %c0_i32_0 : i32, i32
  }
  func.func @transform_22(%arg0: i32) -> (i32, i32) {
    %c0_i32 = arith.constant 0 : i32
    %c0_i32_0 = arith.constant 0 : i32
    %c0_i32_1 = arith.constant 0 : i32
    return %c0_i32, %c0_i32_0 : i32, i32
  }
  func.func @transform_23(%arg0: i32) -> (i32, i32) {
    %c0_i32 = arith.constant 0 : i32
    %c0_i32_0 = arith.constant 0 : i32
    %c0_i32_1 = arith.constant 0 : i32
    return %c0_i32, %c0_i32_0 : i32, i32
  }
  func.func @transform_24(%arg0: i32) -> (i32, i32) {
    %c0_i32 = arith.constant 0 : i32
    %c0_i32_0 = arith.constant 0 : i32
    %c0_i32_1 = arith.constant 0 : i32
    return %c0_i32, %c0_i32_0 : i32, i32
  }
  func.func @transform_25(%arg0: i32) -> (i32, i32, i32) {
    %c0_i32 = arith.constant 0 : i32
    %c0_i32_0 = arith.constant 0 : i32
    %c0_i32_1 = arith.constant 0 : i32
    return %arg0, %c0_i32, %c0_i32_0 : i32, i32, i32
  }
}

</mosaic_0001>

<llo_original>
// kernel: tpu_custom_call.1
$region0: #{tpu_custom_call.1}
  #allocation0 [shape = 'u32[]', space=smem, size = 0x4, offset = 0x4, fixed_abs, tag = 'smem constant byte address 0x4 - core index']
  #allocation1 [shape = 'u32[144,128]{1,0:T(1,128)}', space=vmem, size = 0x12000, scoped, tag = 'internal scratch']
  #allocation2 [shape = 'f32[1,5,16,128]{3,2,1,0:T(8,128)}', space=vmem, size = 0xa000, scoped, tag = 'scratch operand']
  %s0 = inlined_call_operand.vmem [shape: f32[2,5,64], index: 0, kind: input, shape index: {}]
  %s1 = inlined_call_operand.vmem [shape: f32[2,9,32], index: 1, kind: input, shape index: {}]
  %s2 = inlined_call_operand.vmem [shape: f32[64,128], index: 2, kind: input, shape index: {}]
  %s3 = inlined_call_operand.vmem [shape: f32[32,64], index: 3, kind: input, shape index: {}]
  %s4 = inlined_call_operand.vmem [shape: f32[128,128], index: 4, kind: input, shape index: {}]
  %s5 = inlined_call_operand.vmem [shape: f32[1,128], index: 5, kind: input, shape index: {}]
  %s6 = inlined_call_operand.vmem [shape: f32[128,16], index: 6, kind: input, shape index: {}]
  %s7 = inlined_call_operand.vmem [shape: f32[128,16], index: 7, kind: input, shape index: {}]
  %s8 = inlined_call_operand.vmem [shape: f32[128,16], index: 8, kind: input, shape index: {}]
  %s9 = inlined_call_operand.vmem [shape: f32[128,16], index: 9, kind: input, shape index: {}]
  %s10 = inlined_call_operand.vmem [shape: f32[1,16], index: 10, kind: input, shape index: {}]
  %s11 = inlined_call_operand.vmem [shape: f32[1,16], index: 11, kind: input, shape index: {}]
  %s12 = inlined_call_operand.vmem [shape: f32[1,16], index: 12, kind: input, shape index: {}]
  %s13 = inlined_call_operand.vmem [shape: f32[1,16], index: 13, kind: input, shape index: {}]
  %s14 = inlined_call_operand.vmem [shape: f32[16,128], index: 14, kind: input, shape index: {}]
  %s15 = inlined_call_operand.vmem [shape: f32[1,128], index: 15, kind: input, shape index: {}]
  %s16 = inlined_call_operand.vmem [shape: f32[1,128], index: 16, kind: input, shape index: {}]
  %s17 = inlined_call_operand.vmem [shape: f32[5,128], index: 17, kind: input, shape index: {}]
  %s18 = inlined_call_operand.vmem [shape: f32[5,1], index: 18, kind: input, shape index: {}]
  %s19 = inlined_call_operand.vmem [shape: f32[128,64], index: 19, kind: input, shape index: {}]
  %s20 = inlined_call_operand.vmem [shape: f32[1,64], index: 20, kind: input, shape index: {}]
  %s21 = inlined_call_operand.vmem [shape: f32[64,9], index: 21, kind: input, shape index: {}]
  %s22 = inlined_call_operand.vmem [shape: f32[64,64], index: 22, kind: input, shape index: {}]
  %s23 = inlined_call_operand.vmem [shape: f32[64,32], index: 23, kind: input, shape index: {}]
  %s24 = inlined_call_operand.vmem [shape: f32[9,9], index: 24, kind: input, shape index: {}]
  %s25 = inlined_call_operand.vmem [shape: f32[2,9,32], index: 25, kind: output, shape index: {}]
  %s26 = sld [smem:[#allocation0]]
  $region133: #{tpu_custom_call.1} parent=0
    _
  %s28 = ssub.s32 1, %s26
  %s29 = scalar_select 0, %s28, %s26
  loop: start=0, step=1, limit=4
  $region2: #{tpu_custom_call.1} parent=0 // loop_pre_header
    _
  $region3: #{tpu_custom_call.1} parent=0 // loop_header
    %s31 = sphi 0, %s35
    %p32 = scmp.ge.s32.totalorder %s31, 4
    %s41 = sphi 0, %s43
    %s44 = sphi 0, %s41
    %s45 = sphi 0, %s44
    %s61 = sphi 0, %s45
    %s67 = sphi 0, %s69
    %s70 = sphi 0, %s67
    %s71 = sphi 0, %s70
    %s87 = sphi 0, %s71
    %s91 = sphi 0, %s91
    %s93 = sphi 0, %s91
    %s94 = sphi 0, %s93
    %s108 = sphi 0, %s94
    %s112 = sphi 0, %s112
    %s114 = sphi 0, %s112
    %s115 = sphi 0, %s114
    %s129 = sphi 0, %s115
    %s133 = sphi 0, %s133
    %s135 = sphi 0, %s133
    %s136 = sphi 0, %s135
    %s150 = sphi 0, %s136
    %s154 = sphi 0, %s154
    %s156 = sphi 0, %s154
    %s157 = sphi 0, %s156
    %s171 = sphi 0, %s157
    %s175 = sphi 0, %s175
    %s177 = sphi 0, %s175
    %s178 = sphi 0, %s177
    %s192 = sphi 0, %s178
    %s196 = sphi 0, %s196
    %s198 = sphi 0, %s196
    %s199 = sphi 0, %s198
    %s213 = sphi 0, %s199
    %s217 = sphi 0, %s217
    %s219 = sphi 0, %s217
    %s220 = sphi 0, %s219
    %s234 = sphi 0, %s220
    %s238 = sphi 0, %s238
    %s240 = sphi 0, %s238
    %s241 = sphi 0, %s240
    %s255 = sphi 0, %s241
    %s259 = sphi 0, %s259
    %s261 = sphi 0, %s259
    %s262 = sphi 0, %s261
    %s276 = sphi 0, %s262
    %s280 = sphi 0, %s280
    %s282 = sphi 0, %s280
    %s283 = sphi 0, %s282
    %s297 = sphi 0, %s283
    %s301 = sphi 0, %s301
    %s303 = sphi 0, %s301
    %s304 = sphi 0, %s303
    %s318 = sphi 0, %s304
    %s322 = sphi 0, %s322
    %s324 = sphi 0, %s322
    %s325 = sphi 0, %s324
    %s339 = sphi 0, %s325
    %s343 = sphi 0, %s343
    %s345 = sphi 0, %s343
    %s346 = sphi 0, %s345
    %s360 = sphi 0, %s346
    %s364 = sphi 0, %s364
    %s366 = sphi 0, %s364
    %s367 = sphi 0, %s366
    %s381 = sphi 0, %s367
    %s385 = sphi 0, %s385
    %s387 = sphi 0, %s385
    %s388 = sphi 0, %s387
    %s402 = sphi 0, %s388
    %s406 = sphi 0, %s406
    %s408 = sphi 0, %s406
    %s409 = sphi 0, %s408
    %s423 = sphi 0, %s409
    %s427 = sphi 0, %s427
    %s429 = sphi 0, %s427
    %s430 = sphi 0, %s429
    %s444 = sphi 0, %s430
    %s448 = sphi 0, %s448
    %s450 = sphi 0, %s448
    %s451 = sphi 0, %s450
    %s465 = sphi 0, %s451
    %s469 = sphi 0, %s469
    %s471 = sphi 0, %s469
    %s472 = sphi 0, %s471
    %s486 = sphi 0, %s472
    %s490 = sphi 0, %s490
    %s492 = sphi 0, %s490
    %s493 = sphi 0, %s492
    %s507 = sphi 0, %s493
    %s511 = sphi 0, %s511
    %s513 = sphi 0, %s511
    %s514 = sphi 0, %s513
    %s528 = sphi 0, %s514
    %s532 = sphi 0, %s532
    %s534 = sphi 0, %s532
    %s535 = sphi 0, %s534
    %s549 = sphi 0, %s535
    %s553 = sphi 0, %s553
    %s555 = sphi 0, %s553
    %s556 = sphi 0, %s555
    %s570 = sphi 0, %s556
    %s576 = sphi 0, %s578
    %s579 = sphi 0, %s576
    %s580 = sphi 0, %s579
    %s596 = sphi 0, %s580
  $region4: #{tpu_custom_call.1} parent=0 // loop_header_branch
    %34 = sbr.rel (%p32) target = $region8
  $region5: #{tpu_custom_call.1} parent=0 // loop_body
    %s36 = ssub.s32 %s31, 1
    %s37 = ssub.s32 %s31, 2
    %s38 = sadd.s32 %s31, 1
    %s39 = ssub.s32 %s31, %s38
    %p40 = scmp.eq.s32.totalorder %s39, 0
    %s42 = sadd.s32 %s41, 1
    %s43 = scalar_select %p40, %s41, %s42
    %p46 = pneg %p40
    %p47 = scmp.eq.s32.totalorder %s31, 1
    %p48 = por %p46, %p47
    %p49 = scmp.ne.s32.totalorder %s41, %s44
    %p50 = scmp.eq.s32.totalorder %s31, 0
    %p51 = por %p49, %p50
    %p52 = scmp.ne.s32.totalorder %s41, %s44
    %p53 = scmp.eq.s32.totalorder %s36, 1
    %p54 = por %p52, %p53
    %p55 = scmp.ne.s32.totalorder %s44, %s45
    %p56 = scmp.eq.s32.totalorder %s36, 0
    %p57 = por %p55, %p56
    %p58 = scmp.ne.s32.totalorder %s44, %s45
    %p59 = scmp.eq.s32.totalorder %s37, 1
    %p60 = por %p58, %p59
    %p62 = scmp.ne.s32.totalorder %s45, %s61
    %p63 = scmp.eq.s32.totalorder %s37, 0
    %p64 = por %p62, %p63
    %s65 = ssub.s32 %s31, %s38
    %p66 = scmp.eq.s32.totalorder %s65, 0
    %s68 = sadd.s32 %s67, 1
    %s69 = scalar_select %p66, %s67, %s68
    %p72 = pneg %p66
    %p73 = scmp.eq.s32.totalorder %s31, 1
    %p74 = por %p72, %p73
    %p75 = scmp.ne.s32.totalorder %s67, %s70
    %p76 = scmp.eq.s32.totalorder %s31, 0
    %p77 = por %p75, %p76
    %p78 = scmp.ne.s32.totalorder %s67, %s70
    %p79 = scmp.eq.s32.totalorder %s36, 1
    %p80 = por %p78, %p79
    %p81 = scmp.ne.s32.totalorder %s70, %s71
    %p82 = scmp.eq.s32.totalorder %s36, 0
    %p83 = por %p81, %p82
    %p84 = scmp.ne.s32.totalorder %s70, %s71
    %p85 = scmp.eq.s32.totalorder %s37, 1
    %p86 = por %p84, %p85
    %p88 = scmp.ne.s32.totalorder %s71, %s87
    %p89 = scmp.eq.s32.totalorder %s37, 0
    %p90 = por %p88, %p89
    %s92 = sadd.s32 %s91, 1
    %p95 = scmp.eq.s32.totalorder %s31, 1
    %p96 = scmp.ne.s32.totalorder %s91, %s93
    %p97 = scmp.eq.s32.totalorder %s31, 0
    %p98 = por %p96, %p97
    %p99 = scmp.ne.s32.totalorder %s91, %s93
    %p100 = scmp.eq.s32.totalorder %s36, 1
    %p101 = por %p99, %p100
    %p102 = scmp.ne.s32.totalorder %s93, %s94
    %p103 = scmp.eq.s32.totalorder %s36, 0
    %p104 = por %p102, %p103
    %p105 = scmp.ne.s32.totalorder %s93, %s94
    %p106 = scmp.eq.s32.totalorder %s37, 1
    %p107 = por %p105, %p106
    %p109 = scmp.ne.s32.totalorder %s94, %s108
    %p110 = scmp.eq.s32.totalorder %s37, 0
    %p111 = por %p109, %p110
    %s113 = sadd.s32 %s112, 1
    %p116 = scmp.eq.s32.totalorder %s31, 1
    %p117 = scmp.ne.s32.totalorder %s112, %s114
    %p118 = scmp.eq.s32.totalorder %s31, 0
    %p119 = por %p117, %p118
    %p120 = scmp.ne.s32.totalorder %s112, %s114
    %p121 = scmp.eq.s32.totalorder %s36, 1
    %p122 = por %p120, %p121
    %p123 = scmp.ne.s32.totalorder %s114, %s115
    %p124 = scmp.eq.s32.totalorder %s36, 0
    %p125 = por %p123, %p124
    %p126 = scmp.ne.s32.totalorder %s114, %s115
    %p127 = scmp.eq.s32.totalorder %s37, 1
    %p128 = por %p126, %p127
    %p130 = scmp.ne.s32.totalorder %s115, %s129
    %p131 = scmp.eq.s32.totalorder %s37, 0
    %p132 = por %p130, %p131
    %s134 = sadd.s32 %s133, 1
    %p137 = scmp.eq.s32.totalorder %s31, 1
    %p138 = scmp.ne.s32.totalorder %s133, %s135
    %p139 = scmp.eq.s32.totalorder %s31, 0
    %p140 = por %p138, %p139
    %p141 = scmp.ne.s32.totalorder %s133, %s135
    %p142 = scmp.eq.s32.totalorder %s36, 1
    %p143 = por %p141, %p142
    %p144 = scmp.ne.s32.totalorder %s135, %s136
    %p145 = scmp.eq.s32.totalorder %s36, 0
    %p146 = por %p144, %p145
    %p147 = scmp.ne.s32.totalorder %s135, %s136
    %p148 = scmp.eq.s32.totalorder %s37, 1
    %p149 = por %p147, %p148
    %p151 = scmp.ne.s32.totalorder %s136, %s150
    %p152 = scmp.eq.s32.totalorder %s37, 0
    %p153 = por %p151, %p152
    %s155 = sadd.s32 %s154, 1
    %p158 = scmp.eq.s32.totalorder %s31, 1
    %p159 = scmp.ne.s32.totalorder %s154, %s156
    %p160 = scmp.eq.s32.totalorder %s31, 0
    %p161 = por %p159, %p160
    %p162 = scmp.ne.s32.totalorder %s154, %s156
    %p163 = scmp.eq.s32.totalorder %s36, 1
    %p164 = por %p162, %p163
    %p165 = scmp.ne.s32.totalorder %s156, %s157
    %p166 = scmp.eq.s32.totalorder %s36, 0
    %p167 = por %p165, %p166
    %p168 = scmp.ne.s32.totalorder %s156, %s157
    %p169 = scmp.eq.s32.totalorder %s37, 1
    %p170 = por %p168, %p169
    %p172 = scmp.ne.s32.totalorder %s157, %s171
    %p173 = scmp.eq.s32.totalorder %s37, 0
    %p174 = por %p172, %p173
    %s176 = sadd.s32 %s175, 1
    %p179 = scmp.eq.s32.totalorder %s31, 1
    %p180 = scmp.ne.s32.totalorder %s175, %s177
    %p181 = scmp.eq.s32.totalorder %s31, 0
    %p182 = por %p180, %p181
    %p183 = scmp.ne.s32.totalorder %s175, %s177
    %p184 = scmp.eq.s32.totalorder %s36, 1
    %p185 = por %p183, %p184
    %p186 = scmp.ne.s32.totalorder %s177, %s178
    %p187 = scmp.eq.s32.totalorder %s36, 0
    %p188 = por %p186, %p187
    %p189 = scmp.ne.s32.totalorder %s177, %s178
    %p190 = scmp.eq.s32.totalorder %s37, 1
    %p191 = por %p189, %p190
    %p193 = scmp.ne.s32.totalorder %s178, %s192
    %p194 = scmp.eq.s32.totalorder %s37, 0
    %p195 = por %p193, %p194
    %s197 = sadd.s32 %s196, 1
    %p200 = scmp.eq.s32.totalorder %s31, 1
    %p201 = scmp.ne.s32.totalorder %s196, %s198
    %p202 = scmp.eq.s32.totalorder %s31, 0
    %p203 = por %p201, %p202
    %p204 = scmp.ne.s32.totalorder %s196, %s198
    %p205 = scmp.eq.s32.totalorder %s36, 1
    %p206 = por %p204, %p205
    %p207 = scmp.ne.s32.totalorder %s198, %s199
    %p208 = scmp.eq.s32.totalorder %s36, 0
    %p209 = por %p207, %p208
    %p210 = scmp.ne.s32.totalorder %s198, %s199
    %p211 = scmp.eq.s32.totalorder %s37, 1
    %p212 = por %p210, %p211
    %p214 = scmp.ne.s32.totalorder %s199, %s213
    %p215 = scmp.eq.s32.totalorder %s37, 0
    %p216 = por %p214, %p215
    %s218 = sadd.s32 %s217, 1
    %p221 = scmp.eq.s32.totalorder %s31, 1
    %p222 = scmp.ne.s32.totalorder %s217, %s219
    %p223 = scmp.eq.s32.totalorder %s31, 0
    %p224 = por %p222, %p223
    %p225 = scmp.ne.s32.totalorder %s217, %s219
    %p226 = scmp.eq.s32.totalorder %s36, 1
    %p227 = por %p225, %p226
    %p228 = scmp.ne.s32.totalorder %s219, %s220
    %p229 = scmp.eq.s32.totalorder %s36, 0
    %p230 = por %p228, %p229
    %p231 = scmp.ne.s32.totalorder %s219, %s220
    %p232 = scmp.eq.s32.totalorder %s37, 1
    %p233 = por %p231, %p232
    %p235 = scmp.ne.s32.totalorder %s220, %s234
    %p236 = scmp.eq.s32.totalorder %s37, 0
    %p237 = por %p235, %p236
    %s239 = sadd.s32 %s238, 1
    %p242 = scmp.eq.s32.totalorder %s31, 1
    %p243 = scmp.ne.s32.totalorder %s238, %s240
    %p244 = scmp.eq.s32.totalorder %s31, 0
    %p245 = por %p243, %p244
    %p246 = scmp.ne.s32.totalorder %s238, %s240
    %p247 = scmp.eq.s32.totalorder %s36, 1
    %p248 = por %p246, %p247
    %p249 = scmp.ne.s32.totalorder %s240, %s241
    %p250 = scmp.eq.s32.totalorder %s36, 0
    %p251 = por %p249, %p250
    %p252 = scmp.ne.s32.totalorder %s240, %s241
    %p253 = scmp.eq.s32.totalorder %s37, 1
    %p254 = por %p252, %p253
    %p256 = scmp.ne.s32.totalorder %s241, %s255
    %p257 = scmp.eq.s32.totalorder %s37, 0
    %p258 = por %p256, %p257
    %s260 = sadd.s32 %s259, 1
    %p263 = scmp.eq.s32.totalorder %s31, 1
    %p264 = scmp.ne.s32.totalorder %s259, %s261
    %p265 = scmp.eq.s32.totalorder %s31, 0
    %p266 = por %p264, %p265
    %p267 = scmp.ne.s32.totalorder %s259, %s261
    %p268 = scmp.eq.s32.totalorder %s36, 1
    %p269 = por %p267, %p268
    %p270 = scmp.ne.s32.totalorder %s261, %s262
    %p271 = scmp.eq.s32.totalorder %s36, 0
    %p272 = por %p270, %p271
    %p273 = scmp.ne.s32.totalorder %s261, %s262
    %p274 = scmp.eq.s32.totalorder %s37, 1
    %p275 = por %p273, %p274
    %p277 = scmp.ne.s32.totalorder %s262, %s276
    %p278 = scmp.eq.s32.totalorder %s37, 0
    %p279 = por %p277, %p278
    %s281 = sadd.s32 %s280, 1
    %p284 = scmp.eq.s32.totalorder %s31, 1
    %p285 = scmp.ne.s32.totalorder %s280, %s282
    %p286 = scmp.eq.s32.totalorder %s31, 0
    %p287 = por %p285, %p286
    %p288 = scmp.ne.s32.totalorder %s280, %s282
    %p289 = scmp.eq.s32.totalorder %s36, 1
    %p290 = por %p288, %p289
    %p291 = scmp.ne.s32.totalorder %s282, %s283
    %p292 = scmp.eq.s32.totalorder %s36, 0
    %p293 = por %p291, %p292
    %p294 = scmp.ne.s32.totalorder %s282, %s283
    %p295 = scmp.eq.s32.totalorder %s37, 1
    %p296 = por %p294, %p295
    %p298 = scmp.ne.s32.totalorder %s283, %s297
    %p299 = scmp.eq.s32.totalorder %s37, 0
    %p300 = por %p298, %p299
    %s302 = sadd.s32 %s301, 1
    %p305 = scmp.eq.s32.totalorder %s31, 1
    %p306 = scmp.ne.s32.totalorder %s301, %s303
    %p307 = scmp.eq.s32.totalorder %s31, 0
    %p308 = por %p306, %p307
    %p309 = scmp.ne.s32.totalorder %s301, %s303
    %p310 = scmp.eq.s32.totalorder %s36, 1
    %p311 = por %p309, %p310
    %p312 = scmp.ne.s32.totalorder %s303, %s304
    %p313 = scmp.eq.s32.totalorder %s36, 0
    %p314 = por %p312, %p313
    %p315 = scmp.ne.s32.totalorder %s303, %s304
    %p316 = scmp.eq.s32.totalorder %s37, 1
    %p317 = por %p315, %p316
    %p319 = scmp.ne.s32.totalorder %s304, %s318
    %p320 = scmp.eq.s32.totalorder %s37, 0
    %p321 = por %p319, %p320
    %s323 = sadd.s32 %s322, 1
    %p326 = scmp.eq.s32.totalorder %s31, 1
    %p327 = scmp.ne.s32.totalorder %s322, %s324
    %p328 = scmp.eq.s32.totalorder %s31, 0
    %p329 = por %p327, %p328
    %p330 = scmp.ne.s32.totalorder %s322, %s324
    %p331 = scmp.eq.s32.totalorder %s36, 1
    %p332 = por %p330, %p331
    %p333 = scmp.ne.s32.totalorder %s324, %s325
    %p334 = scmp.eq.s32.totalorder %s36, 0
    %p335 = por %p333, %p334
    %p336 = scmp.ne.s32.totalorder %s324, %s325
    %p337 = scmp.eq.s32.totalorder %s37, 1
    %p338 = por %p336, %p337
    %p340 = scmp.ne.s32.totalorder %s325, %s339
    %p341 = scmp.eq.s32.totalorder %s37, 0
    %p342 = por %p340, %p341
    %s344 = sadd.s32 %s343, 1
    %p347 = scmp.eq.s32.totalorder %s31, 1
    %p348 = scmp.ne.s32.totalorder %s343, %s345
    %p349 = scmp.eq.s32.totalorder %s31, 0
    %p350 = por %p348, %p349
    %p351 = scmp.ne.s32.totalorder %s343, %s345
    %p352 = scmp.eq.s32.totalorder %s36, 1
    %p353 = por %p351, %p352
    %p354 = scmp.ne.s32.totalorder %s345, %s346
    %p355 = scmp.eq.s32.totalorder %s36, 0
    %p356 = por %p354, %p355
    %p357 = scmp.ne.s32.totalorder %s345, %s346
    %p358 = scmp.eq.s32.totalorder %s37, 1
    %p359 = por %p357, %p358
    %p361 = scmp.ne.s32.totalorder %s346, %s360
    %p362 = scmp.eq.s32.totalorder %s37, 0
    %p363 = por %p361, %p362
    %s365 = sadd.s32 %s364, 1
    %p368 = scmp.eq.s32.totalorder %s31, 1
    %p369 = scmp.ne.s32.totalorder %s364, %s366
    %p370 = scmp.eq.s32.totalorder %s31, 0
    %p371 = por %p369, %p370
    %p372 = scmp.ne.s32.totalorder %s364, %s366
    %p373 = scmp.eq.s32.totalorder %s36, 1
    %p374 = por %p372, %p373
    %p375 = scmp.ne.s32.totalorder %s366, %s367
    %p376 = scmp.eq.s32.totalorder %s36, 0
    %p377 = por %p375, %p376
    %p378 = scmp.ne.s32.totalorder %s366, %s367
    %p379 = scmp.eq.s32.totalorder %s37, 1
    %p380 = por %p378, %p379
    %p382 = scmp.ne.s32.totalorder %s367, %s381
    %p383 = scmp.eq.s32.totalorder %s37, 0
    %p384 = por %p382, %p383
    %s386 = sadd.s32 %s385, 1
    %p389 = scmp.eq.s32.totalorder %s31, 1
    %p390 = scmp.ne.s32.totalorder %s385, %s387
    %p391 = scmp.eq.s32.totalorder %s31, 0
    %p392 = por %p390, %p391
    %p393 = scmp.ne.s32.totalorder %s385, %s387
    %p394 = scmp.eq.s32.totalorder %s36, 1
    %p395 = por %p393, %p394
    %p396 = scmp.ne.s32.totalorder %s387, %s388
    %p397 = scmp.eq.s32.totalorder %s36, 0
    %p398 = por %p396, %p397
    %p399 = scmp.ne.s32.totalorder %s387, %s388
    %p400 = scmp.eq.s32.totalorder %s37, 1
    %p401 = por %p399, %p400
    %p403 = scmp.ne.s32.totalorder %s388, %s402
    %p404 = scmp.eq.s32.totalorder %s37, 0
    %p405 = por %p403, %p404
    %s407 = sadd.s32 %s406, 1
    %p410 = scmp.eq.s32.totalorder %s31, 1
    %p411 = scmp.ne.s32.totalorder %s406, %s408
    %p412 = scmp.eq.s32.totalorder %s31, 0
    %p413 = por %p411, %p412
    %p414 = scmp.ne.s32.totalorder %s406, %s408
    %p415 = scmp.eq.s32.totalorder %s36, 1
    %p416 = por %p414, %p415
    %p417 = scmp.ne.s32.totalorder %s408, %s409
    %p418 = scmp.eq.s32.totalorder %s36, 0
    %p419 = por %p417, %p418
    %p420 = scmp.ne.s32.totalorder %s408, %s409
    %p421 = scmp.eq.s32.totalorder %s37, 1
    %p422 = por %p420, %p421
    %p424 = scmp.ne.s32.totalorder %s409, %s423
    %p425 = scmp.eq.s32.totalorder %s37, 0
    %p426 = por %p424, %p425
    %s428 = sadd.s32 %s427, 1
    %p431 = scmp.eq.s32.totalorder %s31, 1
    %p432 = scmp.ne.s32.totalorder %s427, %s429
    %p433 = scmp.eq.s32.totalorder %s31, 0
    %p434 = por %p432, %p433
    %p435 = scmp.ne.s32.totalorder %s427, %s429
    %p436 = scmp.eq.s32.totalorder %s36, 1
    %p437 = por %p435, %p436
    %p438 = scmp.ne.s32.totalorder %s429, %s430
    %p439 = scmp.eq.s32.totalorder %s36, 0
    %p440 = por %p438, %p439
    %p441 = scmp.ne.s32.totalorder %s429, %s430
    %p442 = scmp.eq.s32.totalorder %s37, 1
    %p443 = por %p441, %p442
    %p445 = scmp.ne.s32.totalorder %s430, %s444
    %p446 = scmp.eq.s32.totalorder %s37, 0
    %p447 = por %p445, %p446
    %s449 = sadd.s32 %s448, 1
    %p452 = scmp.eq.s32.totalorder %s31, 1
    %p453 = scmp.ne.s32.totalorder %s448, %s450
    %p454 = scmp.eq.s32.totalorder %s31, 0
    %p455 = por %p453, %p454
    %p456 = scmp.ne.s32.totalorder %s448, %s450
    %p457 = scmp.eq.s32.totalorder %s36, 1
    %p458 = por %p456, %p457
    %p459 = scmp.ne.s32.totalorder %s450, %s451
    %p460 = scmp.eq.s32.totalorder %s36, 0
    %p461 = por %p459, %p460
    %p462 = scmp.ne.s32.totalorder %s450, %s451
    %p463 = scmp.eq.s32.totalorder %s37, 1
    %p464 = por %p462, %p463
    %p466 = scmp.ne.s32.totalorder %s451, %s465
    %p467 = scmp.eq.s32.totalorder %s37, 0
    %p468 = por %p466, %p467
    %s470 = sadd.s32 %s469, 1
    %p473 = scmp.eq.s32.totalorder %s31, 1
    %p474 = scmp.ne.s32.totalorder %s469, %s471
    %p475 = scmp.eq.s32.totalorder %s31, 0
    %p476 = por %p474, %p475
    %p477 = scmp.ne.s32.totalorder %s469, %s471
    %p478 = scmp.eq.s32.totalorder %s36, 1
    %p479 = por %p477, %p478
    %p480 = scmp.ne.s32.totalorder %s471, %s472
    %p481 = scmp.eq.s32.totalorder %s36, 0
    %p482 = por %p480, %p481
    %p483 = scmp.ne.s32.totalorder %s471, %s472
    %p484 = scmp.eq.s32.totalorder %s37, 1
    %p485 = por %p483, %p484
    %p487 = scmp.ne.s32.totalorder %s472, %s486
    %p488 = scmp.eq.s32.totalorder %s37, 0
    %p489 = por %p487, %p488
    %s491 = sadd.s32 %s490, 1
    %p494 = scmp.eq.s32.totalorder %s31, 1
    %p495 = scmp.ne.s32.totalorder %s490, %s492
    %p496 = scmp.eq.s32.totalorder %s31, 0
    %p497 = por %p495, %p496
    %p498 = scmp.ne.s32.totalorder %s490, %s492
    %p499 = scmp.eq.s32.totalorder %s36, 1
    %p500 = por %p498, %p499
    %p501 = scmp.ne.s32.totalorder %s492, %s493
    %p502 = scmp.eq.s32.totalorder %s36, 0
    %p503 = por %p501, %p502
    %p504 = scmp.ne.s32.totalorder %s492, %s493
    %p505 = scmp.eq.s32.totalorder %s37, 1
    %p506 = por %p504, %p505
    %p508 = scmp.ne.s32.totalorder %s493, %s507
    %p509 = scmp.eq.s32.totalorder %s37, 0
    %p510 = por %p508, %p509
    %s512 = sadd.s32 %s511, 1
    %p515 = scmp.eq.s32.totalorder %s31, 1
    %p516 = scmp.ne.s32.totalorder %s511, %s513
    %p517 = scmp.eq.s32.totalorder %s31, 0
    %p518 = por %p516, %p517
    %p519 = scmp.ne.s32.totalorder %s511, %s513
    %p520 = scmp.eq.s32.totalorder %s36, 1
    %p521 = por %p519, %p520
    %p522 = scmp.ne.s32.totalorder %s513, %s514
    %p523 = scmp.eq.s32.totalorder %s36, 0
    %p524 = por %p522, %p523
    %p525 = scmp.ne.s32.totalorder %s513, %s514
    %p526 = scmp.eq.s32.totalorder %s37, 1
    %p527 = por %p525, %p526
    %p529 = scmp.ne.s32.totalorder %s514, %s528
    %p530 = scmp.eq.s32.totalorder %s37, 0
    %p531 = por %p529, %p530
    %s533 = sadd.s32 %s532, 1
    %p536 = scmp.eq.s32.totalorder %s31, 1
    %p537 = scmp.ne.s32.totalorder %s532, %s534
    %p538 = scmp.eq.s32.totalorder %s31, 0
    %p539 = por %p537, %p538
    %p540 = scmp.ne.s32.totalorder %s532, %s534
    %p541 = scmp.eq.s32.totalorder %s36, 1
    %p542 = por %p540, %p541
    %p543 = scmp.ne.s32.totalorder %s534, %s535
    %p544 = scmp.eq.s32.totalorder %s36, 0
    %p545 = por %p543, %p544
    %p546 = scmp.ne.s32.totalorder %s534, %s535
    %p547 = scmp.eq.s32.totalorder %s37, 1
    %p548 = por %p546, %p547
    %p550 = scmp.ne.s32.totalorder %s535, %s549
    %p551 = scmp.eq.s32.totalorder %s37, 0
    %p552 = por %p550, %p551
    %s554 = sadd.s32 %s553, 1
    %p557 = scmp.eq.s32.totalorder %s31, 1
    %p558 = scmp.ne.s32.totalorder %s553, %s555
    %p559 = scmp.eq.s32.totalorder %s31, 0
    %p560 = por %p558, %p559
    %p561 = scmp.ne.s32.totalorder %s553, %s555
    %p562 = scmp.eq.s32.totalorder %s36, 1
    %p563 = por %p561, %p562
    %p564 = scmp.ne.s32.totalorder %s555, %s556
    %p565 = scmp.eq.s32.totalorder %s36, 0
    %p566 = por %p564, %p565
    %p567 = scmp.ne.s32.totalorder %s555, %s556
    %p568 = scmp.eq.s32.totalorder %s37, 1
    %p569 = por %p567, %p568
    %p571 = scmp.ne.s32.totalorder %s556, %s570
    %p572 = scmp.eq.s32.totalorder %s37, 0
    %p573 = por %p571, %p572
    %s574 = ssub.s32 %s31, %s38
    %p575 = scmp.eq.s32.totalorder %s574, 0
    %s577 = sadd.s32 %s576, 1
    %s578 = scalar_select %p575, %s576, %s577
    %p581 = pneg %p575
    %p582 = scmp.eq.s32.totalorder %s31, 1
    %p583 = por %p581, %p582
    %p584 = scmp.ne.s32.totalorder %s576, %s579
    %p585 = scmp.eq.s32.totalorder %s31, 0
    %p586 = por %p584, %p585
    %p587 = scmp.ne.s32.totalorder %s576, %s579
    %p588 = scmp.eq.s32.totalorder %s36, 1
    %p589 = por %p587, %p588
    %p590 = scmp.ne.s32.totalorder %s579, %s580
    %p591 = scmp.eq.s32.totalorder %s36, 0
    %p592 = por %p590, %p591
    %p593 = scmp.ne.s32.totalorder %s579, %s580
    %p594 = scmp.eq.s32.totalorder %s37, 1
    %p595 = por %p593, %p594
    %p597 = scmp.ne.s32.totalorder %s580, %s596
    %p598 = scmp.eq.s32.totalorder %s37, 0
    %p599 = por %p597, %p598
    %p600 = scmp.le.s32.totalorder 1, %s31
    %p601 = scmp.lt.s32.totalorder %s31, 3
    %p602 = pnand %p600, %p601
    %p603 = pneg %p602
    // Predicated region
    $region9: #{tpu_custom_call.1} parent=5 // pred_check
      _
    $region10: #{tpu_custom_call.1} parent=5 // pred_check_branch
      %605 = sbr.rel (%p602) target = $region12
    $region11: #{tpu_custom_call.1} parent=5 // pred_region
      %s606 = ssub.s32 %s31, 1
      // Predicated region
      $region13: #{tpu_custom_call.1} parent=11 // pred_check
        %p607 = pneg %p104
      $region14: #{tpu_custom_call.1} parent=11 // pred_check_branch
        %609 = sbr.rel (%p607) target = $region16
      $region15: #{tpu_custom_call.1} parent=11 // pred_region
        _
      $region16: #{tpu_custom_call.1} parent=11 // pred_fallthru
        _
      // Predicated region
      $region17: #{tpu_custom_call.1} parent=11 // pred_check
        %p610 = pneg %p125
      $region18: #{tpu_custom_call.1} parent=11 // pred_check_branch
        %612 = sbr.rel (%p610) target = $region20
      $region19: #{tpu_custom_call.1} parent=11 // pred_region
        _
      $region20: #{tpu_custom_call.1} parent=11 // pred_fallthru
        _
      // Predicated region
      $region21: #{tpu_custom_call.1} parent=11 // pred_check
        %p613 = pneg %p146
      $region22: #{tpu_custom_call.1} parent=11 // pred_check_branch
        %615 = sbr.rel (%p613) target = $region24
      $region23: #{tpu_custom_call.1} parent=11 // pred_region
        _
      $region24: #{tpu_custom_call.1} parent=11 // pred_fallthru
        _
      // Predicated region
      $region25: #{tpu_custom_call.1} parent=11 // pred_check
        %p616 = pneg %p167
      $region26: #{tpu_custom_call.1} parent=11 // pred_check_branch
        %618 = sbr.rel (%p616) target = $region28
      $region27: #{tpu_custom_call.1} parent=11 // pred_region
        _
      $region28: #{tpu_custom_call.1} parent=11 // pred_fallthru
        _
      // Predicated region
      $region29: #{tpu_custom_call.1} parent=11 // pred_check
        %p619 = pneg %p188
      $region30: #{tpu_custom_call.1} parent=11 // pred_check_branch
        %621 = sbr.rel (%p619) target = $region32
      $region31: #{tpu_custom_call.1} parent=11 // pred_region
        _
      $region32: #{tpu_custom_call.1} parent=11 // pred_fallthru
        _
      // Predicated region
      $region33: #{tpu_custom_call.1} parent=11 // pred_check
        %p622 = pneg %p209
      $region34: #{tpu_custom_call.1} parent=11 // pred_check_branch
        %624 = sbr.rel (%p622) target = $region36
      $region35: #{tpu_custom_call.1} parent=11 // pred_region
        _
      $region36: #{tpu_custom_call.1} parent=11 // pred_fallthru
        _
      // Predicated region
      $region37: #{tpu_custom_call.1} parent=11 // pred_check
        %p625 = pneg %p230
      $region38: #{tpu_custom_call.1} parent=11 // pred_check_branch
        %627 = sbr.rel (%p625) target = $region40
      $region39: #{tpu_custom_call.1} parent=11 // pred_region
        _
      $region40: #{tpu_custom_call.1} parent=11 // pred_fallthru
        _
      // Predicated region
      $region41: #{tpu_custom_call.1} parent=11 // pred_check
        %p628 = pneg %p251
      $region42: #{tpu_custom_call.1} parent=11 // pred_check_branch
        %630 = sbr.rel (%p628) target = $region44
      $region43: #{tpu_custom_call.1} parent=11 // pred_region
        _
      $region44: #{tpu_custom_call.1} parent=11 // pred_fallthru
        _
      // Predicated region
      $region45: #{tpu_custom_call.1} parent=11 // pred_check
        %p631 = pneg %p272
      $region46: #{tpu_custom_call.1} parent=11 // pred_check_branch
        %633 = sbr.rel (%p631) target = $region48
      $region47: #{tpu_custom_call.1} parent=11 // pred_region
        _
      $region48: #{tpu_custom_call.1} parent=11 // pred_fallthru
        _
      // Predicated region
      $region49: #{tpu_custom_call.1} parent=11 // pred_check
        %p634 = pneg %p293
      $region50: #{tpu_custom_call.1} parent=11 // pred_check_branch
        %636 = sbr.rel (%p634) target = $region52
      $region51: #{tpu_custom_call.1} parent=11 // pred_region
        _
      $region52: #{tpu_custom_call.1} parent=11 // pred_fallthru
        _
      // Predicated region
      $region53: #{tpu_custom_call.1} parent=11 // pred_check
        %p637 = pneg %p314
      $region54: #{tpu_custom_call.1} parent=11 // pred_check_branch
        %639 = sbr.rel (%p637) target = $region56
      $region55: #{tpu_custom_call.1} parent=11 // pred_region
        _
      $region56: #{tpu_custom_call.1} parent=11 // pred_fallthru
        _
      // Predicated region
      $region57: #{tpu_custom_call.1} parent=11 // pred_check
        %p640 = pneg %p335
      $region58: #{tpu_custom_call.1} parent=11 // pred_check_branch
        %642 = sbr.rel (%p640) target = $region60
      $region59: #{tpu_custom_call.1} parent=11 // pred_region
        _
      $region60: #{tpu_custom_call.1} parent=11 // pred_fallthru
        _
      // Predicated region
      $region61: #{tpu_custom_call.1} parent=11 // pred_check
        %p643 = pneg %p356
      $region62: #{tpu_custom_call.1} parent=11 // pred_check_branch
        %645 = sbr.rel (%p643) target = $region64
      $region63: #{tpu_custom_call.1} parent=11 // pred_region
        _
      $region64: #{tpu_custom_call.1} parent=11 // pred_fallthru
        _
      // Predicated region
      $region65: #{tpu_custom_call.1} parent=11 // pred_check
        %p646 = pneg %p377
      $region66: #{tpu_custom_call.1} parent=11 // pred_check_branch
        %648 = sbr.rel (%p646) target = $region68
      $region67: #{tpu_custom_call.1} parent=11 // pred_region
        _
      $region68: #{tpu_custom_call.1} parent=11 // pred_fallthru
        _
      // Predicated region
      $region69: #{tpu_custom_call.1} parent=11 // pred_check
        %p649 = pneg %p398
      $region70: #{tpu_custom_call.1} parent=11 // pred_check_branch
        %651 = sbr.rel (%p649) target = $region72
      $region71: #{tpu_custom_call.1} parent=11 // pred_region
        _
      $region72: #{tpu_custom_call.1} parent=11 // pred_fallthru
        _
      // Predicated region
      $region73: #{tpu_custom_call.1} parent=11 // pred_check
        %p652 = pneg %p419
      $region74: #{tpu_custom_call.1} parent=11 // pred_check_branch
        %654 = sbr.rel (%p652) target = $region76
      $region75: #{tpu_custom_call.1} parent=11 // pred_region
        _
      $region76: #{tpu_custom_call.1} parent=11 // pred_fallthru
        _
      // Predicated region
      $region77: #{tpu_custom_call.1} parent=11 // pred_check
        %p655 = pneg %p440
      $region78: #{tpu_custom_call.1} parent=11 // pred_check_branch
        %657 = sbr.rel (%p655) target = $region80
      $region79: #{tpu_custom_call.1} parent=11 // pred_region
        _
      $region80: #{tpu_custom_call.1} parent=11 // pred_fallthru
        _
      // Predicated region
      $region81: #{tpu_custom_call.1} parent=11 // pred_check
        %p658 = pneg %p461
      $region82: #{tpu_custom_call.1} parent=11 // pred_check_branch
        %660 = sbr.rel (%p658) target = $region84
      $region83: #{tpu_custom_call.1} parent=11 // pred_region
        _
      $region84: #{tpu_custom_call.1} parent=11 // pred_fallthru
        _
      // Predicated region
      $region85: #{tpu_custom_call.1} parent=11 // pred_check
        %p661 = pneg %p482
      $region86: #{tpu_custom_call.1} parent=11 // pred_check_branch
        %663 = sbr.rel (%p661) target = $region88
      $region87: #{tpu_custom_call.1} parent=11 // pred_region
        _
      $region88: #{tpu_custom_call.1} parent=11 // pred_fallthru
        _
      // Predicated region
      $region89: #{tpu_custom_call.1} parent=11 // pred_check
        %p664 = pneg %p503
      $region90: #{tpu_custom_call.1} parent=11 // pred_check_branch
        %666 = sbr.rel (%p664) target = $region92
      $region91: #{tpu_custom_call.1} parent=11 // pred_region
        _
      $region92: #{tpu_custom_call.1} parent=11 // pred_fallthru
        _
      // Predicated region
      $region93: #{tpu_custom_call.1} parent=11 // pred_check
        %p667 = pneg %p524
      $region94: #{tpu_custom_call.1} parent=11 // pred_check_branch
        %669 = sbr.rel (%p667) target = $region96
      $region95: #{tpu_custom_call.1} parent=11 // pred_region
        _
      $region96: #{tpu_custom_call.1} parent=11 // pred_fallthru
        _
      // Predicated region
      $region97: #{tpu_custom_call.1} parent=11 // pred_check
        %p670 = pneg %p545
      $region98: #{tpu_custom_call.1} parent=11 // pred_check_branch
        %672 = sbr.rel (%p670) target = $region100
      $region99: #{tpu_custom_call.1} parent=11 // pred_region
        _
      $region100: #{tpu_custom_call.1} parent=11 // pred_fallthru
        _
      // Predicated region
      $region101: #{tpu_custom_call.1} parent=11 // pred_check
        %p673 = pneg %p566
      $region102: #{tpu_custom_call.1} parent=11 // pred_check_branch
        %675 = sbr.rel (%p673) target = $region104
      $region103: #{tpu_custom_call.1} parent=11 // pred_region
        _
      $region104: #{tpu_custom_call.1} parent=11 // pred_fallthru
        _
    $region12: #{tpu_custom_call.1} parent=5 // pred_fallthru
      _
    %p676 = scmp.lt.s32.totalorder %s31, 2
    // Predicated region
    $region105: #{tpu_custom_call.1} parent=5 // pred_check
      %p677 = pneg %p676
    $region106: #{tpu_custom_call.1} parent=5 // pred_check_branch
      %679 = sbr.rel (%p677) target = $region108
    $region107: #{tpu_custom_call.1} parent=5 // pred_region
      // Predicated region
      $region109: #{tpu_custom_call.1} parent=107 // pred_check
        %p680 = pneg %p51
      $region110: #{tpu_custom_call.1} parent=107 // pred_check_branch
        %682 = sbr.rel (%p680) target = $region112
      $region111: #{tpu_custom_call.1} parent=107 // pred_region
        %p683 = scmp.lt.s32.totalorder %s31, 1
        %s684 = scalar_select %p683, %s31, 1
        %s685 = smul.addr %s684, 8
        %s686 = scalar_lea.vmem %s0, %s685
      $region112: #{tpu_custom_call.1} parent=107 // pred_fallthru
        _
      // Predicated region
      $region113: #{tpu_custom_call.1} parent=107 // pred_check
        %p687 = pneg %p77
      $region114: #{tpu_custom_call.1} parent=107 // pred_check_branch
        %689 = sbr.rel (%p687) target = $region116
      $region115: #{tpu_custom_call.1} parent=107 // pred_region
        %p690 = scmp.lt.s32.totalorder %s31, 1
        %s691 = scalar_select %p690, %s31, 1
        %s692 = smul.addr %s691, 2
        %s693 = smul.addr %s692, 8
        %s694 = scalar_lea.vmem %s1, %s693
      $region116: #{tpu_custom_call.1} parent=107 // pred_fallthru
        _
    $region108: #{tpu_custom_call.1} parent=5 // pred_fallthru
      _
    %p695 = scmp.le.s32.totalorder 1, %s31
    %p696 = scmp.lt.s32.totalorder %s31, 3
    %p697 = pnand %p695, %p696
    %p698 = pneg %p697
    // Predicated region
    $region117: #{tpu_custom_call.1} parent=5 // pred_check
      _
    $region118: #{tpu_custom_call.1} parent=5 // pred_check_branch
      %700 = sbr.rel (%p697) target = $region120
    $region119: #{tpu_custom_call.1} parent=5 // pred_region
      %s701 = ssub.s32 %s31, 1
      %p702 = scmp.lt.s32.totalorder %s36, 1
      %s703 = scalar_select %p702, %s36, 1
      %s704 = smul.addr %s703, 8
      %s705 = scalar_lea.vmem %s0, %s704
      %p706 = pneg %p57
      %p707 = pneg %p54
      %p708 = scmp.lt.s32.totalorder %s36, 1
      %s709 = scalar_select %p708, %s36, 1
      %s710 = smul.addr %s709, 2
      %s711 = smul.addr %s710, 8
      %s712 = scalar_lea.vmem %s1, %s711
      %p713 = pneg %p83
      %p714 = pneg %p80
      %p715 = pneg %p104
      %p716 = pneg %p101
      %p717 = pneg %p125
      %p718 = pneg %p122
      %p719 = pneg %p146
      %p720 = pneg %p143
      %p721 = pneg %p167
      %p722 = pneg %p164
      %p723 = pneg %p188
      %p724 = pneg %p185
      %p725 = pneg %p209
      %p726 = pneg %p206
      %p727 = pneg %p230
      %p728 = pneg %p227
      %p729 = pneg %p251
      %p730 = pneg %p248
      %p731 = pneg %p272
      %p732 = pneg %p269
      %p733 = pneg %p293
      %p734 = pneg %p290
      %p735 = pneg %p314
      %p736 = pneg %p311
      %p737 = pneg %p335
      %p738 = pneg %p332
      %p739 = pneg %p356
      %p740 = pneg %p353
      %p741 = pneg %p377
      %p742 = pneg %p374
      %p743 = pneg %p398
      %p744 = pneg %p395
      %p745 = pneg %p419
      %p746 = pneg %p416
      %p747 = pneg %p440
      %p748 = pneg %p437
      %p749 = pneg %p461
      %p750 = pneg %p458
      %p751 = pneg %p482
      %p752 = pneg %p479
      %p753 = pneg %p503
      %p754 = pneg %p500
      %p755 = pneg %p524
      %p756 = pneg %p521
      %p757 = pneg %p545
      %p758 = pneg %p542
      %p759 = pneg %p566
      %p760 = pneg %p563
      %p761 = pneg %p592
      %p762 = pneg %p589
      %p763 = scmp.lt.s32.totalorder %s36, 1
      %s764 = scalar_select %p763, %s36, 1
      %s765 = smul.addr %s764, 2
      %s766 = smul.addr %s765, 8
      %s767 = scalar_lea.vmem %s25, %s766
      %p768 = scmp.lt.s32.totalorder %s36, 1
      %s769 = scalar_select %p768, %s36, 1
      %s770 = smul.addr %s769, 8
      %s771 = scalar_lea.vmem %s0, %s770
      %p772 = scmp.lt.s32.totalorder %s36, 1
      %s773 = scalar_select %p772, %s36, 1
      %s774 = smul.addr %s773, 2
      %s775 = smul.addr %s774, 8
      %s776 = scalar_lea.vmem %s1, %s775
      %p777 = scmp.lt.s32.totalorder %s36, 1
      %s778 = scalar_select %p777, %s36, 1
      %s779 = smul.addr %s778, 2
      %s780 = smul.addr %s779, 8
      %s781 = scalar_lea.vmem %s25, %s780
      %v782 = vld [vmem:[%s2] sm:$0xff]
      %v783 = vld [vmem:[%s2 + $0x8] sm:$0xff]
      %v784 = vld [vmem:[%s2 + $0x10] sm:$0xff]
      %v785 = vld [vmem:[%s2 + $0x18] sm:$0xff]
      %v786 = vld [vmem:[%s2 + $0x20] sm:$0xff]
      %v787 = vld [vmem:[%s2 + $0x28] sm:$0xff]
      %v788 = vld [vmem:[%s2 + $0x30] sm:$0xff]
      %v789 = vld [vmem:[%s2 + $0x38] sm:$0xff]
      %v790 = vld [vmem:[%s3] sm:$0xff]
      %v791 = vld [vmem:[%s3 + $0x8] sm:$0xff]
      %v792 = vld [vmem:[%s3 + $0x10] sm:$0xff]
      %v793 = vld [vmem:[%s3 + $0x18] sm:$0xff]
      %v794 = vld [vmem:[%s4] sm:$0xff]
      %v795 = vld [vmem:[%s4 + $0x8] sm:$0xff]
      %v796 = vld [vmem:[%s4 + $0x10] sm:$0xff]
      %v797 = vld [vmem:[%s4 + $0x18] sm:$0xff]
      %v798 = vld [vmem:[%s4 + $0x20] sm:$0xff]
      %v799 = vld [vmem:[%s4 + $0x28] sm:$0xff]
      %v800 = vld [vmem:[%s4 + $0x30] sm:$0xff]
      %v801 = vld [vmem:[%s4 + $0x38] sm:$0xff]
      %v802 = vld [vmem:[%s4 + $0x40] sm:$0xff]
      %v803 = vld [vmem:[%s4 + $0x48] sm:$0xff]
      %v804 = vld [vmem:[%s4 + $0x50] sm:$0xff]
      %v805 = vld [vmem:[%s4 + $0x58] sm:$0xff]
      %v806 = vld [vmem:[%s4 + $0x60] sm:$0xff]
      %v807 = vld [vmem:[%s4 + $0x68] sm:$0xff]
      %v808 = vld [vmem:[%s4 + $0x70] sm:$0xff]
      %v809 = vld [vmem:[%s4 + $0x78] sm:$0xff]
      %v810 = vld [vmem:[%s5] sm:$0x1]
      %v811 = vld [vmem:[%s6] sm:$0xff]
      %v812 = vld [vmem:[%s6 + $0x8] sm:$0xff]
      %v813 = vld [vmem:[%s6 + $0x10] sm:$0xff]
      %v814 = vld [vmem:[%s6 + $0x18] sm:$0xff]
      %v815 = vld [vmem:[%s6 + $0x20] sm:$0xff]
      %v816 = vld [vmem:[%s6 + $0x28] sm:$0xff]
      %v817 = vld [vmem:[%s6 + $0x30] sm:$0xff]
      %v818 = vld [vmem:[%s6 + $0x38] sm:$0xff]
      %v819 = vld [vmem:[%s6 + $0x40] sm:$0xff]
      %v820 = vld [vmem:[%s6 + $0x48] sm:$0xff]
      %v821 = vld [vmem:[%s6 + $0x50] sm:$0xff]
      %v822 = vld [vmem:[%s6 + $0x58] sm:$0xff]
      %v823 = vld [vmem:[%s6 + $0x60] sm:$0xff]
      %v824 = vld [vmem:[%s6 + $0x68] sm:$0xff]
      %v825 = vld [vmem:[%s6 + $0x70] sm:$0xff]
      %v826 = vld [vmem:[%s6 + $0x78] sm:$0xff]
      %v827 = vld [vmem:[%s7] sm:$0xff]
      %v828 = vld [vmem:[%s7 + $0x8] sm:$0xff]
      %v829 = vld [vmem:[%s7 + $0x10] sm:$0xff]
      %v830 = vld [vmem:[%s7 + $0x18] sm:$0xff]
      %v831 = vld [vmem:[%s7 + $0x20] sm:$0xff]
      %v832 = vld [vmem:[%s7 + $0x28] sm:$0xff]
      %v833 = vld [vmem:[%s7 + $0x30] sm:$0xff]
      %v834 = vld [vmem:[%s7 + $0x38] sm:$0xff]
      %v835 = vld [vmem:[%s7 + $0x40] sm:$0xff]
      %v836 = vld [vmem:[%s7 + $0x48] sm:$0xff]
      %v837 = vld [vmem:[%s7 + $0x50] sm:$0xff]
      %v838 = vld [vmem:[%s7 + $0x58] sm:$0xff]
      %v839 = vld [vmem:[%s7 + $0x60] sm:$0xff]
      %v840 = vld [vmem:[%s7 + $0x68] sm:$0xff]
      %v841 = vld [vmem:[%s7 + $0x70] sm:$0xff]
      %v842 = vld [vmem:[%s7 + $0x78] sm:$0xff]
      %v843 = vld [vmem:[%s8] sm:$0xff]
      %v844 = vld [vmem:[%s8 + $0x8] sm:$0xff]
      %v845 = vld [vmem:[%s8 + $0x10] sm:$0xff]
      %v846 = vld [vmem:[%s8 + $0x18] sm:$0xff]
      %v847 = vld [vmem:[%s8 + $0x20] sm:$0xff]
      %v848 = vld [vmem:[%s8 + $0x28] sm:$0xff]
      %v849 = vld [vmem:[%s8 + $0x30] sm:$0xff]
      %v850 = vld [vmem:[%s8 + $0x38] sm:$0xff]
      %v851 = vld [vmem:[%s8 + $0x40] sm:$0xff]
      %v852 = vld [vmem:[%s8 + $0x48] sm:$0xff]
      %v853 = vld [vmem:[%s8 + $0x50] sm:$0xff]
      %v854 = vld [vmem:[%s8 + $0x58] sm:$0xff]
      %v855 = vld [vmem:[%s8 + $0x60] sm:$0xff]
      %v856 = vld [vmem:[%s8 + $0x68] sm:$0xff]
      %v857 = vld [vmem:[%s8 + $0x70] sm:$0xff]
      %v858 = vld [vmem:[%s8 + $0x78] sm:$0xff]
      %v859 = vld [vmem:[%s9] sm:$0xff]
      %v860 = vld [vmem:[%s9 + $0x8] sm:$0xff]
      %v861 = vld [vmem:[%s9 + $0x10] sm:$0xff]
      %v862 = vld [vmem:[%s9 + $0x18] sm:$0xff]
      %v863 = vld [vmem:[%s9 + $0x20] sm:$0xff]
      %v864 = vld [vmem:[%s9 + $0x28] sm:$0xff]
      %v865 = vld [vmem:[%s9 + $0x30] sm:$0xff]
      %v866 = vld [vmem:[%s9 + $0x38] sm:$0xff]
      %v867 = vld [vmem:[%s9 + $0x40] sm:$0xff]
      %v868 = vld [vmem:[%s9 + $0x48] sm:$0xff]
      %v869 = vld [vmem:[%s9 + $0x50] sm:$0xff]
      %v870 = vld [vmem:[%s9 + $0x58] sm:$0xff]
      %v871 = vld [vmem:[%s9 + $0x60] sm:$0xff]
      %v872 = vld [vmem:[%s9 + $0x68] sm:$0xff]
      %v873 = vld [vmem:[%s9 + $0x70] sm:$0xff]
      %v874 = vld [vmem:[%s9 + $0x78] sm:$0xff]
      %v875 = vld [vmem:[%s10] sm:$0x1]
      %v876 = vld [vmem:[%s11] sm:$0x1]
      %v877 = vld [vmem:[%s12] sm:$0x1]
      %v878 = vld [vmem:[%s13] sm:$0x1]
      %v879 = vld [vmem:[%s14] sm:$0xff]
      %v880 = vld [vmem:[%s14 + $0x8] sm:$0xff]
      %v881 = vld [vmem:[%s15] sm:$0x1]
      %v882 = vld [vmem:[%s16] sm:$0x1]
      %v883 = vsub.f32 1.0, %v882
      %v884 = vld [vmem:[%s17] sm:$0x1f]
      %v885 = vld [vmem:[%s18] sm:$0x1f]
      %v886 = vld [vmem:[%s19] sm:$0xff]
      %v887 = vld [vmem:[%s19 + $0x8] sm:$0xff]
      %v888 = vld [vmem:[%s19 + $0x10] sm:$0xff]
      %v889 = vld [vmem:[%s19 + $0x18] sm:$0xff]
      %v890 = vld [vmem:[%s19 + $0x20] sm:$0xff]
      %v891 = vld [vmem:[%s19 + $0x28] sm:$0xff]
      %v892 = vld [vmem:[%s19 + $0x30] sm:$0xff]
      %v893 = vld [vmem:[%s19 + $0x38] sm:$0xff]
      %v894 = vld [vmem:[%s19 + $0x40] sm:$0xff]
      %v895 = vld [vmem:[%s19 + $0x48] sm:$0xff]
      %v896 = vld [vmem:[%s19 + $0x50] sm:$0xff]
      %v897 = vld [vmem:[%s19 + $0x58] sm:$0xff]
      %v898 = vld [vmem:[%s19 + $0x60] sm:$0xff]
      %v899 = vld [vmem:[%s19 + $0x68] sm:$0xff]
      %v900 = vld [vmem:[%s19 + $0x70] sm:$0xff]
      %v901 = vld [vmem:[%s19 + $0x78] sm:$0xff]
      %v902 = vld [vmem:[%s20] sm:$0x1]
      %v903 = vld [vmem:[%s21] sm:$0xff]
      %v904 = vld [vmem:[%s21 + $0x8] sm:$0xff]
      %v905 = vld [vmem:[%s21 + $0x10] sm:$0xff]
      %v906 = vld [vmem:[%s21 + $0x18] sm:$0xff]
      %v907 = vld [vmem:[%s21 + $0x20] sm:$0xff]
      %v908 = vld [vmem:[%s21 + $0x28] sm:$0xff]
      %v909 = vld [vmem:[%s21 + $0x30] sm:$0xff]
      %v910 = vld [vmem:[%s21 + $0x38] sm:$0xff]
      %v911 = vld [vmem:[%s22] sm:$0xff]
      %v912 = vld [vmem:[%s22 + $0x8] sm:$0xff]
      %v913 = vld [vmem:[%s22 + $0x10] sm:$0xff]
      %v914 = vld [vmem:[%s22 + $0x18] sm:$0xff]
      %v915 = vld [vmem:[%s22 + $0x20] sm:$0xff]
      %v916 = vld [vmem:[%s22 + $0x28] sm:$0xff]
      %v917 = vld [vmem:[%s22 + $0x30] sm:$0xff]
      %v918 = vld [vmem:[%s22 + $0x38] sm:$0xff]
      %v919 = vld [vmem:[%s23] sm:$0xff]
      %v920 = vld [vmem:[%s23 + $0x8] sm:$0xff]
      %v921 = vld [vmem:[%s23 + $0x10] sm:$0xff]
      %v922 = vld [vmem:[%s23 + $0x18] sm:$0xff]
      %v923 = vld [vmem:[%s23 + $0x20] sm:$0xff]
      %v924 = vld [vmem:[%s23 + $0x28] sm:$0xff]
      %v925 = vld [vmem:[%s23 + $0x30] sm:$0xff]
      %v926 = vld [vmem:[%s23 + $0x38] sm:$0xff]
      %v927 = vld [vmem:[%s24] sm:$0xff]
      %v928 = vld [vmem:[%s24 + $0x8] sm:$0x1]
      %v929 = vld [vmem:[%s771] sm:$0x1f]
      %vm930 = vcmask 523264
      %v932 = vsel %vm930, %v929, 0
      %934 = vmatprep.subr.mxu0 0.0
      %935 = vmatpush1.msra.mxu0 0.0
      %936 = vmatprep.subr.mxu0 0.0
      %937 = vmatpush1.msra.mxu0 0.0
      %938 = vmatprep.subr.mxu0 0.0
      %939 = vmatpush1.msra.mxu0 0.0
      %940 = vmatprep.subr.mxu0 0.0
      %941 = vmatpush1.msra.mxu0 0.0
      %942 = vmatprep.subr.mxu0 0.0
      %943 = vmatpush1.msra.mxu0 0.0
      %944 = vmatprep.subr.mxu0 0.0
      %945 = vmatpush1.msra.mxu0 0.0
      %946 = vmatprep.subr.mxu0 0.0
      %947 = vmatpush1.msra.mxu0 0.0
      %948 = vmatprep.subr.mxu0 0.0
      %949 = vmatpush1.msra.mxu0 0.0
      %950 = vmatprep.subr.mxu0 0.0
      %951 = vmatpush1.msra.mxu0 %v789
      %952 = vmatprep.subr.mxu0 0.0
      %953 = vmatpush1.msra.mxu0 %v788
      %954 = vmatprep.subr.mxu0 0.0
      %955 = vmatpush1.msra.mxu0 %v787
      %956 = vmatprep.subr.mxu0 0.0
      %957 = vmatpush1.msra.mxu0 %v786
      %958 = vmatprep.subr.mxu0 0.0
      %959 = vmatpush1.msra.mxu0 %v785
      %960 = vmatprep.subr.mxu0 0.0
      %961 = vmatpush1.msra.mxu0 %v784
      %962 = vmatprep.subr.mxu0 0.0
      %963 = vmatpush1.msra.mxu0 %v783
      %964 = vmatprep.subr.mxu0 0.0
      %965 = vmatpush1.msra.mxu0 %v782
      %966 = vmatprep.subr.mxu0 0.0
      %967 = vmatpush2.msra.mxu0 0.0
      %968 = vmatprep.subr.mxu0 0.0
      %969 = vmatpush2.msra.mxu0 0.0
      %970 = vmatprep.subr.mxu0 0.0
      %971 = vmatpush2.msra.mxu0 0.0
      %972 = vmatprep.subr.mxu0 0.0
      %973 = vmatpush2.msra.mxu0 0.0
      %974 = vmatprep.subr.mxu0 0.0
      %975 = vmatpush2.msra.mxu0 0.0
      %976 = vmatprep.subr.mxu0 0.0
      %977 = vmatpush2.msra.mxu0 0.0
      %978 = vmatprep.subr.mxu0 0.0
      %979 = vmatpush2.msra.mxu0 0.0
      %980 = vmatprep.subr.mxu0 0.0
      %981 = vmatpush2.msra.mxu0 0.0
      %982 = vmatprep.subr.mxu0 0.0
      %983 = vmatpush2.msra.mxu0 0.0
      %984 = vmatprep.subr.mxu0 0.0
      %985 = vmatpush2.msra.mxu0 0.0
      %986 = vmatprep.subr.mxu0 0.0
      %987 = vmatpush2.msra.mxu0 0.0
      %988 = vmatprep.subr.mxu0 0.0
      %989 = vmatpush2.msra.mxu0 0.0
      %990 = vmatprep.subr.mxu0 0.0
      %991 = vmatpush2.msra.mxu0 0.0
      %992 = vmatprep.subr.mxu0 0.0
      %993 = vmatpush2.msra.mxu0 0.0
      %994 = vmatprep.subr.mxu0 0.0
      %995 = vmatpush2.msra.mxu0 0.0
      %996 = vmatprep.subr.mxu0 0.0
      %997 = vmatpush2.msra.mxu0 0.0
      %998 = vmatprep.mubr.f32.mxu0 0.0
      %999 = vmatmul.mubr.f32.gmra.mxu0 %v932
      %v1000 = vpop.f32.mrf.mxu0
      %v1001 = vadd.f32 0.0, %v1000
      %v1002 = vpop.f32.mrf.mxu0
      %1003 = vdwg.mxu0
      %v1004 = vsub.f32 0.0, %v1001
      %v1005 = vmul.f32 %v1004, 1.442695
      %v1006 = vpow.pop %v1005
      %v1007 = vadd.f32 %v1006, 1.0
      %v1008 = vrcp.pop %v1007
      %v1009 = vmul.f32 1.0, %v1008
      %v1010 = vmul.f32 %v1001, %v1009
      %v1012 = vlaneseq
      %v1013 = vshrl.u32 %v1012, 7
      %v1014 = vsub.s32 0, %v1013
      %v1015 = vrot.slane %v810, %v1014
      %1017 = vmatprep.subr.mxu0 0.0
      %1018 = vmatpush1.msra.mxu0 %v809
      %1019 = vmatprep.subr.mxu0 0.0
      %1020 = vmatpush1.msra.mxu0 %v808
      %1021 = vmatprep.subr.mxu0 0.0
      %1022 = vmatpush1.msra.mxu0 %v807
      %1023 = vmatprep.subr.mxu0 0.0
      %1024 = vmatpush1.msra.mxu0 %v806
      %1025 = vmatprep.subr.mxu0 0.0
      %1026 = vmatpush1.msra.mxu0 %v805
      %1027 = vmatprep.subr.mxu0 0.0
      %1028 = vmatpush1.msra.mxu0 %v804
      %1029 = vmatprep.subr.mxu0 0.0
      %1030 = vmatpush1.msra.mxu0 %v803
      %1031 = vmatprep.subr.mxu0 0.0
      %1032 = vmatpush1.msra.mxu0 %v802
      %1033 = vmatprep.subr.mxu0 0.0
      %1034 = vmatpush1.msra.mxu0 %v801
      %1035 = vmatprep.subr.mxu0 0.0
      %1036 = vmatpush1.msra.mxu0 %v800
      %1037 = vmatprep.subr.mxu0 0.0
      %1038 = vmatpush1.msra.mxu0 %v799
      %1039 = vmatprep.subr.mxu0 0.0
      %1040 = vmatpush1.msra.mxu0 %v798
      %1041 = vmatprep.subr.mxu0 0.0
      %1042 = vmatpush1.msra.mxu0 %v797
      %1043 = vmatprep.subr.mxu0 0.0
      %1044 = vmatpush1.msra.mxu0 %v796
      %1045 = vmatprep.subr.mxu0 0.0
      %1046 = vmatpush1.msra.mxu0 %v795
      %1047 = vmatprep.subr.mxu0 0.0
      %1048 = vmatpush1.msra.mxu0 %v794
      %1049 = vmatprep.subr.mxu0 0.0
      %1050 = vmatpush2.msra.mxu0 0.0
      %1051 = vmatprep.subr.mxu0 0.0
      %1052 = vmatpush2.msra.mxu0 0.0
      %1053 = vmatprep.subr.mxu0 0.0
      %1054 = vmatpush2.msra.mxu0 0.0
      %1055 = vmatprep.subr.mxu0 0.0
      %1056 = vmatpush2.msra.mxu0 0.0
      %1057 = vmatprep.subr.mxu0 0.0
      %1058 = vmatpush2.msra.mxu0 0.0
      %1059 = vmatprep.subr.mxu0 0.0
      %1060 = vmatpush2.msra.mxu0 0.0
      %1061 = vmatprep.subr.mxu0 0.0
      %1062 = vmatpush2.msra.mxu0 0.0
      %1063 = vmatprep.subr.mxu0 0.0
      %1064 = vmatpush2.msra.mxu0 0.0
      %1065 = vmatprep.subr.mxu0 0.0
      %1066 = vmatpush2.msra.mxu0 0.0
      %1067 = vmatprep.subr.mxu0 0.0
      %1068 = vmatpush2.msra.mxu0 0.0
      %1069 = vmatprep.subr.mxu0 0.0
      %1070 = vmatpush2.msra.mxu0 0.0
      %1071 = vmatprep.subr.mxu0 0.0
      %1072 = vmatpush2.msra.mxu0 0.0
      %1073 = vmatprep.subr.mxu0 0.0
      %1074 = vmatpush2.msra.mxu0 0.0
      %1075 = vmatprep.subr.mxu0 0.0
      %1076 = vmatpush2.msra.mxu0 0.0
      %1077 = vmatprep.subr.mxu0 0.0
      %1078 = vmatpush2.msra.mxu0 0.0
      %1079 = vmatprep.subr.mxu0 0.0
      %1080 = vmatpush2.msra.mxu0 0.0
      %1081 = vmatprep.mubr.f32.mxu0 0.0
      %1082 = vmatmul.mubr.f32.gmra.mxu0 %v1010
      %v1083 = vpop.f32.mrf.mxu0
      %v1084 = vadd.f32 %v1015, %v1083
      %v1085 = vpop.f32.mrf.mxu0
      %1086 = vdwg.mxu0
      %v1087 = vmax.f32 %v1084, 0.0
      %v1088 = vand.u32 2147483647, %v1084
      %v1089 = vsub.f32 0.0, %v1088
      %v1090 = vmul.f32 %v1089, 1.442695
      %v1091 = vpow.pop %v1090
      %v1092 = vadd.f32 %v1091, 1.0
      %v1093 = vlog2.pop %v1092
      %v1094 = vmul.f32 %v1093, 0.6931472
      %v1095 = vmul.f32 -0.5, %v1091
      %v1096 = vadd.f32 %v1095, 1.0
      %v1097 = vmul.f32 %v1096, %v1091
      %v1098 = vand.u32 2147483647, %v1091
      %vm1099 = vcmp.lt.f32.partialorder %v1098, 0.0004427343
      %v1100 = vsel %vm1099, %v1097, %v1094
      %v1101 = vadd.f32 %v1087, %v1100
      %v1102 = vmul.f32 %v1101, %v1010
      %v1104 = vlaneseq
      %v1105 = vshrl.u32 %v1104, 7
      %v1106 = vsub.s32 0, %v1105
      %v1107 = vrot.slane %v875, %v1106
      %1109 = vmatprep.subr.mxu0 0.0
      %1110 = vmatpush1.msra.mxu0 %v826
      %1111 = vmatprep.subr.mxu0 0.0
      %1112 = vmatpush1.msra.mxu0 %v825
      %1113 = vmatprep.subr.mxu0 0.0
      %1114 = vmatpush1.msra.mxu0 %v824
      %1115 = vmatprep.subr.mxu0 0.0
      %1116 = vmatpush1.msra.mxu0 %v823
      %1117 = vmatprep.subr.mxu0 0.0
      %1118 = vmatpush1.msra.mxu0 %v822
      %1119 = vmatprep.subr.mxu0 0.0
      %1120 = vmatpush1.msra.mxu0 %v821
      %1121 = vmatprep.subr.mxu0 0.0
      %1122 = vmatpush1.msra.mxu0 %v820
      %1123 = vmatprep.subr.mxu0 0.0
      %1124 = vmatpush1.msra.mxu0 %v819
      %1125 = vmatprep.subr.mxu0 0.0
      %1126 = vmatpush1.msra.mxu0 %v818
      %1127 = vmatprep.subr.mxu0 0.0
      %1128 = vmatpush1.msra.mxu0 %v817
      %1129 = vmatprep.subr.mxu0 0.0
      %1130 = vmatpush1.msra.mxu0 %v816
      %1131 = vmatprep.subr.mxu0 0.0
      %1132 = vmatpush1.msra.mxu0 %v815
      %1133 = vmatprep.subr.mxu0 0.0
      %1134 = vmatpush1.msra.mxu0 %v814
      %1135 = vmatprep.subr.mxu0 0.0
      %1136 = vmatpush1.msra.mxu0 %v813
      %1137 = vmatprep.subr.mxu0 0.0
      %1138 = vmatpush1.msra.mxu0 %v812
      %1139 = vmatprep.subr.mxu0 0.0
      %1140 = vmatpush1.msra.mxu0 %v811
      %1141 = vmatprep.subr.mxu0 0.0
      %1142 = vmatpush2.msra.mxu0 0.0
      %1143 = vmatprep.subr.mxu0 0.0
      %1144 = vmatpush2.msra.mxu0 0.0
      %1145 = vmatprep.subr.mxu0 0.0
      %1146 = vmatpush2.msra.mxu0 0.0
      %1147 = vmatprep.subr.mxu0 0.0
      %1148 = vmatpush2.msra.mxu0 0.0
      %1149 = vmatprep.subr.mxu0 0.0
      %1150 = vmatpush2.msra.mxu0 0.0
      %1151 = vmatprep.subr.mxu0 0.0
      %1152 = vmatpush2.msra.mxu0 0.0
      %1153 = vmatprep.subr.mxu0 0.0
      %1154 = vmatpush2.msra.mxu0 0.0
      %1155 = vmatprep.subr.mxu0 0.0
      %1156 = vmatpush2.msra.mxu0 0.0
      %1157 = vmatprep.subr.mxu0 0.0
      %1158 = vmatpush2.msra.mxu0 0.0
      %1159 = vmatprep.subr.mxu0 0.0
      %1160 = vmatpush2.msra.mxu0 0.0
      %1161 = vmatprep.subr.mxu0 0.0
      %1162 = vmatpush2.msra.mxu0 0.0
      %1163 = vmatprep.subr.mxu0 0.0
      %1164 = vmatpush2.msra.mxu0 0.0
      %1165 = vmatprep.subr.mxu0 0.0
      %1166 = vmatpush2.msra.mxu0 0.0
      %1167 = vmatprep.subr.mxu0 0.0
      %1168 = vmatpush2.msra.mxu0 0.0
      %1169 = vmatprep.subr.mxu0 0.0
      %1170 = vmatpush2.msra.mxu0 0.0
      %1171 = vmatprep.subr.mxu0 0.0
      %1172 = vmatpush2.msra.mxu0 0.0
      %1173 = vmatprep.mubr.f32.mxu0 0.0
      %1174 = vmatmul.mubr.f32.gmra.mxu0 %v1010
      %v1175 = vpop.f32.mrf.mxu0
      %v1176 = vadd.f32 %v1107, %v1175
      %v1177 = vpop.f32.mrf.mxu0
      %1178 = vdwg.mxu0
      %v1180 = vlaneseq
      %v1181 = vshrl.u32 %v1180, 7
      %v1182 = vsub.s32 0, %v1181
      %v1183 = vrot.slane %v876, %v1182
      %1185 = vmatprep.subr.mxu0 0.0
      %1186 = vmatpush1.msra.mxu0 %v842
      %1187 = vmatprep.subr.mxu0 0.0
      %1188 = vmatpush1.msra.mxu0 %v841
      %1189 = vmatprep.subr.mxu0 0.0
      %1190 = vmatpush1.msra.mxu0 %v840
      %1191 = vmatprep.subr.mxu0 0.0
      %1192 = vmatpush1.msra.mxu0 %v839
      %1193 = vmatprep.subr.mxu0 0.0
      %1194 = vmatpush1.msra.mxu0 %v838
      %1195 = vmatprep.subr.mxu0 0.0
      %1196 = vmatpush1.msra.mxu0 %v837
      %1197 = vmatprep.subr.mxu0 0.0
      %1198 = vmatpush1.msra.mxu0 %v836
      %1199 = vmatprep.subr.mxu0 0.0
      %1200 = vmatpush1.msra.mxu0 %v835
      %1201 = vmatprep.subr.mxu0 0.0
      %1202 = vmatpush1.msra.mxu0 %v834
      %1203 = vmatprep.subr.mxu0 0.0
      %1204 = vmatpush1.msra.mxu0 %v833
      %1205 = vmatprep.subr.mxu0 0.0
      %1206 = vmatpush1.msra.mxu0 %v832
      %1207 = vmatprep.subr.mxu0 0.0
      %1208 = vmatpush1.msra.mxu0 %v831
      %1209 = vmatprep.subr.mxu0 0.0
      %1210 = vmatpush1.msra.mxu0 %v830
      %1211 = vmatprep.subr.mxu0 0.0
      %1212 = vmatpush1.msra.mxu0 %v829
      %1213 = vmatprep.subr.mxu0 0.0
      %1214 = vmatpush1.msra.mxu0 %v828
      %1215 = vmatprep.subr.mxu0 0.0
      %1216 = vmatpush1.msra.mxu0 %v827
      %1217 = vmatprep.subr.mxu0 0.0
      %1218 = vmatpush2.msra.mxu0 0.0
      %1219 = vmatprep.subr.mxu0 0.0
      %1220 = vmatpush2.msra.mxu0 0.0
      %1221 = vmatprep.subr.mxu0 0.0
      %1222 = vmatpush2.msra.mxu0 0.0
      %1223 = vmatprep.subr.mxu0 0.0
      %1224 = vmatpush2.msra.mxu0 0.0
      %1225 = vmatprep.subr.mxu0 0.0
      %1226 = vmatpush2.msra.mxu0 0.0
      %1227 = vmatprep.subr.mxu0 0.0
      %1228 = vmatpush2.msra.mxu0 0.0
      %1229 = vmatprep.subr.mxu0 0.0
      %1230 = vmatpush2.msra.mxu0 0.0
      %1231 = vmatprep.subr.mxu0 0.0
      %1232 = vmatpush2.msra.mxu0 0.0
      %1233 = vmatprep.subr.mxu0 0.0
      %1234 = vmatpush2.msra.mxu0 0.0
      %1235 = vmatprep.subr.mxu0 0.0
      %1236 = vmatpush2.msra.mxu0 0.0
      %1237 = vmatprep.subr.mxu0 0.0
      %1238 = vmatpush2.msra.mxu0 0.0
      %1239 = vmatprep.subr.mxu0 0.0
      %1240 = vmatpush2.msra.mxu0 0.0
      %1241 = vmatprep.subr.mxu0 0.0
      %1242 = vmatpush2.msra.mxu0 0.0
      %1243 = vmatprep.subr.mxu0 0.0
      %1244 = vmatpush2.msra.mxu0 0.0
      %1245 = vmatprep.subr.mxu0 0.0
      %1246 = vmatpush2.msra.mxu0 0.0
      %1247 = vmatprep.subr.mxu0 0.0
      %1248 = vmatpush2.msra.mxu0 0.0
      %1249 = vmatprep.mubr.f32.mxu0 0.0
      %1250 = vmatmul.mubr.f32.gmra.mxu0 %v1010
      %v1251 = vpop.f32.mrf.mxu0
      %v1252 = vadd.f32 %v1183, %v1251
      %v1253 = vpop.f32.mrf.mxu0
      %1254 = vdwg.mxu0
      %v1256 = vlaneseq
      %v1257 = vshrl.u32 %v1256, 7
      %v1258 = vsub.s32 0, %v1257
      %v1259 = vrot.slane %v877, %v1258
      %1261 = vmatprep.subr.mxu0 0.0
      %1262 = vmatpush1.msra.mxu0 %v858
      %1263 = vmatprep.subr.mxu0 0.0
      %1264 = vmatpush1.msra.mxu0 %v857
      %1265 = vmatprep.subr.mxu0 0.0
      %1266 = vmatpush1.msra.mxu0 %v856
      %1267 = vmatprep.subr.mxu0 0.0
      %1268 = vmatpush1.msra.mxu0 %v855
      %1269 = vmatprep.subr.mxu0 0.0
      %1270 = vmatpush1.msra.mxu0 %v854
      %1271 = vmatprep.subr.mxu0 0.0
      %1272 = vmatpush1.msra.mxu0 %v853
      %1273 = vmatprep.subr.mxu0 0.0
      %1274 = vmatpush1.msra.mxu0 %v852
      %1275 = vmatprep.subr.mxu0 0.0
      %1276 = vmatpush1.msra.mxu0 %v851
      %1277 = vmatprep.subr.mxu0 0.0
      %1278 = vmatpush1.msra.mxu0 %v850
      %1279 = vmatprep.subr.mxu0 0.0
      %1280 = vmatpush1.msra.mxu0 %v849
      %1281 = vmatprep.subr.mxu0 0.0
      %1282 = vmatpush1.msra.mxu0 %v848
      %1283 = vmatprep.subr.mxu0 0.0
      %1284 = vmatpush1.msra.mxu0 %v847
      %1285 = vmatprep.subr.mxu0 0.0
      %1286 = vmatpush1.msra.mxu0 %v846
      %1287 = vmatprep.subr.mxu0 0.0
      %1288 = vmatpush1.msra.mxu0 %v845
      %1289 = vmatprep.subr.mxu0 0.0
      %1290 = vmatpush1.msra.mxu0 %v844
      %1291 = vmatprep.subr.mxu0 0.0
      %1292 = vmatpush1.msra.mxu0 %v843
      %1293 = vmatprep.subr.mxu0 0.0
      %1294 = vmatpush2.msra.mxu0 0.0
      %1295 = vmatprep.subr.mxu0 0.0
      %1296 = vmatpush2.msra.mxu0 0.0
      %1297 = vmatprep.subr.mxu0 0.0
      %1298 = vmatpush2.msra.mxu0 0.0
      %1299 = vmatprep.subr.mxu0 0.0
      %1300 = vmatpush2.msra.mxu0 0.0
      %1301 = vmatprep.subr.mxu0 0.0
      %1302 = vmatpush2.msra.mxu0 0.0
      %1303 = vmatprep.subr.mxu0 0.0
      %1304 = vmatpush2.msra.mxu0 0.0
      %1305 = vmatprep.subr.mxu0 0.0
      %1306 = vmatpush2.msra.mxu0 0.0
      %1307 = vmatprep.subr.mxu0 0.0
      %1308 = vmatpush2.msra.mxu0 0.0
      %1309 = vmatprep.subr.mxu0 0.0
      %1310 = vmatpush2.msra.mxu0 0.0
      %1311 = vmatprep.subr.mxu0 0.0
      %1312 = vmatpush2.msra.mxu0 0.0
      %1313 = vmatprep.subr.mxu0 0.0
      %1314 = vmatpush2.msra.mxu0 0.0
      %1315 = vmatprep.subr.mxu0 0.0
      %1316 = vmatpush2.msra.mxu0 0.0
      %1317 = vmatprep.subr.mxu0 0.0
      %1318 = vmatpush2.msra.mxu0 0.0
      %1319 = vmatprep.subr.mxu0 0.0
      %1320 = vmatpush2.msra.mxu0 0.0
      %1321 = vmatprep.subr.mxu0 0.0
      %1322 = vmatpush2.msra.mxu0 0.0
      %1323 = vmatprep.subr.mxu0 0.0
      %1324 = vmatpush2.msra.mxu0 0.0
      %1325 = vmatprep.mubr.f32.mxu0 0.0
      %1326 = vmatmul.mubr.f32.gmra.mxu0 %v1010
      %v1327 = vpop.f32.mrf.mxu0
      %v1328 = vadd.f32 %v1259, %v1327
      %v1329 = vpop.f32.mrf.mxu0
      %1330 = vdwg.mxu0
      %v1332 = vlaneseq
      %v1333 = vshrl.u32 %v1332, 7
      %v1334 = vsub.s32 0, %v1333
      %v1335 = vrot.slane %v878, %v1334
      %1337 = vmatprep.subr.mxu0 0.0
      %1338 = vmatpush1.msra.mxu0 %v874
      %1339 = vmatprep.subr.mxu0 0.0
      %1340 = vmatpush1.msra.mxu0 %v873
      %1341 = vmatprep.subr.mxu0 0.0
      %1342 = vmatpush1.msra.mxu0 %v872
      %1343 = vmatprep.subr.mxu0 0.0
      %1344 = vmatpush1.msra.mxu0 %v871
      %1345 = vmatprep.subr.mxu0 0.0
      %1346 = vmatpush1.msra.mxu0 %v870
      %1347 = vmatprep.subr.mxu0 0.0
      %1348 = vmatpush1.msra.mxu0 %v869
      %1349 = vmatprep.subr.mxu0 0.0
      %1350 = vmatpush1.msra.mxu0 %v868
      %1351 = vmatprep.subr.mxu0 0.0
      %1352 = vmatpush1.msra.mxu0 %v867
      %1353 = vmatprep.subr.mxu0 0.0
      %1354 = vmatpush1.msra.mxu0 %v866
      %1355 = vmatprep.subr.mxu0 0.0
      %1356 = vmatpush1.msra.mxu0 %v865
      %1357 = vmatprep.subr.mxu0 0.0
      %1358 = vmatpush1.msra.mxu0 %v864
      %1359 = vmatprep.subr.mxu0 0.0
      %1360 = vmatpush1.msra.mxu0 %v863
      %1361 = vmatprep.subr.mxu0 0.0
      %1362 = vmatpush1.msra.mxu0 %v862
      %1363 = vmatprep.subr.mxu0 0.0
      %1364 = vmatpush1.msra.mxu0 %v861
      %1365 = vmatprep.subr.mxu0 0.0
      %1366 = vmatpush1.msra.mxu0 %v860
      %1367 = vmatprep.subr.mxu0 0.0
      %1368 = vmatpush1.msra.mxu0 %v859
      %1369 = vmatprep.subr.mxu0 0.0
      %1370 = vmatpush2.msra.mxu0 0.0
      %1371 = vmatprep.subr.mxu0 0.0
      %1372 = vmatpush2.msra.mxu0 0.0
      %1373 = vmatprep.subr.mxu0 0.0
      %1374 = vmatpush2.msra.mxu0 0.0
      %1375 = vmatprep.subr.mxu0 0.0
      %1376 = vmatpush2.msra.mxu0 0.0
      %1377 = vmatprep.subr.mxu0 0.0
      %1378 = vmatpush2.msra.mxu0 0.0
      %1379 = vmatprep.subr.mxu0 0.0
      %1380 = vmatpush2.msra.mxu0 0.0
      %1381 = vmatprep.subr.mxu0 0.0
      %1382 = vmatpush2.msra.mxu0 0.0
      %1383 = vmatprep.subr.mxu0 0.0
      %1384 = vmatpush2.msra.mxu0 0.0
      %1385 = vmatprep.subr.mxu0 0.0
      %1386 = vmatpush2.msra.mxu0 0.0
      %1387 = vmatprep.subr.mxu0 0.0
      %1388 = vmatpush2.msra.mxu0 0.0
      %1389 = vmatprep.subr.mxu0 0.0
      %1390 = vmatpush2.msra.mxu0 0.0
      %1391 = vmatprep.subr.mxu0 0.0
      %1392 = vmatpush2.msra.mxu0 0.0
      %1393 = vmatprep.subr.mxu0 0.0
      %1394 = vmatpush2.msra.mxu0 0.0
      %1395 = vmatprep.subr.mxu0 0.0
      %1396 = vmatpush2.msra.mxu0 0.0
      %1397 = vmatprep.subr.mxu0 0.0
      %1398 = vmatpush2.msra.mxu0 0.0
      %1399 = vmatprep.subr.mxu0 0.0
      %1400 = vmatpush2.msra.mxu0 0.0
      %1401 = vmatprep.mubr.f32.mxu0 0.0
      %1402 = vmatmul.mubr.f32.gmra.mxu0 %v1010
      %v1403 = vpop.f32.mrf.mxu0
      %v1404 = vadd.f32 %v1335, %v1403
      %v1405 = vpop.f32.mrf.mxu0
      %1406 = vdwg.mxu0
      %v1408 = vcombine.high %v1101, %v1101
      %v1410 = vunpack.c.l.s4 1966171168
      %v1411 = vunpack.c.0.s8 %v1410
      %v1412 = vlaneseq
      %v1413 = vshrl.u32 %v1412, 7
      %v1414 = vsub.s32 %v1411, %v1413
      %v1415 = vrot.slane %v1101, %v1414
      %v1417 = vunpack.c.l.s4 1966171168
      %v1418 = vunpack.c.0.s8 %v1417
      %v1419 = vlaneseq
      %v1420 = vshrl.u32 %v1419, 7
      %v1421 = vsub.s32 %v1418, %v1420
      %v1422 = vrot.slane %v1408, %v1421
      %v1423 = vcombine.high %v1415, %v1415
      %v1425 = vunpack.c.l.s4 1966171168
      %v1426 = vunpack.c.0.s8 %v1425
      %v1427 = vlaneseq
      %v1428 = vshrl.u32 %v1427, 7
      %v1429 = vsub.s32 %v1426, %v1428
      %v1430 = vrot.slane %v1415, %v1429
      %v1432 = vunpack.c.l.s4 1966171168
      %v1433 = vunpack.c.0.s8 %v1432
      %v1434 = vlaneseq
      %v1435 = vshrl.u32 %v1434, 7
      %v1436 = vsub.s32 %v1433, %v1435
      %v1437 = vrot.slane %v1422, %v1436
      %v1439 = vunpack.c.l.s4 1966171168
      %v1440 = vunpack.c.0.s8 %v1439
      %v1441 = vlaneseq
      %v1442 = vshrl.u32 %v1441, 7
      %v1443 = vsub.s32 %v1440, %v1442
      %v1444 = vrot.slane %v1423, %v1443
      %v1445 = vcombine.high %v1430, %v1430
      %v1446 = vcombine.high %v1444, %v1444
      %v1447 = vlaneseq
      %v1448 = vshrl.u32 %v1447, 7
      %v1449 = vsub.s32 0, %v1448
      %v1450 = vrot.slane %v1430, %v1449
      %v1451 = vlaneseq
      %v1452 = vshrl.u32 %v1451, 7
      %v1453 = vsub.s32 0, %v1452
      %v1454 = vrot.slane %v1444, %v1453
      %v1455 = vlaneseq
      %v1456 = vshrl.u32 %v1455, 7
      %v1457 = vsub.s32 0, %v1456
      %v1458 = vrot.slane %v1445, %v1457
      %v1459 = vlaneseq
      %v1460 = vshrl.u32 %v1459, 7
      %v1461 = vsub.s32 0, %v1460
      %v1462 = vrot.slane %v1446, %v1461
      %v1463 = vlaneseq
      %v1464 = vshrl.u32 %v1463, 7
      %v1465 = vsub.s32 0, %v1464
      %v1466 = vrot.slane %v1437, %v1465
      %v1472 = vmul.f32 %v1450, %v879
      %v1473 = vmul.f32 %v1450, %v880
      %v1474 = vmul.f32 %v1454, %v879
      %v1475 = vmul.f32 %v1454, %v880
      %v1476 = vmul.f32 %v1458, %v879
      %v1477 = vmul.f32 %v1458, %v880
      %v1478 = vmul.f32 %v1462, %v879
      %v1479 = vmul.f32 %v1462, %v880
      %v1480 = vmul.f32 %v1466, %v879
      %v1481 = vmul.f32 %v1466, %v880
      %v1482 = vmul.f32 %v1472, 1.442695
      %v1483 = vpow.pop %v1482
      %v1484 = vmul.f32 %v1473, 1.442695
      %v1485 = vpow.pop %v1484
      %v1486 = vmul.f32 %v1474, 1.442695
      %v1487 = vpow.pop %v1486
      %v1488 = vmul.f32 %v1475, 1.442695
      %v1489 = vpow.pop %v1488
      %v1490 = vmul.f32 %v1476, 1.442695
      %v1491 = vpow.pop %v1490
      %v1492 = vmul.f32 %v1477, 1.442695
      %v1493 = vpow.pop %v1492
      %v1494 = vmul.f32 %v1478, 1.442695
      %v1495 = vpow.pop %v1494
      %v1496 = vmul.f32 %v1479, 1.442695
      %v1497 = vpow.pop %v1496
      %v1498 = vmul.f32 %v1480, 1.442695
      %v1499 = vpow.pop %v1498
      %v1500 = vmul.f32 %v1481, 1.442695
      %v1501 = vpow.pop %v1500
      %v1502 = vlaneseq
      %v1503 = vshrl.u32 %v1502, 7
      %v1504 = vsub.s32 0, %v1503
      %v1505 = vrot.slane %v1176, %v1504
      %1507 = vbcast.lane.b32.xlu0 %v1505, 256
      %v1508 = vpop.permute.xlu0 %1507
      %s1510 = sor.u32 256, 8
      %1511 = vbcast.lane.b32.xlu0 %v1505, %s1510
      %v1512 = vpop.permute.xlu0 %1511
      %v1513 = vlaneseq
      %v1514 = vshrl.u32 %v1513, 7
      %v1515 = vsub.s32 1, %v1514
      %v1516 = vrot.slane %v1176, %v1515
      %1518 = vbcast.lane.b32.xlu0 %v1516, 256
      %v1519 = vpop.permute.xlu0 %1518
      %s1521 = sor.u32 256, 8
      %1522 = vbcast.lane.b32.xlu0 %v1516, %s1521
      %v1523 = vpop.permute.xlu0 %1522
      %v1524 = vlaneseq
      %v1525 = vshrl.u32 %v1524, 7
      %v1526 = vsub.s32 2, %v1525
      %v1527 = vrot.slane %v1176, %v1526
      %1529 = vbcast.lane.b32.xlu0 %v1527, 256
      %v1530 = vpop.permute.xlu0 %1529
      %s1532 = sor.u32 256, 8
      %1533 = vbcast.lane.b32.xlu0 %v1527, %s1532
      %v1534 = vpop.permute.xlu0 %1533
      %v1535 = vlaneseq
      %v1536 = vshrl.u32 %v1535, 7
      %v1537 = vsub.s32 3, %v1536
      %v1538 = vrot.slane %v1176, %v1537
      %1540 = vbcast.lane.b32.xlu0 %v1538, 256
      %v1541 = vpop.permute.xlu0 %1540
      %s1543 = sor.u32 256, 8
      %1544 = vbcast.lane.b32.xlu0 %v1538, %s1543
      %v1545 = vpop.permute.xlu0 %1544
      %v1546 = vlaneseq
      %v1547 = vshrl.u32 %v1546, 7
      %v1548 = vsub.s32 4, %v1547
      %v1549 = vrot.slane %v1176, %v1548
      %1551 = vbcast.lane.b32.xlu0 %v1549, 256
      %v1552 = vpop.permute.xlu0 %1551
      %s1554 = sor.u32 256, 8
      %1555 = vbcast.lane.b32.xlu0 %v1549, %s1554
      %v1556 = vpop.permute.xlu0 %1555
      %v1558 = vlaneseq
      %v1559 = vshrl.u32 %v1558, 7
      %v1560 = vsub.s32 0, %v1559
      %v1561 = vrot.slane %v882, %v1560
      %v1563 = vmul.f32 %v1508, %v1561
      %v1564 = vmul.f32 %v1512, %v1561
      %v1565 = vmul.f32 %v1519, %v1561
      %v1566 = vmul.f32 %v1523, %v1561
      %v1567 = vmul.f32 %v1530, %v1561
      %v1568 = vmul.f32 %v1534, %v1561
      %v1569 = vmul.f32 %v1541, %v1561
      %v1570 = vmul.f32 %v1545, %v1561
      %v1571 = vmul.f32 %v1552, %v1561
      %v1572 = vmul.f32 %v1556, %v1561
      %v1573 = vlaneseq
      %v1574 = vshrl.u32 %v1573, 7
      %v1575 = vsub.s32 0, %v1574
      %v1576 = vrot.slane %v1252, %v1575
      %1578 = vbcast.lane.b32.xlu0 %v1576, 256
      %v1579 = vpop.permute.xlu0 %1578
      %s1581 = sor.u32 256, 8
      %1582 = vbcast.lane.b32.xlu0 %v1576, %s1581
      %v1583 = vpop.permute.xlu0 %1582
      %v1584 = vlaneseq
      %v1585 = vshrl.u32 %v1584, 7
      %v1586 = vsub.s32 1, %v1585
      %v1587 = vrot.slane %v1252, %v1586
      %1589 = vbcast.lane.b32.xlu0 %v1587, 256
      %v1590 = vpop.permute.xlu0 %1589
      %s1592 = sor.u32 256, 8
      %1593 = vbcast.lane.b32.xlu0 %v1587, %s1592
      %v1594 = vpop.permute.xlu0 %1593
      %v1595 = vlaneseq
      %v1596 = vshrl.u32 %v1595, 7
      %v1597 = vsub.s32 2, %v1596
      %v1598 = vrot.slane %v1252, %v1597
      %1600 = vbcast.lane.b32.xlu0 %v1598, 256
      %v1601 = vpop.permute.xlu0 %1600
      %s1603 = sor.u32 256, 8
      %1604 = vbcast.lane.b32.xlu0 %v1598, %s1603
      %v1605 = vpop.permute.xlu0 %1604
      %v1606 = vlaneseq
      %v1607 = vshrl.u32 %v1606, 7
      %v1608 = vsub.s32 3, %v1607
      %v1609 = vrot.slane %v1252, %v1608
      %1611 = vbcast.lane.b32.xlu0 %v1609, 256
      %v1612 = vpop.permute.xlu0 %1611
      %s1614 = sor.u32 256, 8
      %1615 = vbcast.lane.b32.xlu0 %v1609, %s1614
      %v1616 = vpop.permute.xlu0 %1615
      %v1617 = vlaneseq
      %v1618 = vshrl.u32 %v1617, 7
      %v1619 = vsub.s32 4, %v1618
      %v1620 = vrot.slane %v1252, %v1619
      %1622 = vbcast.lane.b32.xlu0 %v1620, 256
      %v1623 = vpop.permute.xlu0 %1622
      %s1625 = sor.u32 256, 8
      %1626 = vbcast.lane.b32.xlu0 %v1620, %s1625
      %v1627 = vpop.permute.xlu0 %1626
      %v1629 = vlaneseq
      %v1630 = vshrl.u32 %v1629, 7
      %v1631 = vsub.s32 0, %v1630
      %v1632 = vrot.slane %v883, %v1631
      %v1634 = vmul.f32 %v1579, %v1632
      %v1635 = vmul.f32 %v1583, %v1632
      %v1636 = vmul.f32 %v1590, %v1632
      %v1637 = vmul.f32 %v1594, %v1632
      %v1638 = vmul.f32 %v1601, %v1632
      %v1639 = vmul.f32 %v1605, %v1632
      %v1640 = vmul.f32 %v1612, %v1632
      %v1641 = vmul.f32 %v1616, %v1632
      %v1642 = vmul.f32 %v1623, %v1632
      %v1643 = vmul.f32 %v1627, %v1632
      %v1644 = vadd.f32 %v1563, %v1634
      %v1645 = vadd.f32 %v1564, %v1635
      %v1646 = vadd.f32 %v1565, %v1636
      %v1647 = vadd.f32 %v1566, %v1637
      %v1648 = vadd.f32 %v1567, %v1638
      %v1649 = vadd.f32 %v1568, %v1639
      %v1650 = vadd.f32 %v1569, %v1640
      %v1651 = vadd.f32 %v1570, %v1641
      %v1652 = vadd.f32 %v1571, %v1642
      %v1653 = vadd.f32 %v1572, %v1643
      %v1655 = vcombine.high %v1102, %v1102
      %v1657 = vunpack.c.l.s4 1966171168
      %v1658 = vunpack.c.0.s8 %v1657
      %v1659 = vlaneseq
      %v1660 = vshrl.u32 %v1659, 7
      %v1661 = vsub.s32 %v1658, %v1660
      %v1662 = vrot.slane %v1102, %v1661
      %v1664 = vunpack.c.l.s4 1966171168
      %v1665 = vunpack.c.0.s8 %v1664
      %v1666 = vlaneseq
      %v1667 = vshrl.u32 %v1666, 7
      %v1668 = vsub.s32 %v1665, %v1667
      %v1669 = vrot.slane %v1655, %v1668
      %v1670 = vcombine.high %v1662, %v1662
      %v1672 = vunpack.c.l.s4 1966171168
      %v1673 = vunpack.c.0.s8 %v1672
      %v1674 = vlaneseq
      %v1675 = vshrl.u32 %v1674, 7
      %v1676 = vsub.s32 %v1673, %v1675
      %v1677 = vrot.slane %v1662, %v1676
      %v1679 = vunpack.c.l.s4 1966171168
      %v1680 = vunpack.c.0.s8 %v1679
      %v1681 = vlaneseq
      %v1682 = vshrl.u32 %v1681, 7
      %v1683 = vsub.s32 %v1680, %v1682
      %v1684 = vrot.slane %v1669, %v1683
      %v1686 = vunpack.c.l.s4 1966171168
      %v1687 = vunpack.c.0.s8 %v1686
      %v1688 = vlaneseq
      %v1689 = vshrl.u32 %v1688, 7
      %v1690 = vsub.s32 %v1687, %v1689
      %v1691 = vrot.slane %v1670, %v1690
      %v1692 = vcombine.high %v1677, %v1677
      %v1693 = vcombine.high %v1691, %v1691
      %v1694 = vlaneseq
      %v1695 = vshrl.u32 %v1694, 7
      %v1696 = vsub.s32 0, %v1695
      %v1697 = vrot.slane %v1677, %v1696
      %v1698 = vlaneseq
      %v1699 = vshrl.u32 %v1698, 7
      %v1700 = vsub.s32 0, %v1699
      %v1701 = vrot.slane %v1691, %v1700
      %v1702 = vlaneseq
      %v1703 = vshrl.u32 %v1702, 7
      %v1704 = vsub.s32 0, %v1703
      %v1705 = vrot.slane %v1692, %v1704
      %v1706 = vlaneseq
      %v1707 = vshrl.u32 %v1706, 7
      %v1708 = vsub.s32 0, %v1707
      %v1709 = vrot.slane %v1693, %v1708
      %v1710 = vlaneseq
      %v1711 = vshrl.u32 %v1710, 7
      %v1712 = vsub.s32 0, %v1711
      %v1713 = vrot.slane %v1684, %v1712
      %v1719 = vmul.f32 %v1697, %v1644
      %v1720 = vmul.f32 %v1697, %v1645
      %v1721 = vmul.f32 %v1701, %v1646
      %v1722 = vmul.f32 %v1701, %v1647
      %v1723 = vmul.f32 %v1705, %v1648
      %v1724 = vmul.f32 %v1705, %v1649
      %v1725 = vmul.f32 %v1709, %v1650
      %v1726 = vmul.f32 %v1709, %v1651
      %v1727 = vmul.f32 %v1713, %v1652
      %v1728 = vmul.f32 %v1713, %v1653
      %v1729 = vlaneseq
      %v1730 = vshrl.u32 %v1729, 7
      %v1731 = vsub.s32 0, %v1730
      %v1732 = vrot.slane %v1328, %v1731
      %1734 = vbcast.lane.b32.xlu0 %v1732, 256
      %v1735 = vpop.permute.xlu0 %1734
      %s1737 = sor.u32 256, 8
      %1738 = vbcast.lane.b32.xlu0 %v1732, %s1737
      %v1739 = vpop.permute.xlu0 %1738
      %v1740 = vlaneseq
      %v1741 = vshrl.u32 %v1740, 7
      %v1742 = vsub.s32 1, %v1741
      %v1743 = vrot.slane %v1328, %v1742
      %1745 = vbcast.lane.b32.xlu0 %v1743, 256
      %v1746 = vpop.permute.xlu0 %1745
      %s1748 = sor.u32 256, 8
      %1749 = vbcast.lane.b32.xlu0 %v1743, %s1748
      %v1750 = vpop.permute.xlu0 %1749
      %v1751 = vlaneseq
      %v1752 = vshrl.u32 %v1751, 7
      %v1753 = vsub.s32 2, %v1752
      %v1754 = vrot.slane %v1328, %v1753
      %1756 = vbcast.lane.b32.xlu0 %v1754, 256
      %v1757 = vpop.permute.xlu0 %1756
      %s1759 = sor.u32 256, 8
      %1760 = vbcast.lane.b32.xlu0 %v1754, %s1759
      %v1761 = vpop.permute.xlu0 %1760
      %v1762 = vlaneseq
      %v1763 = vshrl.u32 %v1762, 7
      %v1764 = vsub.s32 3, %v1763
      %v1765 = vrot.slane %v1328, %v1764
      %1767 = vbcast.lane.b32.xlu0 %v1765, 256
      %v1768 = vpop.permute.xlu0 %1767
      %s1770 = sor.u32 256, 8
      %1771 = vbcast.lane.b32.xlu0 %v1765, %s1770
      %v1772 = vpop.permute.xlu0 %1771
      %v1773 = vlaneseq
      %v1774 = vshrl.u32 %v1773, 7
      %v1775 = vsub.s32 4, %v1774
      %v1776 = vrot.slane %v1328, %v1775
      %1778 = vbcast.lane.b32.xlu0 %v1776, 256
      %v1779 = vpop.permute.xlu0 %1778
      %s1781 = sor.u32 256, 8
      %1782 = vbcast.lane.b32.xlu0 %v1776, %s1781
      %v1783 = vpop.permute.xlu0 %1782
      %v1784 = vmul.f32 %v1735, %v1561
      %v1785 = vmul.f32 %v1739, %v1561
      %v1786 = vmul.f32 %v1746, %v1561
      %v1787 = vmul.f32 %v1750, %v1561
      %v1788 = vmul.f32 %v1757, %v1561
      %v1789 = vmul.f32 %v1761, %v1561
      %v1790 = vmul.f32 %v1768, %v1561
      %v1791 = vmul.f32 %v1772, %v1561
      %v1792 = vmul.f32 %v1779, %v1561
      %v1793 = vmul.f32 %v1783, %v1561
      %v1794 = vlaneseq
      %v1795 = vshrl.u32 %v1794, 7
      %v1796 = vsub.s32 0, %v1795
      %v1797 = vrot.slane %v1404, %v1796
      %1799 = vbcast.lane.b32.xlu0 %v1797, 256
      %v1800 = vpop.permute.xlu0 %1799
      %s1802 = sor.u32 256, 8
      %1803 = vbcast.lane.b32.xlu0 %v1797, %s1802
      %v1804 = vpop.permute.xlu0 %1803
      %v1805 = vlaneseq
      %v1806 = vshrl.u32 %v1805, 7
      %v1807 = vsub.s32 1, %v1806
      %v1808 = vrot.slane %v1404, %v1807
      %1810 = vbcast.lane.b32.xlu0 %v1808, 256
      %v1811 = vpop.permute.xlu0 %1810
      %s1813 = sor.u32 256, 8
      %1814 = vbcast.lane.b32.xlu0 %v1808, %s1813
      %v1815 = vpop.permute.xlu0 %1814
      %v1816 = vlaneseq
      %v1817 = vshrl.u32 %v1816, 7
      %v1818 = vsub.s32 2, %v1817
      %v1819 = vrot.slane %v1404, %v1818
      %1821 = vbcast.lane.b32.xlu0 %v1819, 256
      %v1822 = vpop.permute.xlu0 %1821
      %s1824 = sor.u32 256, 8
      %1825 = vbcast.lane.b32.xlu0 %v1819, %s1824
      %v1826 = vpop.permute.xlu0 %1825
      %v1827 = vlaneseq
      %v1828 = vshrl.u32 %v1827, 7
      %v1829 = vsub.s32 3, %v1828
      %v1830 = vrot.slane %v1404, %v1829
      %1832 = vbcast.lane.b32.xlu0 %v1830, 256
      %v1833 = vpop.permute.xlu0 %1832
      %s1835 = sor.u32 256, 8
      %1836 = vbcast.lane.b32.xlu0 %v1830, %s1835
      %v1837 = vpop.permute.xlu0 %1836
      %v1838 = vlaneseq
      %v1839 = vshrl.u32 %v1838, 7
      %v1840 = vsub.s32 4, %v1839
      %v1841 = vrot.slane %v1404, %v1840
      %1843 = vbcast.lane.b32.xlu0 %v1841, 256
      %v1844 = vpop.permute.xlu0 %1843
      %s1846 = sor.u32 256, 8
      %1847 = vbcast.lane.b32.xlu0 %v1841, %s1846
      %v1848 = vpop.permute.xlu0 %1847
      %v1849 = vmul.f32 %v1800, %v1632
      %v1850 = vmul.f32 %v1804, %v1632
      %v1851 = vmul.f32 %v1811, %v1632
      %v1852 = vmul.f32 %v1815, %v1632
      %v1853 = vmul.f32 %v1822, %v1632
      %v1854 = vmul.f32 %v1826, %v1632
      %v1855 = vmul.f32 %v1833, %v1632
      %v1856 = vmul.f32 %v1837, %v1632
      %v1857 = vmul.f32 %v1844, %v1632
      %v1858 = vmul.f32 %v1848, %v1632
      %v1859 = vadd.f32 %v1784, %v1849
      %v1860 = vadd.f32 %v1785, %v1850
      %v1861 = vadd.f32 %v1786, %v1851
      %v1862 = vadd.f32 %v1787, %v1852
      %v1863 = vadd.f32 %v1788, %v1853
      %v1864 = vadd.f32 %v1789, %v1854
      %v1865 = vadd.f32 %v1790, %v1855
      %v1866 = vadd.f32 %v1791, %v1856
      %v1867 = vadd.f32 %v1792, %v1857
      %v1868 = vadd.f32 %v1793, %v1858
      %v1869 = vmul.f32 %v1483, 0.0
      %v1870 = vmul.f32 %v1485, 0.0
      %v1871 = vadd.f32 %v1869, %v1719
      %v1872 = vadd.f32 %v1870, %v1720
      %1873 = vst [vmem:[#allocation2] sm:$0xff] %v1871
      %1874 = vst [vmem:[#allocation2 + $0x8] sm:$0xff] %v1872
      %v1875 = vmul.f32 %v1487, %v1871
      %v1876 = vmul.f32 %v1489, %v1872
      %v1877 = vadd.f32 %v1875, %v1721
      %v1878 = vadd.f32 %v1876, %v1722
      %s1879 = scalar_lea.vmem [#allocation2], 16
      %1880 = vst [vmem:[%s1879] sm:$0xff] %v1877
      %1881 = vst [vmem:[%s1879 + $0x8] sm:$0xff] %v1878
      %v1882 = vmul.f32 %v1491, %v1877
      %v1883 = vmul.f32 %v1493, %v1878
      %v1884 = vadd.f32 %v1882, %v1723
      %v1885 = vadd.f32 %v1883, %v1724
      %s1886 = scalar_lea.vmem [#allocation2], 32
      %1887 = vst [vmem:[%s1886] sm:$0xff] %v1884
      %1888 = vst [vmem:[%s1886 + $0x8] sm:$0xff] %v1885
      %v1889 = vmul.f32 %v1495, %v1884
      %v1890 = vmul.f32 %v1497, %v1885
      %v1891 = vadd.f32 %v1889, %v1725
      %v1892 = vadd.f32 %v1890, %v1726
      %s1893 = scalar_lea.vmem [#allocation2], 48
      %1894 = vst [vmem:[%s1893] sm:$0xff] %v1891
      %1895 = vst [vmem:[%s1893 + $0x8] sm:$0xff] %v1892
      %v1896 = vmul.f32 %v1499, %v1891
      %v1897 = vmul.f32 %v1501, %v1892
      %v1898 = vadd.f32 %v1896, %v1727
      %v1899 = vadd.f32 %v1897, %v1728
      %s1900 = scalar_lea.vmem [#allocation2], 64
      %1901 = vst [vmem:[%s1900] sm:$0xff] %v1898
      %1902 = vst [vmem:[%s1900 + $0x8] sm:$0xff] %v1899
      %v1903 = vld [vmem:[#allocation2] sm:$0xff]
      %v1904 = vld [vmem:[#allocation2 + $0x8] sm:$0xff]
      %v1905 = vld [vmem:[#allocation2 + $0x10] sm:$0xff]
      %v1906 = vld [vmem:[#allocation2 + $0x18] sm:$0xff]
      %v1907 = vld [vmem:[#allocation2 + $0x20] sm:$0xff]
      %v1908 = vld [vmem:[#allocation2 + $0x28] sm:$0xff]
      %v1909 = vld [vmem:[#allocation2 + $0x30] sm:$0xff]
      %v1910 = vld [vmem:[#allocation2 + $0x38] sm:$0xff]
      %v1911 = vld [vmem:[#allocation2 + $0x40] sm:$0xff]
      %v1912 = vld [vmem:[#allocation2 + $0x48] sm:$0xff]
      %v1913 = vmul.f32 %v1903, %v1859
      %v1914 = vmul.f32 %v1904, %v1860
      %v1915 = vmul.f32 %v1905, %v1861
      %v1916 = vmul.f32 %v1906, %v1862
      %v1917 = vmul.f32 %v1907, %v1863
      %v1918 = vmul.f32 %v1908, %v1864
      %v1919 = vmul.f32 %v1909, %v1865
      %v1920 = vmul.f32 %v1910, %v1866
      %v1921 = vmul.f32 %v1911, %v1867
      %v1922 = vmul.f32 %v1912, %v1868
      %v1923 = vadd.f32 %v1913, %v1914
      %v1924 = vrot.slane %v1923, 4
      %v1925 = vadd.f32 %v1923, %v1924
      %v1926 = vrot.slane %v1925, 2
      %v1927 = vadd.f32 %v1925, %v1926
      %v1928 = vrot.slane %v1927, 1
      %v1929 = vadd.f32 %v1927, %v1928
      %v1930 = vadd.f32 %v1915, %v1916
      %v1931 = vrot.slane %v1930, 4
      %v1932 = vadd.f32 %v1930, %v1931
      %v1933 = vrot.slane %v1932, 2
      %v1934 = vadd.f32 %v1932, %v1933
      %v1935 = vrot.slane %v1934, 1
      %v1936 = vadd.f32 %v1934, %v1935
      %v1937 = vadd.f32 %v1917, %v1918
      %v1938 = vrot.slane %v1937, 4
      %v1939 = vadd.f32 %v1937, %v1938
      %v1940 = vrot.slane %v1939, 2
      %v1941 = vadd.f32 %v1939, %v1940
      %v1942 = vrot.slane %v1941, 1
      %v1943 = vadd.f32 %v1941, %v1942
      %v1944 = vadd.f32 %v1919, %v1920
      %v1945 = vrot.slane %v1944, 4
      %v1946 = vadd.f32 %v1944, %v1945
      %v1947 = vrot.slane %v1946, 2
      %v1948 = vadd.f32 %v1946, %v1947
      %v1949 = vrot.slane %v1948, 1
      %v1950 = vadd.f32 %v1948, %v1949
      %v1951 = vadd.f32 %v1921, %v1922
      %v1952 = vrot.slane %v1951, 4
      %v1953 = vadd.f32 %v1951, %v1952
      %v1954 = vrot.slane %v1953, 2
      %v1955 = vadd.f32 %v1953, %v1954
      %v1956 = vrot.slane %v1955, 1
      %v1957 = vadd.f32 %v1955, %v1956
      %v1959 = vlaneseq
      %v1960 = vshrl.u32 %v1959, 7
      %v1961 = vsub.s32 0, %v1960
      %v1962 = vrot.slane %v881, %v1961
      %v1964 = vmul.f32 %v1962, %v1010
      %v1966 = vrot.slane %v1964, 1
      %v1967 = vrot.slane %v1964, 2
      %v1968 = vrot.slane %v1964, 3
      %v1969 = vrot.slane %v1964, 4
      %v1975 = vadd.f32 %v1929, %v1964
      %v1976 = vadd.f32 %v1936, %v1966
      %v1977 = vadd.f32 %v1943, %v1967
      %v1978 = vadd.f32 %v1950, %v1968
      %v1979 = vadd.f32 %v1957, %v1969
      %v1981 = vrot.slane %v884, 1
      %v1982 = vrot.slane %v884, 2
      %v1983 = vrot.slane %v884, 3
      %v1984 = vrot.slane %v884, 4
      %v1990 = vmul.f32 %v1975, %v884
      %v1991 = vmul.f32 %v1976, %v1981
      %v1992 = vmul.f32 %v1977, %v1982
      %v1993 = vmul.f32 %v1978, %v1983
      %v1994 = vmul.f32 %v1979, %v1984
      %v1996 = vlaneseq
      %v1997 = vshrl.u32 %v1996, 7
      %v1998 = vsub.s32 0, %v1997
      %v1999 = vrot.slane %v902, %v1998
      %v2006 = vrot.slane %v1991, 7
      %vm2007 = vcmask 1041409
      %v2008 = vsel %vm2007, %v2006, %v1990
      %v2009 = vrot.slane %v1992, 6
      %vm2010 = vcmask 1042434
      %v2011 = vsel %vm2010, %v2009, %v2008
      %v2012 = vrot.slane %v1993, 5
      %vm2013 = vcmask 1043459
      %v2014 = vsel %vm2013, %v2012, %v2011
      %v2015 = vrot.slane %v1994, 4
      %vm2016 = vcmask 1044484
      %v2017 = vsel %vm2016, %v2015, %v2014
      %2019 = vmatprep.subr.mxu0 0.0
      %2020 = vmatpush1.msra.mxu0 %v901
      %2021 = vmatprep.subr.mxu0 0.0
      %2022 = vmatpush1.msra.mxu0 %v900
      %2023 = vmatprep.subr.mxu0 0.0
      %2024 = vmatpush1.msra.mxu0 %v899
      %2025 = vmatprep.subr.mxu0 0.0
      %2026 = vmatpush1.msra.mxu0 %v898
      %2027 = vmatprep.subr.mxu0 0.0
      %2028 = vmatpush1.msra.mxu0 %v897
      %2029 = vmatprep.subr.mxu0 0.0
      %2030 = vmatpush1.msra.mxu0 %v896
      %2031 = vmatprep.subr.mxu0 0.0
      %2032 = vmatpush1.msra.mxu0 %v895
      %2033 = vmatprep.subr.mxu0 0.0
      %2034 = vmatpush1.msra.mxu0 %v894
      %2035 = vmatprep.subr.mxu0 0.0
      %2036 = vmatpush1.msra.mxu0 %v893
      %2037 = vmatprep.subr.mxu0 0.0
      %2038 = vmatpush1.msra.mxu0 %v892
      %2039 = vmatprep.subr.mxu0 0.0
      %2040 = vmatpush1.msra.mxu0 %v891
      %2041 = vmatprep.subr.mxu0 0.0
      %2042 = vmatpush1.msra.mxu0 %v890
      %2043 = vmatprep.subr.mxu0 0.0
      %2044 = vmatpush1.msra.mxu0 %v889
      %2045 = vmatprep.subr.mxu0 0.0
      %2046 = vmatpush1.msra.mxu0 %v888
      %2047 = vmatprep.subr.mxu0 0.0
      %2048 = vmatpush1.msra.mxu0 %v887
      %2049 = vmatprep.subr.mxu0 0.0
      %2050 = vmatpush1.msra.mxu0 %v886
      %2051 = vmatprep.subr.mxu0 0.0
      %2052 = vmatpush2.msra.mxu0 0.0
      %2053 = vmatprep.subr.mxu0 0.0
      %2054 = vmatpush2.msra.mxu0 0.0
      %2055 = vmatprep.subr.mxu0 0.0
      %2056 = vmatpush2.msra.mxu0 0.0
      %2057 = vmatprep.subr.mxu0 0.0
      %2058 = vmatpush2.msra.mxu0 0.0
      %2059 = vmatprep.subr.mxu0 0.0
      %2060 = vmatpush2.msra.mxu0 0.0
      %2061 = vmatprep.subr.mxu0 0.0
      %2062 = vmatpush2.msra.mxu0 0.0
      %2063 = vmatprep.subr.mxu0 0.0
      %2064 = vmatpush2.msra.mxu0 0.0
      %2065 = vmatprep.subr.mxu0 0.0
      %2066 = vmatpush2.msra.mxu0 0.0
      %2067 = vmatprep.subr.mxu0 0.0
      %2068 = vmatpush2.msra.mxu0 0.0
      %2069 = vmatprep.subr.mxu0 0.0
      %2070 = vmatpush2.msra.mxu0 0.0
      %2071 = vmatprep.subr.mxu0 0.0
      %2072 = vmatpush2.msra.mxu0 0.0
      %2073 = vmatprep.subr.mxu0 0.0
      %2074 = vmatpush2.msra.mxu0 0.0
      %2075 = vmatprep.subr.mxu0 0.0
      %2076 = vmatpush2.msra.mxu0 0.0
      %2077 = vmatprep.subr.mxu0 0.0
      %2078 = vmatpush2.msra.mxu0 0.0
      %2079 = vmatprep.subr.mxu0 0.0
      %2080 = vmatpush2.msra.mxu0 0.0
      %2081 = vmatprep.subr.mxu0 0.0
      %2082 = vmatpush2.msra.mxu0 0.0
      %2083 = vmatprep.mubr.f32.mxu0 0.0
      %2084 = vmatmul.mubr.f32.gmra.mxu0 %v2017
      %v2085 = vpop.f32.mrf.mxu0
      %v2086 = vadd.f32 %v1999, %v2085
      %v2087 = vpop.f32.mrf.mxu0
      %2088 = vdwg.mxu0
      %2090 = vset.pattern.permute.xlu0 0
      %2091 = vperm.xlu0 %2090, %v885
      %v2092 = vpop.permute.xlu0 %2091
      %v2094 = vmul.f32 %v2086, %v2092
      %v2096 = vsel %vm930, %v2094, 0
      %2098 = vmatprep.subr.mxu0 0.0
      %2099 = vmatpush1.msra.mxu0 0.0
      %2100 = vmatprep.subr.mxu0 0.0
      %2101 = vmatpush1.msra.mxu0 0.0
      %2102 = vmatprep.subr.mxu0 0.0
      %2103 = vmatpush1.msra.mxu0 0.0
      %2104 = vmatprep.subr.mxu0 0.0
      %2105 = vmatpush1.msra.mxu0 0.0
      %2106 = vmatprep.subr.mxu0 0.0
      %2107 = vmatpush1.msra.mxu0 0.0
      %2108 = vmatprep.subr.mxu0 0.0
      %2109 = vmatpush1.msra.mxu0 0.0
      %2110 = vmatprep.subr.mxu0 0.0
      %2111 = vmatpush1.msra.mxu0 0.0
      %2112 = vmatprep.subr.mxu0 0.0
      %2113 = vmatpush1.msra.mxu0 0.0
      %2114 = vmatprep.subr.mxu0 0.0
      %2115 = vmatpush1.msra.mxu0 %v910
      %2116 = vmatprep.subr.mxu0 0.0
      %2117 = vmatpush1.msra.mxu0 %v909
      %2118 = vmatprep.subr.mxu0 0.0
      %2119 = vmatpush1.msra.mxu0 %v908
      %2120 = vmatprep.subr.mxu0 0.0
      %2121 = vmatpush1.msra.mxu0 %v907
      %2122 = vmatprep.subr.mxu0 0.0
      %2123 = vmatpush1.msra.mxu0 %v906
      %2124 = vmatprep.subr.mxu0 0.0
      %2125 = vmatpush1.msra.mxu0 %v905
      %2126 = vmatprep.subr.mxu0 0.0
      %2127 = vmatpush1.msra.mxu0 %v904
      %2128 = vmatprep.subr.mxu0 0.0
      %2129 = vmatpush1.msra.mxu0 %v903
      %2130 = vmatprep.subr.mxu0 0.0
      %2131 = vmatpush2.msra.mxu0 0.0
      %2132 = vmatprep.subr.mxu0 0.0
      %2133 = vmatpush2.msra.mxu0 0.0
      %2134 = vmatprep.subr.mxu0 0.0
      %2135 = vmatpush2.msra.mxu0 0.0
      %2136 = vmatprep.subr.mxu0 0.0
      %2137 = vmatpush2.msra.mxu0 0.0
      %2138 = vmatprep.subr.mxu0 0.0
      %2139 = vmatpush2.msra.mxu0 0.0
      %2140 = vmatprep.subr.mxu0 0.0
      %2141 = vmatpush2.msra.mxu0 0.0
      %2142 = vmatprep.subr.mxu0 0.0
      %2143 = vmatpush2.msra.mxu0 0.0
      %2144 = vmatprep.subr.mxu0 0.0
      %2145 = vmatpush2.msra.mxu0 0.0
      %2146 = vmatprep.subr.mxu0 0.0
      %2147 = vmatpush2.msra.mxu0 0.0
      %2148 = vmatprep.subr.mxu0 0.0
      %2149 = vmatpush2.msra.mxu0 0.0
      %2150 = vmatprep.subr.mxu0 0.0
      %2151 = vmatpush2.msra.mxu0 0.0
      %2152 = vmatprep.subr.mxu0 0.0
      %2153 = vmatpush2.msra.mxu0 0.0
      %2154 = vmatprep.subr.mxu0 0.0
      %2155 = vmatpush2.msra.mxu0 0.0
      %2156 = vmatprep.subr.mxu0 0.0
      %2157 = vmatpush2.msra.mxu0 0.0
      %2158 = vmatprep.subr.mxu0 0.0
      %2159 = vmatpush2.msra.mxu0 0.0
      %2160 = vmatprep.subr.mxu0 0.0
      %2161 = vmatpush2.msra.mxu0 0.0
      %2162 = vmatprep.mubr.f32.mxu0 0.0
      %2163 = vmatmul.mubr.f32.gmra.mxu0 %v2096
      %v2164 = vpop.f32.mrf.mxu0
      %v2165 = vadd.f32 0.0, %v2164
      %v2166 = vpop.f32.mrf.mxu0
      %2167 = vdwg.mxu0
      %2168 = vmatprep.subr.mxu0 0.0
      %2169 = vmatpush1.msra.mxu0 0.0
      %2170 = vmatprep.subr.mxu0 0.0
      %2171 = vmatpush1.msra.mxu0 0.0
      %2172 = vmatprep.subr.mxu0 0.0
      %2173 = vmatpush1.msra.mxu0 0.0
      %2174 = vmatprep.subr.mxu0 0.0
      %2175 = vmatpush1.msra.mxu0 0.0
      %2176 = vmatprep.subr.mxu0 0.0
      %2177 = vmatpush1.msra.mxu0 0.0
      %2178 = vmatprep.subr.mxu0 0.0
      %2179 = vmatpush1.msra.mxu0 0.0
      %2180 = vmatprep.subr.mxu0 0.0
      %2181 = vmatpush1.msra.mxu0 0.0
      %2182 = vmatprep.subr.mxu0 0.0
      %2183 = vmatpush1.msra.mxu0 0.0
      %2184 = vmatprep.subr.mxu0 0.0
      %2185 = vmatpush1.msra.mxu0 %v918
      %2186 = vmatprep.subr.mxu0 0.0
      %2187 = vmatpush1.msra.mxu0 %v917
      %2188 = vmatprep.subr.mxu0 0.0
      %2189 = vmatpush1.msra.mxu0 %v916
      %2190 = vmatprep.subr.mxu0 0.0
      %2191 = vmatpush1.msra.mxu0 %v915
      %2192 = vmatprep.subr.mxu0 0.0
      %2193 = vmatpush1.msra.mxu0 %v914
      %2194 = vmatprep.subr.mxu0 0.0
      %2195 = vmatpush1.msra.mxu0 %v913
      %2196 = vmatprep.subr.mxu0 0.0
      %2197 = vmatpush1.msra.mxu0 %v912
      %2198 = vmatprep.subr.mxu0 0.0
      %2199 = vmatpush1.msra.mxu0 %v911
      %2200 = vmatprep.subr.mxu0 0.0
      %2201 = vmatpush2.msra.mxu0 0.0
      %2202 = vmatprep.subr.mxu0 0.0
      %2203 = vmatpush2.msra.mxu0 0.0
      %2204 = vmatprep.subr.mxu0 0.0
      %2205 = vmatpush2.msra.mxu0 0.0
      %2206 = vmatprep.subr.mxu0 0.0
      %2207 = vmatpush2.msra.mxu0 0.0
      %2208 = vmatprep.subr.mxu0 0.0
      %2209 = vmatpush2.msra.mxu0 0.0
      %2210 = vmatprep.subr.mxu0 0.0
      %2211 = vmatpush2.msra.mxu0 0.0
      %2212 = vmatprep.subr.mxu0 0.0
      %2213 = vmatpush2.msra.mxu0 0.0
      %2214 = vmatprep.subr.mxu0 0.0
      %2215 = vmatpush2.msra.mxu0 0.0
      %2216 = vmatprep.subr.mxu0 0.0
      %2217 = vmatpush2.msra.mxu0 0.0
      %2218 = vmatprep.subr.mxu0 0.0
      %2219 = vmatpush2.msra.mxu0 0.0
      %2220 = vmatprep.subr.mxu0 0.0
      %2221 = vmatpush2.msra.mxu0 0.0
      %2222 = vmatprep.subr.mxu0 0.0
      %2223 = vmatpush2.msra.mxu0 0.0
      %2224 = vmatprep.subr.mxu0 0.0
      %2225 = vmatpush2.msra.mxu0 0.0
      %2226 = vmatprep.subr.mxu0 0.0
      %2227 = vmatpush2.msra.mxu0 0.0
      %2228 = vmatprep.subr.mxu0 0.0
      %2229 = vmatpush2.msra.mxu0 0.0
      %2230 = vmatprep.subr.mxu0 0.0
      %2231 = vmatpush2.msra.mxu0 0.0
      %2232 = vmatprep.mubr.f32.mxu0 0.0
      %2233 = vmatmul.mubr.f32.gmra.mxu0 %v2096
      %v2234 = vpop.f32.mrf.mxu0
      %v2235 = vadd.f32 0.0, %v2234
      %v2236 = vpop.f32.mrf.mxu0
      %2237 = vdwg.mxu0
      %vm2238 = vcmask 69632
      %v2239 = vsel %vm2238, %v2165, -inf
      %v2240 = vrot.slane %v2239, 4
      %v2241 = vmax.f32 %v2239, %v2240
      %v2242 = vrot.slane %v2241, 2
      %v2243 = vmax.f32 %v2241, %v2242
      %v2244 = vrot.slane %v2243, 1
      %v2245 = vmax.f32 %v2243, %v2244
      %v2246 = vsub.f32 %v2165, %v2245
      %v2247 = vmul.f32 %v2246, 1.442695
      %v2248 = vpow.pop %v2247
      %v2249 = vsel %vm2238, %v2248, 0.0
      %v2250 = vrot.slane %v2249, 4
      %v2251 = vadd.f32 %v2249, %v2250
      %v2252 = vrot.slane %v2251, 2
      %v2253 = vadd.f32 %v2251, %v2252
      %v2254 = vrot.slane %v2253, 1
      %v2255 = vadd.f32 %v2253, %v2254
      %v2256 = vrcp.pop %v2255
      %v2257 = vmul.f32 %v2248, %v2256
      %2258 = vxpose.xlu0.b32.start [1/16] %v2257, 128
      %2259 = vxpose.xlu0.b32.cont [2/16] 0.0, 128
      %2260 = vxpose.xlu0.b32.cont [3/16] 0.0, 128
      %2261 = vxpose.xlu0.b32.cont [4/16] 0.0, 128
      %2262 = vxpose.xlu0.b32.cont [5/16] 0.0, 128
      %2263 = vxpose.xlu0.b32.cont [6/16] 0.0, 128
      %2264 = vxpose.xlu0.b32.cont [7/16] 0.0, 128
      %2265 = vxpose.xlu0.b32.cont [8/16] 0.0, 128
      %2266 = vxpose.xlu0.b32.cont [9/16] 0.0, 128
      %2267 = vxpose.xlu0.b32.cont [10/16] 0.0, 128
      %2268 = vxpose.xlu0.b32.cont [11/16] 0.0, 128
      %2269 = vxpose.xlu0.b32.cont [12/16] 0.0, 128
      %2270 = vxpose.xlu0.b32.cont [13/16] 0.0, 128
      %2271 = vxpose.xlu0.b32.cont [14/16] 0.0, 128
      %2272 = vxpose.xlu0.b32.cont [15/16] 0.0, 128
      %2273 = vxpose.xlu0.b32.end [16/16] 0.0, 128
      %v2274 = vpop.trf.xlu0
      %v2275 = vpop.trf.xlu0
      %v2276 = vpop.trf.xlu0
      %v2277 = vpop.trf.xlu0
      %v2278 = vpop.trf.xlu0
      %v2279 = vpop.trf.xlu0
      %v2280 = vpop.trf.xlu0
      %v2281 = vpop.trf.xlu0
      %v2282 = vpop.trf.xlu0
      %v2283 = vpop.trf.xlu0
      %v2284 = vpop.trf.xlu0
      %v2285 = vpop.trf.xlu0
      %v2286 = vpop.trf.xlu0
      %v2287 = vpop.trf.xlu0
      %v2288 = vpop.trf.xlu0
      %v2289 = vpop.trf.xlu0
      %vm2290 = vcmask 39936
      %v2292 = vsel %vm2290, %v2274, 0
      %v2295 = vsel %vm2290, %v2275, 0
      %vm2297 = vcmask 1044480
      %v2299 = vsel %vm2297, %v2235, 0
      %2301 = vmatprep.subr.mxu0 0.0
      %2302 = vmatpush1.msra.mxu0 0.0
      %2303 = vmatprep.subr.mxu0 0.0
      %2304 = vmatpush1.msra.mxu0 0.0
      %2305 = vmatprep.subr.mxu0 0.0
      %2306 = vmatpush1.msra.mxu0 0.0
      %2307 = vmatprep.subr.mxu0 0.0
      %2308 = vmatpush1.msra.mxu0 0.0
      %2309 = vmatprep.subr.mxu0 0.0
      %2310 = vmatpush1.msra.mxu0 0.0
      %2311 = vmatprep.subr.mxu0 0.0
      %2312 = vmatpush1.msra.mxu0 0.0
      %2313 = vmatprep.subr.mxu0 0.0
      %2314 = vmatpush1.msra.mxu0 0.0
      %2315 = vmatprep.subr.mxu0 0.0
      %2316 = vmatpush1.msra.mxu0 0.0
      %2317 = vmatprep.subr.mxu0 0.0
      %2318 = vmatpush1.msra.mxu0 0.0
      %2319 = vmatprep.subr.mxu0 0.0
      %2320 = vmatpush1.msra.mxu0 0.0
      %2321 = vmatprep.subr.mxu0 0.0
      %2322 = vmatpush1.msra.mxu0 0.0
      %2323 = vmatprep.subr.mxu0 0.0
      %2324 = vmatpush1.msra.mxu0 0.0
      %2325 = vmatprep.subr.mxu0 0.0
      %2326 = vmatpush1.msra.mxu0 0.0
      %2327 = vmatprep.subr.mxu0 0.0
      %2328 = vmatpush1.msra.mxu0 0.0
      %2329 = vmatprep.subr.mxu0 0.0
      %2330 = vmatpush1.msra.mxu0 0.0
      %2331 = vmatprep.subr.mxu0 0.0
      %2332 = vmatpush1.msra.mxu0 %v2299
      %2333 = vmatprep.subr.mxu0 0.0
      %2334 = vmatpush2.msra.mxu0 0.0
      %2335 = vmatprep.subr.mxu0 0.0
      %2336 = vmatpush2.msra.mxu0 0.0
      %2337 = vmatprep.subr.mxu0 0.0
      %2338 = vmatpush2.msra.mxu0 0.0
      %2339 = vmatprep.subr.mxu0 0.0
      %2340 = vmatpush2.msra.mxu0 0.0
      %2341 = vmatprep.subr.mxu0 0.0
      %2342 = vmatpush2.msra.mxu0 0.0
      %2343 = vmatprep.subr.mxu0 0.0
      %2344 = vmatpush2.msra.mxu0 0.0
      %2345 = vmatprep.subr.mxu0 0.0
      %2346 = vmatpush2.msra.mxu0 0.0
      %2347 = vmatprep.subr.mxu0 0.0
      %2348 = vmatpush2.msra.mxu0 0.0
      %2349 = vmatprep.subr.mxu0 0.0
      %2350 = vmatpush2.msra.mxu0 0.0
      %2351 = vmatprep.subr.mxu0 0.0
      %2352 = vmatpush2.msra.mxu0 0.0
      %2353 = vmatprep.subr.mxu0 0.0
      %2354 = vmatpush2.msra.mxu0 0.0
      %2355 = vmatprep.subr.mxu0 0.0
      %2356 = vmatpush2.msra.mxu0 0.0
      %2357 = vmatprep.subr.mxu0 0.0
      %2358 = vmatpush2.msra.mxu0 0.0
      %2359 = vmatprep.subr.mxu0 0.0
      %2360 = vmatpush2.msra.mxu0 0.0
      %2361 = vmatprep.subr.mxu0 0.0
      %2362 = vmatpush2.msra.mxu0 0.0
      %2363 = vmatprep.subr.mxu0 0.0
      %2364 = vmatpush2.msra.mxu0 0.0
      %2365 = vmatprep.mubr.f32.mxu0 0.0
      %2366 = vmatmul.mubr.f32.gmra.mxu0 %v2292
      %v2367 = vpop.f32.mrf.mxu0
      %v2368 = vadd.f32 0.0, %v2367
      %v2369 = vpop.f32.mrf.mxu0
      %2370 = vmatprep.mubr.f32.mxu0 0.0
      %2371 = vmatmul.mubr.f32.gmra.mxu0 %v2295
      %v2372 = vpop.f32.mrf.mxu0
      %v2373 = vadd.f32 0.0, %v2372
      %v2374 = vpop.f32.mrf.mxu0
      %2375 = vdwg.mxu0
      %v2376 = vld [vmem:[%s776] sm:$0xff]
      %v2377 = vld [vmem:[%s776 + $0x8] sm:$0x1]
      %vm2378 = vcmask 261120
      %v2380 = vsel %vm2378, %v2376, 0
      %v2383 = vsel %vm2378, %v2377, 0
      %2385 = vmatprep.subr.mxu0 0.0
      %2386 = vmatpush1.msra.mxu0 0.0
      %2387 = vmatprep.subr.mxu0 0.0
      %2388 = vmatpush1.msra.mxu0 0.0
      %2389 = vmatprep.subr.mxu0 0.0
      %2390 = vmatpush1.msra.mxu0 0.0
      %2391 = vmatprep.subr.mxu0 0.0
      %2392 = vmatpush1.msra.mxu0 0.0
      %2393 = vmatprep.subr.mxu0 0.0
      %2394 = vmatpush1.msra.mxu0 0.0
      %2395 = vmatprep.subr.mxu0 0.0
      %2396 = vmatpush1.msra.mxu0 0.0
      %2397 = vmatprep.subr.mxu0 0.0
      %2398 = vmatpush1.msra.mxu0 0.0
      %2399 = vmatprep.subr.mxu0 0.0
      %2400 = vmatpush1.msra.mxu0 0.0
      %2401 = vmatprep.subr.mxu0 0.0
      %2402 = vmatpush1.msra.mxu0 0.0
      %2403 = vmatprep.subr.mxu0 0.0
      %2404 = vmatpush1.msra.mxu0 0.0
      %2405 = vmatprep.subr.mxu0 0.0
      %2406 = vmatpush1.msra.mxu0 0.0
      %2407 = vmatprep.subr.mxu0 0.0
      %2408 = vmatpush1.msra.mxu0 0.0
      %2409 = vmatprep.subr.mxu0 0.0
      %2410 = vmatpush1.msra.mxu0 %v793
      %2411 = vmatprep.subr.mxu0 0.0
      %2412 = vmatpush1.msra.mxu0 %v792
      %2413 = vmatprep.subr.mxu0 0.0
      %2414 = vmatpush1.msra.mxu0 %v791
      %2415 = vmatprep.subr.mxu0 0.0
      %2416 = vmatpush1.msra.mxu0 %v790
      %2417 = vmatprep.subr.mxu0 0.0
      %2418 = vmatpush2.msra.mxu0 0.0
      %2419 = vmatprep.subr.mxu0 0.0
      %2420 = vmatpush2.msra.mxu0 0.0
      %2421 = vmatprep.subr.mxu0 0.0
      %2422 = vmatpush2.msra.mxu0 0.0
      %2423 = vmatprep.subr.mxu0 0.0
      %2424 = vmatpush2.msra.mxu0 0.0
      %2425 = vmatprep.subr.mxu0 0.0
      %2426 = vmatpush2.msra.mxu0 0.0
      %2427 = vmatprep.subr.mxu0 0.0
      %2428 = vmatpush2.msra.mxu0 0.0
      %2429 = vmatprep.subr.mxu0 0.0
      %2430 = vmatpush2.msra.mxu0 0.0
      %2431 = vmatprep.subr.mxu0 0.0
      %2432 = vmatpush2.msra.mxu0 0.0
      %2433 = vmatprep.subr.mxu0 0.0
      %2434 = vmatpush2.msra.mxu0 0.0
      %2435 = vmatprep.subr.mxu0 0.0
      %2436 = vmatpush2.msra.mxu0 0.0
      %2437 = vmatprep.subr.mxu0 0.0
      %2438 = vmatpush2.msra.mxu0 0.0
      %2439 = vmatprep.subr.mxu0 0.0
      %2440 = vmatpush2.msra.mxu0 0.0
      %2441 = vmatprep.subr.mxu0 0.0
      %2442 = vmatpush2.msra.mxu0 0.0
      %2443 = vmatprep.subr.mxu0 0.0
      %2444 = vmatpush2.msra.mxu0 0.0
      %2445 = vmatprep.subr.mxu0 0.0
      %2446 = vmatpush2.msra.mxu0 0.0
      %2447 = vmatprep.subr.mxu0 0.0
      %2448 = vmatpush2.msra.mxu0 0.0
      %2449 = vmatprep.mubr.f32.mxu0 0.0
      %2450 = vmatmul.mubr.f32.gmra.mxu0 %v2380
      %v2451 = vpop.f32.mrf.mxu0
      %v2452 = vadd.f32 0.0, %v2451
      %v2453 = vpop.f32.mrf.mxu0
      %2454 = vmatprep.mubr.f32.mxu0 0.0
      %2455 = vmatmul.mubr.f32.gmra.mxu0 %v2383
      %v2456 = vpop.f32.mrf.mxu0
      %v2457 = vadd.f32 0.0, %v2456
      %v2458 = vpop.f32.mrf.mxu0
      %2459 = vdwg.mxu0
      %vm2460 = vcmask 72704
      %v2462 = vsel %vm2460, %v927, 0
      %v2465 = vsel %vm2460, %v928, 0
      %vm2467 = vcmask 1040384
      %v2469 = vsel %vm2467, %v2457, 0
      %2471 = vmatprep.subr.mxu0 0.0
      %2472 = vmatpush1.msra.mxu0 0.0
      %2473 = vmatprep.subr.mxu0 0.0
      %2474 = vmatpush1.msra.mxu0 0.0
      %2475 = vmatprep.subr.mxu0 0.0
      %2476 = vmatpush1.msra.mxu0 0.0
      %2477 = vmatprep.subr.mxu0 0.0
      %2478 = vmatpush1.msra.mxu0 0.0
      %2479 = vmatprep.subr.mxu0 0.0
      %2480 = vmatpush1.msra.mxu0 0.0
      %2481 = vmatprep.subr.mxu0 0.0
      %2482 = vmatpush1.msra.mxu0 0.0
      %2483 = vmatprep.subr.mxu0 0.0
      %2484 = vmatpush1.msra.mxu0 0.0
      %2485 = vmatprep.subr.mxu0 0.0
      %2486 = vmatpush1.msra.mxu0 0.0
      %2487 = vmatprep.subr.mxu0 0.0
      %2488 = vmatpush1.msra.mxu0 0.0
      %2489 = vmatprep.subr.mxu0 0.0
      %2490 = vmatpush1.msra.mxu0 0.0
      %2491 = vmatprep.subr.mxu0 0.0
      %2492 = vmatpush1.msra.mxu0 0.0
      %2493 = vmatprep.subr.mxu0 0.0
      %2494 = vmatpush1.msra.mxu0 0.0
      %2495 = vmatprep.subr.mxu0 0.0
      %2496 = vmatpush1.msra.mxu0 0.0
      %2497 = vmatprep.subr.mxu0 0.0
      %2498 = vmatpush1.msra.mxu0 0.0
      %2499 = vmatprep.subr.mxu0 0.0
      %2500 = vmatpush1.msra.mxu0 %v2469
      %2501 = vmatprep.subr.mxu0 0.0
      %2502 = vmatpush1.msra.mxu0 %v2452
      %2503 = vmatprep.subr.mxu0 0.0
      %2504 = vmatpush2.msra.mxu0 0.0
      %2505 = vmatprep.subr.mxu0 0.0
      %2506 = vmatpush2.msra.mxu0 0.0
      %2507 = vmatprep.subr.mxu0 0.0
      %2508 = vmatpush2.msra.mxu0 0.0
      %2509 = vmatprep.subr.mxu0 0.0
      %2510 = vmatpush2.msra.mxu0 0.0
      %2511 = vmatprep.subr.mxu0 0.0
      %2512 = vmatpush2.msra.mxu0 0.0
      %2513 = vmatprep.subr.mxu0 0.0
      %2514 = vmatpush2.msra.mxu0 0.0
      %2515 = vmatprep.subr.mxu0 0.0
      %2516 = vmatpush2.msra.mxu0 0.0
      %2517 = vmatprep.subr.mxu0 0.0
      %2518 = vmatpush2.msra.mxu0 0.0
      %2519 = vmatprep.subr.mxu0 0.0
      %2520 = vmatpush2.msra.mxu0 0.0
      %2521 = vmatprep.subr.mxu0 0.0
      %2522 = vmatpush2.msra.mxu0 0.0
      %2523 = vmatprep.subr.mxu0 0.0
      %2524 = vmatpush2.msra.mxu0 0.0
      %2525 = vmatprep.subr.mxu0 0.0
      %2526 = vmatpush2.msra.mxu0 0.0
      %2527 = vmatprep.subr.mxu0 0.0
      %2528 = vmatpush2.msra.mxu0 0.0
      %2529 = vmatprep.subr.mxu0 0.0
      %2530 = vmatpush2.msra.mxu0 0.0
      %2531 = vmatprep.subr.mxu0 0.0
      %2532 = vmatpush2.msra.mxu0 0.0
      %2533 = vmatprep.subr.mxu0 0.0
      %2534 = vmatpush2.msra.mxu0 0.0
      %2535 = vmatprep.mubr.f32.mxu0 0.0
      %2536 = vmatmul.mubr.f32.gmra.mxu0 %v2462
      %v2537 = vpop.f32.mrf.mxu0
      %v2538 = vadd.f32 0.0, %v2537
      %v2539 = vpop.f32.mrf.mxu0
      %2540 = vmatprep.mubr.f32.mxu0 0.0
      %2541 = vmatmul.mubr.f32.gmra.mxu0 %v2465
      %v2542 = vpop.f32.mrf.mxu0
      %v2543 = vadd.f32 0.0, %v2542
      %v2544 = vpop.f32.mrf.mxu0
      %2545 = vdwg.mxu0
      %v2546 = vsub.f32 0.0, %v2538
      %v2547 = vsub.f32 0.0, %v2543
      %v2548 = vmul.f32 %v2546, 1.442695
      %v2549 = vpow.pop %v2548
      %v2550 = vmul.f32 %v2547, 1.442695
      %v2551 = vpow.pop %v2550
      %v2552 = vadd.f32 %v2549, 1.0
      %v2553 = vadd.f32 %v2551, 1.0
      %v2554 = vrcp.pop %v2552
      %v2555 = vmul.f32 1.0, %v2554
      %v2556 = vrcp.pop %v2553
      %v2557 = vmul.f32 1.0, %v2556
      %v2558 = vmul.f32 %v2538, %v2555
      %v2559 = vmul.f32 %v2543, %v2557
      %v2560 = vmul.f32 %v2368, %v2558
      %v2561 = vmul.f32 %v2373, %v2559
      %v2563 = vsel %vm930, %v2560, 0
      %v2566 = vsel %vm930, %v2561, 0
      %2568 = vmatprep.subr.mxu0 0.0
      %2569 = vmatpush1.msra.mxu0 0.0
      %2570 = vmatprep.subr.mxu0 0.0
      %2571 = vmatpush1.msra.mxu0 0.0
      %2572 = vmatprep.subr.mxu0 0.0
      %2573 = vmatpush1.msra.mxu0 0.0
      %2574 = vmatprep.subr.mxu0 0.0
      %2575 = vmatpush1.msra.mxu0 0.0
      %2576 = vmatprep.subr.mxu0 0.0
      %2577 = vmatpush1.msra.mxu0 0.0
      %2578 = vmatprep.subr.mxu0 0.0
      %2579 = vmatpush1.msra.mxu0 0.0
      %2580 = vmatprep.subr.mxu0 0.0
      %2581 = vmatpush1.msra.mxu0 0.0
      %2582 = vmatprep.subr.mxu0 0.0
      %2583 = vmatpush1.msra.mxu0 0.0
      %2584 = vmatprep.subr.mxu0 0.0
      %2585 = vmatpush1.msra.mxu0 %v926
      %2586 = vmatprep.subr.mxu0 0.0
      %2587 = vmatpush1.msra.mxu0 %v925
      %2588 = vmatprep.subr.mxu0 0.0
      %2589 = vmatpush1.msra.mxu0 %v924
      %2590 = vmatprep.subr.mxu0 0.0
      %2591 = vmatpush1.msra.mxu0 %v923
      %2592 = vmatprep.subr.mxu0 0.0
      %2593 = vmatpush1.msra.mxu0 %v922
      %2594 = vmatprep.subr.mxu0 0.0
      %2595 = vmatpush1.msra.mxu0 %v921
      %2596 = vmatprep.subr.mxu0 0.0
      %2597 = vmatpush1.msra.mxu0 %v920
      %2598 = vmatprep.subr.mxu0 0.0
      %2599 = vmatpush1.msra.mxu0 %v919
      %2600 = vmatprep.subr.mxu0 0.0
      %2601 = vmatpush2.msra.mxu0 0.0
      %2602 = vmatprep.subr.mxu0 0.0
      %2603 = vmatpush2.msra.mxu0 0.0
      %2604 = vmatprep.subr.mxu0 0.0
      %2605 = vmatpush2.msra.mxu0 0.0
      %2606 = vmatprep.subr.mxu0 0.0
      %2607 = vmatpush2.msra.mxu0 0.0
      %2608 = vmatprep.subr.mxu0 0.0
      %2609 = vmatpush2.msra.mxu0 0.0
      %2610 = vmatprep.subr.mxu0 0.0
      %2611 = vmatpush2.msra.mxu0 0.0
      %2612 = vmatprep.subr.mxu0 0.0
      %2613 = vmatpush2.msra.mxu0 0.0
      %2614 = vmatprep.subr.mxu0 0.0
      %2615 = vmatpush2.msra.mxu0 0.0
      %2616 = vmatprep.subr.mxu0 0.0
      %2617 = vmatpush2.msra.mxu0 0.0
      %2618 = vmatprep.subr.mxu0 0.0
      %2619 = vmatpush2.msra.mxu0 0.0
      %2620 = vmatprep.subr.mxu0 0.0
      %2621 = vmatpush2.msra.mxu0 0.0
      %2622 = vmatprep.subr.mxu0 0.0
      %2623 = vmatpush2.msra.mxu0 0.0
      %2624 = vmatprep.subr.mxu0 0.0
      %2625 = vmatpush2.msra.mxu0 0.0
      %2626 = vmatprep.subr.mxu0 0.0
      %2627 = vmatpush2.msra.mxu0 0.0
      %2628 = vmatprep.subr.mxu0 0.0
      %2629 = vmatpush2.msra.mxu0 0.0
      %2630 = vmatprep.subr.mxu0 0.0
      %2631 = vmatpush2.msra.mxu0 0.0
      %2632 = vmatprep.mubr.f32.mxu0 0.0
      %2633 = vmatmul.mubr.f32.gmra.mxu0 %v2563
      %v2634 = vpop.f32.mrf.mxu0
      %v2635 = vadd.f32 0.0, %v2634
      %v2636 = vpop.f32.mrf.mxu0
      %2637 = vmatprep.mubr.f32.mxu0 0.0
      %2638 = vmatmul.mubr.f32.gmra.mxu0 %v2566
      %v2639 = vpop.f32.mrf.mxu0
      %v2640 = vadd.f32 0.0, %v2639
      %v2641 = vpop.f32.mrf.mxu0
      %2642 = vdwg.mxu0
      %2643 = vst.msk [vmem:[%s781] sm:$0xff] %vm2378, %v2635
      %vm2644 = vcmask 253952
      %2645 = vst.msk [vmem:[%s781 + $0x8] sm:$0x1] %vm2644, %v2640
      %p2646 = scmp.lt.s32.totalorder %s36, 1
      %s2647 = scalar_select %p2646, %s36, 1
      %s2648 = smul.addr %s2647, 2
      %s2649 = smul.addr %s2648, 8
      %s2650 = scalar_lea.vmem %s25, %s2649
      // Predicated region
      $region121: #{tpu_custom_call.1} parent=119 // pred_check
        %p2651 = pneg %p589
      $region122: #{tpu_custom_call.1} parent=119 // pred_check_branch
        %2653 = sbr.rel (%p2651) target = $region124
      $region123: #{tpu_custom_call.1} parent=119 // pred_region
        _
      $region124: #{tpu_custom_call.1} parent=119 // pred_fallthru
        _
    $region120: #{tpu_custom_call.1} parent=5 // pred_fallthru
      _
    %p2654 = scmp.le.s32.totalorder 2, %s31
    // Predicated region
    $region125: #{tpu_custom_call.1} parent=5 // pred_check
      %p2655 = pneg %p2654
    $region126: #{tpu_custom_call.1} parent=5 // pred_check_branch
      %2657 = sbr.rel (%p2655) target = $region128
    $region127: #{tpu_custom_call.1} parent=5 // pred_region
      %s2658 = ssub.s32 %s31, 2
      // Predicated region
      $region129: #{tpu_custom_call.1} parent=127 // pred_check
        %p2659 = pneg %p595
      $region130: #{tpu_custom_call.1} parent=127 // pred_check_branch
        %2661 = sbr.rel (%p2659) target = $region132
      $region131: #{tpu_custom_call.1} parent=127 // pred_region
        %p2662 = scmp.lt.s32.totalorder %s37, 1
        %s2663 = scalar_select %p2662, %s37, 1
        %s2664 = smul.addr %s2663, 2
        %s2665 = smul.addr %s2664, 8
        %s2666 = scalar_lea.vmem %s25, %s2665
      $region132: #{tpu_custom_call.1} parent=127 // pred_fallthru
        _
    $region128: #{tpu_custom_call.1} parent=5 // pred_fallthru
      _
  $region6: #{tpu_custom_call.1} parent=0 // loop_footer
    %s35 = sadd.s32 1, %s31
  $region7: #{tpu_custom_call.1} parent=0 // loop_footer_branch
    %30 = sbr.rel target = $region3
  $region8: #{tpu_custom_call.1} parent=0 // loop_exit
    _

</llo_original>
